<compile_context>
chip_gen: v6e
topology: v6e:2x2x1
jax: 0.10.0
libtpu: 0.0.40
codegen_flags: <defaults>
</compile_context>

<pallas_src>
import jax
import jax.numpy as jnp
from jax import lax
from jax.experimental import pallas as pl
from jax.experimental.pallas import tpu as pltpu

# --- hyperparameters from the reference module ------------------------------
N_EMBD     = 384                 # n_embd
N_HEAD     = 6                   # num_heads (6 * 64 == n_embd)
HEAD_SIZE  = N_EMBD // N_HEAD    # head_size = 64
BLOCK_SIZE = 128                 # tril context length (T must be <= BLOCK_SIZE)
DROPOUT    = 0.15                # eval mode -> identity in this forward


# ------------------------------ fused MHA kernel ----------------------------
def _mha_kernel(x_ref, wqkv_ref, wo_ref, bo_ref, o_ref):
    # x_ref / o_ref: (T, C) bf16 for the current batch element (batch dim squeezed).
    T, C = x_ref.shape

    # (1) fused QKV projection: one (T, C) @ (C, 3C) MXU matmul, f32 accumulate,
    #     then a single cast of qkv to bf16 (no per-head f32 slice-casts).
    qkv = jnp.dot(x_ref[...], wqkv_ref[...],
                  preferred_element_type=jnp.float32).astype(jnp.bfloat16)   # (T, 3C)

    # (2) causal additive bias, built once per grid step (finite -1e30, not -inf).
    rows = lax.broadcasted_iota(jnp.int32, (T, T), 0)
    cols = lax.broadcasted_iota(jnp.int32, (T, T), 1)
    bias = jnp.where(rows >= cols, jnp.float32(0.0), jnp.float32(-1e30))     # (T, T) f32

    heads = []
    for h in range(N_HEAD):                       # static unroll over heads
        lo = h * HEAD_SIZE
        # scale 1/sqrt(HEAD_SIZE) is already folded into the Q columns of wqkv
        qh = qkv[:, lo:lo + HEAD_SIZE]                                       # (T, D) bf16
        kh = qkv[:, C + lo:C + lo + HEAD_SIZE]                               # (T, D) bf16
        vh = qkv[:, 2 * C + lo:2 * C + lo + HEAD_SIZE]                       # (T, D) bf16

        # scores: contract the head dim of q and k directly (no explicit k.T)
        s = jnp.einsum('td,sd->ts', qh, kh,
                       preferred_element_type=jnp.float32) + bias            # (T, T) f32
        p = jnp.exp(s - jnp.max(s, axis=-1, keepdims=True))                  # (T, T) f32
        r = pl.reciprocal(jnp.sum(p, axis=-1, keepdims=True), approx=True)   # (T, 1) EUP

        # deferred normalization: scale the 64-wide PV result, not the 128-wide probs
        att = jnp.einsum('ts,sd->td', p.astype(jnp.bfloat16), vh,
                         preferred_element_type=jnp.float32)                 # (T, D) f32
        heads.append((att * r).astype(jnp.bfloat16))
        # TODO(synk): attention-dropout (p=0.15) is identity (eval mode).

    # (3) single full-depth output projection: concat(heads) (T, C) @ Wo (C, C).
    concat = jnp.concatenate(heads, axis=-1)                                 # (T, C) bf16
    out = jnp.dot(concat, wo_ref[...],
                  preferred_element_type=jnp.float32) + bo_ref[...]          # (T, C) f32
    # TODO(synk): projection-dropout (p=0.15) is identity (eval mode).
    o_ref[...] = out.astype(o_ref.dtype)


def multi_head_attention(x, wqkv_scaled, wo, bo):
    """x: (B, T, C) bf16; wqkv_scaled: (C, 3C) bf16 ([Wq*scale | Wk | Wv]);
       wo: (C, C) bf16; bo: (1, C) f32.  Returns (B, T, C) bf16."""
    B, T, C = x.shape
    assert C == N_EMBD and T <= BLOCK_SIZE and T % 8 == 0
    return pl.pallas_call(
        _mha_kernel,
        out_shape=jax.ShapeDtypeStruct((B, T, C), jnp.bfloat16),
        grid=(B,),
        in_specs=[
            pl.BlockSpec((None, T, C), lambda b: (b, 0, 0)),      # activation, per-batch tile
            pl.BlockSpec((C, 3 * C), lambda b: (0, 0)),           # weights: constant index_map
            pl.BlockSpec((C, C), lambda b: (0, 0)),               #   -> fetched once, resident
            pl.BlockSpec((1, C), lambda b: (0, 0)),
        ],
        out_specs=pl.BlockSpec((None, T, C), lambda b: (b, 0, 0)),
        compiler_params=pltpu.CompilerParams(
            dimension_semantics=("parallel",)),                   # 2x on v7x, free elsewhere
    )(x, wqkv_scaled, wo, bo)


# ------------------------- pure-JAX reference (for checking) ----------------
def mha_reference(x, wqkv, wo, bo):
    """Reference with the module's natural (unscaled) weights and explicit scale."""
    B, T, C = x.shape
    xb = x.astype(jnp.bfloat16)
    w = wqkv.astype(jnp.bfloat16)
    qkv = jnp.einsum('btc,cf->btf', xb, w, preferred_element_type=jnp.float32)
    q = qkv[..., :C].reshape(B, T, N_HEAD, HEAD_SIZE)
    k = qkv[..., C:2 * C].reshape(B, T, N_HEAD, HEAD_SIZE)
    v = qkv[..., 2 * C:].reshape(B, T, N_HEAD, HEAD_SIZE)
    s = jnp.einsum('bthd,bshd->bhts', q.astype(jnp.bfloat16), k.astype(jnp.bfloat16),
                   preferred_element_type=jnp.float32) * (HEAD_SIZE ** -0.5)
    mask = jnp.tril(jnp.ones((T, T), bool))
    s = jnp.where(mask, s, -jnp.inf)
    p = jax.nn.softmax(s, axis=-1)
    att = jnp.einsum('bhts,bshd->bthd', p.astype(jnp.bfloat16), v.astype(jnp.bfloat16),
                     preferred_element_type=jnp.float32).reshape(B, T, C)
    return jnp.einsum('btc,cf->btf', att.astype(jnp.bfloat16), wo.astype(jnp.bfloat16),
                      preferred_element_type=jnp.float32) + bo


# ------------------------------ parameters ----------------------------------
def init_params(key):
    std = 0.02
    k1, k2, k3 = jax.random.split(key, 3)
    wqkv = jax.random.normal(k1, (N_EMBD, 3 * N_EMBD), jnp.float32) * std   # [Wq | Wk | Wv]
    wo   = jax.random.normal(k2, (N_EMBD, N_EMBD), jnp.float32) * std
    bo   = jax.random.normal(k3, (1, N_EMBD), jnp.float32) * std
    return wqkv, wo, bo


def prepare_params(wqkv, wo):
    """One-time free transform: fold 1/sqrt(head_size) (=0.125, a power of two ->
    exact under bf16 rounding) into the Q columns and cast weights to bf16."""
    scale = HEAD_SIZE ** -0.5
    col_scale = jnp.concatenate([jnp.full((N_EMBD,), scale, jnp.float32),
                                 jnp.ones((2 * N_EMBD,), jnp.float32)])
    return (wqkv * col_scale[None, :]).astype(jnp.bfloat16), wo.astype(jnp.bfloat16)


# --------------------------------- main --------------------------------------
if __name__ == "__main__":
    key = jax.random.PRNGKey(0)
    pkey, xkey = jax.random.split(key)

    wqkv, wo, bo = init_params(pkey)
    wqkv_k, wo_k = prepare_params(wqkv, wo)

    B, T = 2, BLOCK_SIZE                               # (2, 128, 384) activation
    x = jax.random.normal(xkey, (B, T, N_EMBD), jnp.float32)
    x_bf16 = x.astype(jnp.bfloat16)                    # bf16 at the kernel boundary

    out = multi_head_attention(x_bf16, wqkv_k, wo_k, bo)
    out = jax.block_until_ready(out)

    assert out.shape == (B, T, N_EMBD)
    assert out.dtype == jnp.bfloat16
    out_f32 = out.astype(jnp.float32)
    assert bool(jnp.all(jnp.isfinite(out_f32)))

    # correctness vs. a plain-JAX reference (same mixed precision; tolerance covers
    # the approximate EUP reciprocal, deferred normalization and bf16 output).
    ref = mha_reference(x_bf16, wqkv, wo, bo)
    err = float(jnp.max(jnp.abs(out_f32 - ref)))
    assert err < 2e-2, f"max abs error {err}"

    print("KERNEL_OK")
</pallas_src>

<mosaic_0001>
module attributes {stable_mosaic.version = 11 : i64} {
  func.func @_mha_kernel(%arg0: i32, %arg1: memref<1x128x384xbf16, #tpu.memory_space<vmem>>, %arg2: memref<384x1152xbf16, #tpu.memory_space<vmem>>, %arg3: memref<384x384xbf16, #tpu.memory_space<vmem>>, %arg4: memref<1x384xf32, #tpu.memory_space<vmem>>, %arg5: memref<1x128x384xbf16, #tpu.memory_space<vmem>>) attributes {dimension_semantics = [#tpu.dimension_semantics<parallel>], iteration_bounds = array<i64: 2>, scalar_prefetch = 0 : i64, scratch_operands = 0 : i64, tpu.core_type = #tpu.core_type<tc>, window_params = [{transform_indices = @transform_0, window_bounds = array<i64: 1, 128, 384>}, {pipeline_mode = #tpu.pipeline_mode<synchronous>, transform_indices = @transform_1, window_bounds = array<i64: 384, 1152>}, {pipeline_mode = #tpu.pipeline_mode<synchronous>, transform_indices = @transform_2, window_bounds = array<i64: 384, 384>}, {pipeline_mode = #tpu.pipeline_mode<synchronous>, transform_indices = @transform_3, window_bounds = array<i64: 1, 384>}, {transform_indices = @transform_4, window_bounds = array<i64: 1, 128, 384>}]} {
    %c0 = arith.constant 0 : index
    %c0_0 = arith.constant 0 : index
    %c0_1 = arith.constant 0 : index
    %0 = vector.load %arg1[%c0, %c0_0, %c0_1] : memref<1x128x384xbf16, #tpu.memory_space<vmem>>, vector<1x128x384xbf16>
    %1 = vector.shape_cast %0 : vector<1x128x384xbf16> to vector<128x384xbf16>
    %c0_2 = arith.constant 0 : index
    %c0_3 = arith.constant 0 : index
    %2 = vector.load %arg2[%c0_2, %c0_3] : memref<384x1152xbf16, #tpu.memory_space<vmem>>, vector<384x1152xbf16>
    %cst = arith.constant dense<0.000000e+00> : vector<128x1152xf32>
    %3 = tpu.matmul %1, %2, %cst {dimension_numbers = #tpu.dot_dimension_numbers<[1], [0], [0], [1], [0, 0, 1, 1], [], []>} : vector<128x384xbf16>, vector<384x1152xbf16>, vector<128x1152xf32> -> vector<128x1152xf32>
    %4 = arith.truncf %3 : vector<128x1152xf32> to vector<128x1152xbf16>
    %5 = tpu.iota {dimensions = array<i32: 0>} : vector<128x128xi32>
    %6 = tpu.iota {dimensions = array<i32: 1>} : vector<128x128xi32>
    %7 = arith.cmpi sge, %5, %6 : vector<128x128xi32>
    %cst_4 = arith.constant 0.000000e+00 : f32
    %cst_5 = arith.constant -1.000000e+30 : f32
    %8 = vector.broadcast %cst_4 : f32 to vector<128x128xf32>
    %9 = vector.broadcast %cst_5 : f32 to vector<128x128xf32>
    %10 = arith.select %7, %8, %9 : vector<128x128xi1>, vector<128x128xf32>
    %11 = vector.extract_strided_slice %4 {offsets = [0, 0], sizes = [128, 64], strides = [1, 1]} : vector<128x1152xbf16> to vector<128x64xbf16>
    %12 = vector.extract_strided_slice %4 {offsets = [0, 384], sizes = [128, 64], strides = [1, 1]} : vector<128x1152xbf16> to vector<128x64xbf16>
    %13 = vector.extract_strided_slice %4 {offsets = [0, 768], sizes = [128, 64], strides = [1, 1]} : vector<128x1152xbf16> to vector<128x64xbf16>
    "tpu.trace_start"() <{level = 10 : i32, message = "td,sd->ts"}> : () -> ()
    %cst_6 = arith.constant dense<0.000000e+00> : vector<128x128xf32>
    %14 = tpu.matmul %11, %12, %cst_6 {dimension_numbers = #tpu.dot_dimension_numbers<[1], [1], [0], [0], [0, 0, 1, 0], [], []>} : vector<128x64xbf16>, vector<128x64xbf16>, vector<128x128xf32> -> vector<128x128xf32>
    "tpu.trace_stop"() : () -> ()
    %15 = arith.addf %14, %10 : vector<128x128xf32>
    %cst_7 = arith.constant dense<0xFF800000> : vector<128xf32>
    %16 = vector.multi_reduction <maximumf>, %15, %cst_7 [1] : vector<128x128xf32> to vector<128xf32>
    %17 = vector.shape_cast %16 : vector<128xf32> to vector<128x1xf32>
    %18 = vector.broadcast %17 : vector<128x1xf32> to vector<128x128xf32>
    %19 = arith.subf %15, %18 : vector<128x128xf32>
    %20 = math.exp %19 : vector<128x128xf32>
    %cst_8 = arith.constant dense<0.000000e+00> : vector<128xf32>
    %21 = vector.multi_reduction <add>, %20, %cst_8 [1] : vector<128x128xf32> to vector<128xf32>
    %22 = vector.shape_cast %21 : vector<128xf32> to vector<128x1xf32>
    %23 = tpu.reciprocal %22 {approx = true} : vector<128x1xf32> -> vector<128x1xf32>
    %24 = arith.truncf %20 : vector<128x128xf32> to vector<128x128xbf16>
    "tpu.trace_start"() <{level = 10 : i32, message = "ts,sd->td"}> : () -> ()
    %cst_9 = arith.constant dense<0.000000e+00> : vector<128x64xf32>
    %25 = tpu.matmul %24, %13, %cst_9 {dimension_numbers = #tpu.dot_dimension_numbers<[1], [0], [0], [1], [0, 0, 1, 1], [], []>} : vector<128x128xbf16>, vector<128x64xbf16>, vector<128x64xf32> -> vector<128x64xf32>
    "tpu.trace_stop"() : () -> ()
    %26 = vector.broadcast %23 : vector<128x1xf32> to vector<128x64xf32>
    %27 = arith.mulf %25, %26 : vector<128x64xf32>
    %28 = arith.truncf %27 : vector<128x64xf32> to vector<128x64xbf16>
    %29 = vector.extract_strided_slice %4 {offsets = [0, 64], sizes = [128, 64], strides = [1, 1]} : vector<128x1152xbf16> to vector<128x64xbf16>
    %30 = vector.extract_strided_slice %4 {offsets = [0, 448], sizes = [128, 64], strides = [1, 1]} : vector<128x1152xbf16> to vector<128x64xbf16>
    %31 = vector.extract_strided_slice %4 {offsets = [0, 832], sizes = [128, 64], strides = [1, 1]} : vector<128x1152xbf16> to vector<128x64xbf16>
    "tpu.trace_start"() <{level = 10 : i32, message = "td,sd->ts"}> : () -> ()
    %cst_10 = arith.constant dense<0.000000e+00> : vector<128x128xf32>
    %32 = tpu.matmul %29, %30, %cst_10 {dimension_numbers = #tpu.dot_dimension_numbers<[1], [1], [0], [0], [0, 0, 1, 0], [], []>} : vector<128x64xbf16>, vector<128x64xbf16>, vector<128x128xf32> -> vector<128x128xf32>
    "tpu.trace_stop"() : () -> ()
    %33 = arith.addf %32, %10 : vector<128x128xf32>
    %cst_11 = arith.constant dense<0xFF800000> : vector<128xf32>
    %34 = vector.multi_reduction <maximumf>, %33, %cst_11 [1] : vector<128x128xf32> to vector<128xf32>
    %35 = vector.shape_cast %34 : vector<128xf32> to vector<128x1xf32>
    %36 = vector.broadcast %35 : vector<128x1xf32> to vector<128x128xf32>
    %37 = arith.subf %33, %36 : vector<128x128xf32>
    %38 = math.exp %37 : vector<128x128xf32>
    %cst_12 = arith.constant dense<0.000000e+00> : vector<128xf32>
    %39 = vector.multi_reduction <add>, %38, %cst_12 [1] : vector<128x128xf32> to vector<128xf32>
    %40 = vector.shape_cast %39 : vector<128xf32> to vector<128x1xf32>
    %41 = tpu.reciprocal %40 {approx = true} : vector<128x1xf32> -> vector<128x1xf32>
    %42 = arith.truncf %38 : vector<128x128xf32> to vector<128x128xbf16>
    "tpu.trace_start"() <{level = 10 : i32, message = "ts,sd->td"}> : () -> ()
    %cst_13 = arith.constant dense<0.000000e+00> : vector<128x64xf32>
    %43 = tpu.matmul %42, %31, %cst_13 {dimension_numbers = #tpu.dot_dimension_numbers<[1], [0], [0], [1], [0, 0, 1, 1], [], []>} : vector<128x128xbf16>, vector<128x64xbf16>, vector<128x64xf32> -> vector<128x64xf32>
    "tpu.trace_stop"() : () -> ()
    %44 = vector.broadcast %41 : vector<128x1xf32> to vector<128x64xf32>
    %45 = arith.mulf %43, %44 : vector<128x64xf32>
    %46 = arith.truncf %45 : vector<128x64xf32> to vector<128x64xbf16>
    %47 = vector.extract_strided_slice %4 {offsets = [0, 128], sizes = [128, 64], strides = [1, 1]} : vector<128x1152xbf16> to vector<128x64xbf16>
    %48 = vector.extract_strided_slice %4 {offsets = [0, 512], sizes = [128, 64], strides = [1, 1]} : vector<128x1152xbf16> to vector<128x64xbf16>
    %49 = vector.extract_strided_slice %4 {offsets = [0, 896], sizes = [128, 64], strides = [1, 1]} : vector<128x1152xbf16> to vector<128x64xbf16>
    "tpu.trace_start"() <{level = 10 : i32, message = "td,sd->ts"}> : () -> ()
    %cst_14 = arith.constant dense<0.000000e+00> : vector<128x128xf32>
    %50 = tpu.matmul %47, %48, %cst_14 {dimension_numbers = #tpu.dot_dimension_numbers<[1], [1], [0], [0], [0, 0, 1, 0], [], []>} : vector<128x64xbf16>, vector<128x64xbf16>, vector<128x128xf32> -> vector<128x128xf32>
    "tpu.trace_stop"() : () -> ()
    %51 = arith.addf %50, %10 : vector<128x128xf32>
    %cst_15 = arith.constant dense<0xFF800000> : vector<128xf32>
    %52 = vector.multi_reduction <maximumf>, %51, %cst_15 [1] : vector<128x128xf32> to vector<128xf32>
    %53 = vector.shape_cast %52 : vector<128xf32> to vector<128x1xf32>
    %54 = vector.broadcast %53 : vector<128x1xf32> to vector<128x128xf32>
    %55 = arith.subf %51, %54 : vector<128x128xf32>
    %56 = math.exp %55 : vector<128x128xf32>
    %cst_16 = arith.constant dense<0.000000e+00> : vector<128xf32>
    %57 = vector.multi_reduction <add>, %56, %cst_16 [1] : vector<128x128xf32> to vector<128xf32>
    %58 = vector.shape_cast %57 : vector<128xf32> to vector<128x1xf32>
    %59 = tpu.reciprocal %58 {approx = true} : vector<128x1xf32> -> vector<128x1xf32>
    %60 = arith.truncf %56 : vector<128x128xf32> to vector<128x128xbf16>
    "tpu.trace_start"() <{level = 10 : i32, message = "ts,sd->td"}> : () -> ()
    %cst_17 = arith.constant dense<0.000000e+00> : vector<128x64xf32>
    %61 = tpu.matmul %60, %49, %cst_17 {dimension_numbers = #tpu.dot_dimension_numbers<[1], [0], [0], [1], [0, 0, 1, 1], [], []>} : vector<128x128xbf16>, vector<128x64xbf16>, vector<128x64xf32> -> vector<128x64xf32>
    "tpu.trace_stop"() : () -> ()
    %62 = vector.broadcast %59 : vector<128x1xf32> to vector<128x64xf32>
    %63 = arith.mulf %61, %62 : vector<128x64xf32>
    %64 = arith.truncf %63 : vector<128x64xf32> to vector<128x64xbf16>
    %65 = vector.extract_strided_slice %4 {offsets = [0, 192], sizes = [128, 64], strides = [1, 1]} : vector<128x1152xbf16> to vector<128x64xbf16>
    %66 = vector.extract_strided_slice %4 {offsets = [0, 576], sizes = [128, 64], strides = [1, 1]} : vector<128x1152xbf16> to vector<128x64xbf16>
    %67 = vector.extract_strided_slice %4 {offsets = [0, 960], sizes = [128, 64], strides = [1, 1]} : vector<128x1152xbf16> to vector<128x64xbf16>
    "tpu.trace_start"() <{level = 10 : i32, message = "td,sd->ts"}> : () -> ()
    %cst_18 = arith.constant dense<0.000000e+00> : vector<128x128xf32>
    %68 = tpu.matmul %65, %66, %cst_18 {dimension_numbers = #tpu.dot_dimension_numbers<[1], [1], [0], [0], [0, 0, 1, 0], [], []>} : vector<128x64xbf16>, vector<128x64xbf16>, vector<128x128xf32> -> vector<128x128xf32>
    "tpu.trace_stop"() : () -> ()
    %69 = arith.addf %68, %10 : vector<128x128xf32>
    %cst_19 = arith.constant dense<0xFF800000> : vector<128xf32>
    %70 = vector.multi_reduction <maximumf>, %69, %cst_19 [1] : vector<128x128xf32> to vector<128xf32>
    %71 = vector.shape_cast %70 : vector<128xf32> to vector<128x1xf32>
    %72 = vector.broadcast %71 : vector<128x1xf32> to vector<128x128xf32>
    %73 = arith.subf %69, %72 : vector<128x128xf32>
    %74 = math.exp %73 : vector<128x128xf32>
    %cst_20 = arith.constant dense<0.000000e+00> : vector<128xf32>
    %75 = vector.multi_reduction <add>, %74, %cst_20 [1] : vector<128x128xf32> to vector<128xf32>
    %76 = vector.shape_cast %75 : vector<128xf32> to vector<128x1xf32>
    %77 = tpu.reciprocal %76 {approx = true} : vector<128x1xf32> -> vector<128x1xf32>
    %78 = arith.truncf %74 : vector<128x128xf32> to vector<128x128xbf16>
    "tpu.trace_start"() <{level = 10 : i32, message = "ts,sd->td"}> : () -> ()
    %cst_21 = arith.constant dense<0.000000e+00> : vector<128x64xf32>
    %79 = tpu.matmul %78, %67, %cst_21 {dimension_numbers = #tpu.dot_dimension_numbers<[1], [0], [0], [1], [0, 0, 1, 1], [], []>} : vector<128x128xbf16>, vector<128x64xbf16>, vector<128x64xf32> -> vector<128x64xf32>
    "tpu.trace_stop"() : () -> ()
    %80 = vector.broadcast %77 : vector<128x1xf32> to vector<128x64xf32>
    %81 = arith.mulf %79, %80 : vector<128x64xf32>
    %82 = arith.truncf %81 : vector<128x64xf32> to vector<128x64xbf16>
    %83 = vector.extract_strided_slice %4 {offsets = [0, 256], sizes = [128, 64], strides = [1, 1]} : vector<128x1152xbf16> to vector<128x64xbf16>
    %84 = vector.extract_strided_slice %4 {offsets = [0, 640], sizes = [128, 64], strides = [1, 1]} : vector<128x1152xbf16> to vector<128x64xbf16>
    %85 = vector.extract_strided_slice %4 {offsets = [0, 1024], sizes = [128, 64], strides = [1, 1]} : vector<128x1152xbf16> to vector<128x64xbf16>
    "tpu.trace_start"() <{level = 10 : i32, message = "td,sd->ts"}> : () -> ()
    %cst_22 = arith.constant dense<0.000000e+00> : vector<128x128xf32>
    %86 = tpu.matmul %83, %84, %cst_22 {dimension_numbers = #tpu.dot_dimension_numbers<[1], [1], [0], [0], [0, 0, 1, 0], [], []>} : vector<128x64xbf16>, vector<128x64xbf16>, vector<128x128xf32> -> vector<128x128xf32>
    "tpu.trace_stop"() : () -> ()
    %87 = arith.addf %86, %10 : vector<128x128xf32>
    %cst_23 = arith.constant dense<0xFF800000> : vector<128xf32>
    %88 = vector.multi_reduction <maximumf>, %87, %cst_23 [1] : vector<128x128xf32> to vector<128xf32>
    %89 = vector.shape_cast %88 : vector<128xf32> to vector<128x1xf32>
    %90 = vector.broadcast %89 : vector<128x1xf32> to vector<128x128xf32>
    %91 = arith.subf %87, %90 : vector<128x128xf32>
    %92 = math.exp %91 : vector<128x128xf32>
    %cst_24 = arith.constant dense<0.000000e+00> : vector<128xf32>
    %93 = vector.multi_reduction <add>, %92, %cst_24 [1] : vector<128x128xf32> to vector<128xf32>
    %94 = vector.shape_cast %93 : vector<128xf32> to vector<128x1xf32>
    %95 = tpu.reciprocal %94 {approx = true} : vector<128x1xf32> -> vector<128x1xf32>
    %96 = arith.truncf %92 : vector<128x128xf32> to vector<128x128xbf16>
    "tpu.trace_start"() <{level = 10 : i32, message = "ts,sd->td"}> : () -> ()
    %cst_25 = arith.constant dense<0.000000e+00> : vector<128x64xf32>
    %97 = tpu.matmul %96, %85, %cst_25 {dimension_numbers = #tpu.dot_dimension_numbers<[1], [0], [0], [1], [0, 0, 1, 1], [], []>} : vector<128x128xbf16>, vector<128x64xbf16>, vector<128x64xf32> -> vector<128x64xf32>
    "tpu.trace_stop"() : () -> ()
    %98 = vector.broadcast %95 : vector<128x1xf32> to vector<128x64xf32>
    %99 = arith.mulf %97, %98 : vector<128x64xf32>
    %100 = arith.truncf %99 : vector<128x64xf32> to vector<128x64xbf16>
    %101 = vector.extract_strided_slice %4 {offsets = [0, 320], sizes = [128, 64], strides = [1, 1]} : vector<128x1152xbf16> to vector<128x64xbf16>
    %102 = vector.extract_strided_slice %4 {offsets = [0, 704], sizes = [128, 64], strides = [1, 1]} : vector<128x1152xbf16> to vector<128x64xbf16>
    %103 = vector.extract_strided_slice %4 {offsets = [0, 1088], sizes = [128, 64], strides = [1, 1]} : vector<128x1152xbf16> to vector<128x64xbf16>
    "tpu.trace_start"() <{level = 10 : i32, message = "td,sd->ts"}> : () -> ()
    %cst_26 = arith.constant dense<0.000000e+00> : vector<128x128xf32>
    %104 = tpu.matmul %101, %102, %cst_26 {dimension_numbers = #tpu.dot_dimension_numbers<[1], [1], [0], [0], [0, 0, 1, 0], [], []>} : vector<128x64xbf16>, vector<128x64xbf16>, vector<128x128xf32> -> vector<128x128xf32>
    "tpu.trace_stop"() : () -> ()
    %105 = arith.addf %104, %10 : vector<128x128xf32>
    %cst_27 = arith.constant dense<0xFF800000> : vector<128xf32>
    %106 = vector.multi_reduction <maximumf>, %105, %cst_27 [1] : vector<128x128xf32> to vector<128xf32>
    %107 = vector.shape_cast %106 : vector<128xf32> to vector<128x1xf32>
    %108 = vector.broadcast %107 : vector<128x1xf32> to vector<128x128xf32>
    %109 = arith.subf %105, %108 : vector<128x128xf32>
    %110 = math.exp %109 : vector<128x128xf32>
    %cst_28 = arith.constant dense<0.000000e+00> : vector<128xf32>
    %111 = vector.multi_reduction <add>, %110, %cst_28 [1] : vector<128x128xf32> to vector<128xf32>
    %112 = vector.shape_cast %111 : vector<128xf32> to vector<128x1xf32>
    %113 = tpu.reciprocal %112 {approx = true} : vector<128x1xf32> -> vector<128x1xf32>
    %114 = arith.truncf %110 : vector<128x128xf32> to vector<128x128xbf16>
    "tpu.trace_start"() <{level = 10 : i32, message = "ts,sd->td"}> : () -> ()
    %cst_29 = arith.constant dense<0.000000e+00> : vector<128x64xf32>
    %115 = tpu.matmul %114, %103, %cst_29 {dimension_numbers = #tpu.dot_dimension_numbers<[1], [0], [0], [1], [0, 0, 1, 1], [], []>} : vector<128x128xbf16>, vector<128x64xbf16>, vector<128x64xf32> -> vector<128x64xf32>
    "tpu.trace_stop"() : () -> ()
    %116 = vector.broadcast %113 : vector<128x1xf32> to vector<128x64xf32>
    %117 = arith.mulf %115, %116 : vector<128x64xf32>
    %118 = arith.truncf %117 : vector<128x64xf32> to vector<128x64xbf16>
    %119 = tpu.concatenate %28, %46, %64, %82, %100, %118 in 1 : vector<128x64xbf16>, vector<128x64xbf16>, vector<128x64xbf16>, vector<128x64xbf16>, vector<128x64xbf16>, vector<128x64xbf16> -> vector<128x384xbf16>
    %c0_30 = arith.constant 0 : index
    %c0_31 = arith.constant 0 : index
    %120 = vector.load %arg3[%c0_30, %c0_31] : memref<384x384xbf16, #tpu.memory_space<vmem>>, vector<384x384xbf16>
    %cst_32 = arith.constant dense<0.000000e+00> : vector<128x384xf32>
    %121 = tpu.matmul %119, %120, %cst_32 {dimension_numbers = #tpu.dot_dimension_numbers<[1], [0], [0], [1], [0, 0, 1, 1], [], []>} : vector<128x384xbf16>, vector<384x384xbf16>, vector<128x384xf32> -> vector<128x384xf32>
    %c0_33 = arith.constant 0 : index
    %c0_34 = arith.constant 0 : index
    %122 = vector.load %arg4[%c0_33, %c0_34] : memref<1x384xf32, #tpu.memory_space<vmem>>, vector<1x384xf32>
    %123 = vector.broadcast %122 : vector<1x384xf32> to vector<128x384xf32>
    %124 = arith.addf %121, %123 : vector<128x384xf32>
    %125 = arith.truncf %124 : vector<128x384xf32> to vector<128x384xbf16>
    %c0_35 = arith.constant 0 : index
    %c0_36 = arith.constant 0 : index
    %c0_37 = arith.constant 0 : index
    %126 = vector.load %arg5[%c0_35, %c0_36, %c0_37] : memref<1x128x384xbf16, #tpu.memory_space<vmem>>, vector<1x128x384xbf16>
    %127 = vector.shape_cast %126 : vector<1x128x384xbf16> to vector<128x384xbf16>
    %128 = vector.shape_cast %125 : vector<128x384xbf16> to vector<1x128x384xbf16>
    tpu.vector_store %arg5[%c0_35, %c0_36, %c0_37], %128 {strides = array<i32>} : memref<1x128x384xbf16, #tpu.memory_space<vmem>>, vector<1x128x384xbf16>,
    return
  }
  func.func @transform_0(%arg0: i32) -> (i32, i32, i32) {
    %c0_i32 = arith.constant 0 : i32
    %c0_i32_0 = arith.constant 0 : i32
    %c0_i32_1 = arith.constant 0 : i32
    return %arg0, %c0_i32, %c0_i32_0 : i32, i32, i32
  }
  func.func @transform_1(%arg0: i32) -> (i32, i32) {
    %c0_i32 = arith.constant 0 : i32
    %c0_i32_0 = arith.constant 0 : i32
    %c0_i32_1 = arith.constant 0 : i32
    return %c0_i32, %c0_i32_0 : i32, i32
  }
  func.func @transform_2(%arg0: i32) -> (i32, i32) {
    %c0_i32 = arith.constant 0 : i32
    %c0_i32_0 = arith.constant 0 : i32
    %c0_i32_1 = arith.constant 0 : i32
    return %c0_i32, %c0_i32_0 : i32, i32
  }
  func.func @transform_3(%arg0: i32) -> (i32, i32) {
    %c0_i32 = arith.constant 0 : i32
    %c0_i32_0 = arith.constant 0 : i32
    %c0_i32_1 = arith.constant 0 : i32
    return %c0_i32, %c0_i32_0 : i32, i32
  }
  func.func @transform_4(%arg0: i32) -> (i32, i32, i32) {
    %c0_i32 = arith.constant 0 : i32
    %c0_i32_0 = arith.constant 0 : i32
    %c0_i32_1 = arith.constant 0 : i32
    return %arg0, %c0_i32, %c0_i32_0 : i32, i32, i32
  }
}

</mosaic_0001>

<llo_original>
// kernel: tpu_custom_call.1
$region0: #{tpu_custom_call.1}
  #allocation0 [shape = 'u32[]', space=smem, size = 0x4, offset = 0x4, fixed_abs, tag = 'smem constant byte address 0x4 - core index']
  #allocation1 [shape = 'u32[144,128]{1,0:T(1,128)}', space=vmem, size = 0x12000, scoped, tag = 'internal scratch']
  %s0 = inlined_call_operand.hbm [shape: bf16[2,128,384], index: 0, kind: input, shape index: {}]
  %s1 = inlined_call_operand.hbm [shape: bf16[384,1152], index: 1, kind: input, shape index: {}]
  %s2 = inlined_call_operand.hbm [shape: bf16[384,384], index: 2, kind: input, shape index: {}]
  %s3 = inlined_call_operand.vmem [shape: f32[1,384], index: 3, kind: input, shape index: {}]
  %s4 = inlined_call_operand.hbm [shape: bf16[2,128,384], index: 4, kind: output, shape index: {}]
  %s5 = sld [smem:[#allocation0]]
  $region61: #{tpu_custom_call.1} parent=0
    _
  %s7 = ssub.s32 1, %s5
  %s8 = scalar_select 0, %s7, %s5
  $region1: #{tpu_custom_call.1} parent=0
    #allocation2 [shape = 'u8[196608]{0}', space=vmem, size = 0x30000, scoped, tag = 'input window, operand 0']
    #allocation3 [shape = 's32[2]{0}', space=sflag, size = 0x8, scoped, tag = 'scoped memory for tpu_custom_call.1']
    #allocation4 [shape = 's32[2]{0}', space=sflag, size = 0x8, scoped, tag = 'scoped memory for tpu_custom_call.1']
    #allocation5 [shape = 'u8[884736]{0}', space=vmem, size = 0xd8000, scoped, tag = 'input window, operand 1, single buffered']
    #allocation6 [shape = 's32[1]{0}', space=sflag, size = 0x4, scoped, tag = 'scoped memory for tpu_custom_call.1']
    #allocation7 [shape = 'u8[294912]{0}', space=vmem, size = 0x48000, scoped, tag = 'input window, operand 2, single buffered']
    #allocation8 [shape = 'u8[196608]{0}', space=vmem, size = 0x30000, scoped, tag = 'output window, operand 0']
    %9 = vsyncpa [#allocation3], 0
    %s10 = scalar_lea.sflag [#allocation3], 1
    %11 = vsyncpa %s10, 0
    %12 = vsyncpa [#allocation6], 0
    %13 = vsyncpa [#allocation4], 0
    %s14 = scalar_lea.sflag [#allocation4], 1
    %15 = vsyncpa %s14, 0
    loop: start=0, step=1, limit=4
    $region2: #{tpu_custom_call.1} parent=1 // loop_pre_header
      _
    $region3: #{tpu_custom_call.1} parent=1 // loop_header
      %s17 = sphi 0, %s21
      %p18 = scmp.ge.s32.totalorder %s17, 4
      %s27 = sphi 0, %s29
      %s30 = sphi 0, %s27
      %s31 = sphi 0, %s30
      %s47 = sphi 0, %s31
      %s51 = sphi 0, %s51
      %s53 = sphi 0, %s51
      %s54 = sphi 0, %s53
      %s68 = sphi 0, %s54
      %s72 = sphi 0, %s72
      %s74 = sphi 0, %s72
      %s75 = sphi 0, %s74
      %s89 = sphi 0, %s75
      %s93 = sphi 0, %s93
      %s95 = sphi 0, %s93
      %s96 = sphi 0, %s95
      %s110 = sphi 0, %s96
      %s116 = sphi 0, %s118
      %s119 = sphi 0, %s116
      %s120 = sphi 0, %s119
      %s136 = sphi 0, %s120
    $region4: #{tpu_custom_call.1} parent=1 // loop_header_branch
      %20 = sbr.rel (%p18) target = $region8
    $region5: #{tpu_custom_call.1} parent=1 // loop_body
      %s22 = ssub.s32 %s17, 1
      %s23 = ssub.s32 %s17, 2
      %s24 = sadd.s32 %s17, 1
      %s25 = ssub.s32 %s17, %s24
      %p26 = scmp.eq.s32.totalorder %s25, 0
      %s28 = sadd.s32 %s27, 1
      %s29 = scalar_select %p26, %s27, %s28
      %p32 = pneg %p26
      %p33 = scmp.eq.s32.totalorder %s17, 1
      %p34 = por %p32, %p33
      %p35 = scmp.ne.s32.totalorder %s27, %s30
      %p36 = scmp.eq.s32.totalorder %s17, 0
      %p37 = por %p35, %p36
      %p38 = scmp.ne.s32.totalorder %s27, %s30
      %p39 = scmp.eq.s32.totalorder %s22, 1
      %p40 = por %p38, %p39
      %p41 = scmp.ne.s32.totalorder %s30, %s31
      %p42 = scmp.eq.s32.totalorder %s22, 0
      %p43 = por %p41, %p42
      %p44 = scmp.ne.s32.totalorder %s30, %s31
      %p45 = scmp.eq.s32.totalorder %s23, 1
      %p46 = por %p44, %p45
      %p48 = scmp.ne.s32.totalorder %s31, %s47
      %p49 = scmp.eq.s32.totalorder %s23, 0
      %p50 = por %p48, %p49
      %s52 = sadd.s32 %s51, 1
      %p55 = scmp.eq.s32.totalorder %s17, 1
      %p56 = scmp.ne.s32.totalorder %s51, %s53
      %p57 = scmp.eq.s32.totalorder %s17, 0
      %p58 = por %p56, %p57
      %p59 = scmp.ne.s32.totalorder %s51, %s53
      %p60 = scmp.eq.s32.totalorder %s22, 1
      %p61 = por %p59, %p60
      %p62 = scmp.ne.s32.totalorder %s53, %s54
      %p63 = scmp.eq.s32.totalorder %s22, 0
      %p64 = por %p62, %p63
      %p65 = scmp.ne.s32.totalorder %s53, %s54
      %p66 = scmp.eq.s32.totalorder %s23, 1
      %p67 = por %p65, %p66
      %p69 = scmp.ne.s32.totalorder %s54, %s68
      %p70 = scmp.eq.s32.totalorder %s23, 0
      %p71 = por %p69, %p70
      %s73 = sadd.s32 %s72, 1
      %p76 = scmp.eq.s32.totalorder %s17, 1
      %p77 = scmp.ne.s32.totalorder %s72, %s74
      %p78 = scmp.eq.s32.totalorder %s17, 0
      %p79 = por %p77, %p78
      %p80 = scmp.ne.s32.totalorder %s72, %s74
      %p81 = scmp.eq.s32.totalorder %s22, 1
      %p82 = por %p80, %p81
      %p83 = scmp.ne.s32.totalorder %s74, %s75
      %p84 = scmp.eq.s32.totalorder %s22, 0
      %p85 = por %p83, %p84
      %p86 = scmp.ne.s32.totalorder %s74, %s75
      %p87 = scmp.eq.s32.totalorder %s23, 1
      %p88 = por %p86, %p87
      %p90 = scmp.ne.s32.totalorder %s75, %s89
      %p91 = scmp.eq.s32.totalorder %s23, 0
      %p92 = por %p90, %p91
      %s94 = sadd.s32 %s93, 1
      %p97 = scmp.eq.s32.totalorder %s17, 1
      %p98 = scmp.ne.s32.totalorder %s93, %s95
      %p99 = scmp.eq.s32.totalorder %s17, 0
      %p100 = por %p98, %p99
      %p101 = scmp.ne.s32.totalorder %s93, %s95
      %p102 = scmp.eq.s32.totalorder %s22, 1
      %p103 = por %p101, %p102
      %p104 = scmp.ne.s32.totalorder %s95, %s96
      %p105 = scmp.eq.s32.totalorder %s22, 0
      %p106 = por %p104, %p105
      %p107 = scmp.ne.s32.totalorder %s95, %s96
      %p108 = scmp.eq.s32.totalorder %s23, 1
      %p109 = por %p107, %p108
      %p111 = scmp.ne.s32.totalorder %s96, %s110
      %p112 = scmp.eq.s32.totalorder %s23, 0
      %p113 = por %p111, %p112
      %s114 = ssub.s32 %s17, %s24
      %p115 = scmp.eq.s32.totalorder %s114, 0
      %s117 = sadd.s32 %s116, 1
      %s118 = scalar_select %p115, %s116, %s117
      %p121 = pneg %p115
      %p122 = scmp.eq.s32.totalorder %s17, 1
      %p123 = por %p121, %p122
      %p124 = scmp.ne.s32.totalorder %s116, %s119
      %p125 = scmp.eq.s32.totalorder %s17, 0
      %p126 = por %p124, %p125
      %p127 = scmp.ne.s32.totalorder %s116, %s119
      %p128 = scmp.eq.s32.totalorder %s22, 1
      %p129 = por %p127, %p128
      %p130 = scmp.ne.s32.totalorder %s119, %s120
      %p131 = scmp.eq.s32.totalorder %s22, 0
      %p132 = por %p130, %p131
      %p133 = scmp.ne.s32.totalorder %s119, %s120
      %p134 = scmp.eq.s32.totalorder %s23, 1
      %p135 = por %p133, %p134
      %p137 = scmp.ne.s32.totalorder %s120, %s136
      %p138 = scmp.eq.s32.totalorder %s23, 0
      %p139 = por %p137, %p138
      %p140 = scmp.le.s32.totalorder 1, %s17
      %p141 = scmp.lt.s32.totalorder %s17, 3
      %p142 = pnand %p140, %p141
      %p143 = pneg %p142
      // Predicated region
      $region9: #{tpu_custom_call.1} parent=5 // pred_check
        _
      $region10: #{tpu_custom_call.1} parent=5 // pred_check_branch
        %145 = sbr.rel (%p142) target = $region12
      $region11: #{tpu_custom_call.1} parent=5 // pred_region
        %s146 = ssub.s32 %s17, 1
        // Predicated region
        $region13: #{tpu_custom_call.1} parent=11 // pred_check
          %p147 = pneg %p64
        $region14: #{tpu_custom_call.1} parent=11 // pred_check_branch
          %149 = sbr.rel (%p147) target = $region16
        $region15: #{tpu_custom_call.1} parent=11 // pred_region
          %s151 = ssub.s32 27648, 27648
          %152 = vsyncadd [#allocation6], %s151
          %s153 = sshll.u32 [#allocation5], 4
          %s154 = int_to_ptr.vmem [resolvable:$true] %s153
          %159 = dma.hbm_to_vmem [thread:$0]  %s1, 27648, %s154, [#allocation6], 576, 576, 36
        $region16: #{tpu_custom_call.1} parent=11 // pred_fallthru
          _
        // Predicated region
        $region17: #{tpu_custom_call.1} parent=11 // pred_check
          %p160 = pneg %p85
        $region18: #{tpu_custom_call.1} parent=11 // pred_check_branch
          %162 = sbr.rel (%p160) target = $region20
        $region19: #{tpu_custom_call.1} parent=11 // pred_region
          %s164 = ssub.s32 9216, 9216
          %165 = vsyncadd [#allocation6], %s164
          %s166 = sshll.u32 [#allocation7], 4
          %s167 = int_to_ptr.vmem [resolvable:$true] %s166
          %172 = dma.hbm_to_vmem [thread:$0]  %s2, 9216, %s167, [#allocation6], 192, 192, 12
        $region20: #{tpu_custom_call.1} parent=11 // pred_fallthru
          _
        // Predicated region
        $region21: #{tpu_custom_call.1} parent=11 // pred_check
          %p173 = pneg %p106
        $region22: #{tpu_custom_call.1} parent=11 // pred_check_branch
          %175 = sbr.rel (%p173) target = $region24
        $region23: #{tpu_custom_call.1} parent=11 // pred_region
          _
        $region24: #{tpu_custom_call.1} parent=11 // pred_fallthru
          _
      $region12: #{tpu_custom_call.1} parent=5 // pred_fallthru
        _
      %p176 = scmp.lt.s32.totalorder %s17, 2
      // Predicated region
      $region25: #{tpu_custom_call.1} parent=5 // pred_check
        %p177 = pneg %p176
      $region26: #{tpu_custom_call.1} parent=5 // pred_check_branch
        %179 = sbr.rel (%p177) target = $region28
      $region27: #{tpu_custom_call.1} parent=5 // pred_region
        // Predicated region
        $region29: #{tpu_custom_call.1} parent=27 // pred_check
          %p180 = pneg %p37
        $region30: #{tpu_custom_call.1} parent=27 // pred_check_branch
          %182 = sbr.rel (%p180) target = $region32
        $region31: #{tpu_custom_call.1} parent=27 // pred_region
          %s183 = sand.u32 %s27, 1
          %s184 = scalar_lea.sflag [#allocation3], %s183
          %s185 = sand.u32 %s27, 1
          %s186 = smul.addr %s185, 192
          %s187 = scalar_lea.vmem [#allocation2], %s186
          %s189 = ssub.s32 3072, 3072
          %190 = vsyncadd %s184, %s189
          %s191 = smul.addr %s17, 48
          %s192 = smul.addr %s191, 64
          %s193 = scalar_lea.hbm %s0, %s192
          %s194 = sshll.u32 %s187, 4
          %s195 = int_to_ptr.vmem [resolvable:$true] %s194
          %200 = dma.hbm_to_vmem [thread:$0]  %s193, 3072, %s195, %s184, 192, 192, 12
        $region32: #{tpu_custom_call.1} parent=27 // pred_fallthru
          _
      $region28: #{tpu_custom_call.1} parent=5 // pred_fallthru
        _
      %p201 = scmp.le.s32.totalorder 1, %s17
      %p202 = scmp.lt.s32.totalorder %s17, 3
      %p203 = pnand %p201, %p202
      %p204 = pneg %p203
      // Predicated region
      $region33: #{tpu_custom_call.1} parent=5 // pred_check
        _
      $region34: #{tpu_custom_call.1} parent=5 // pred_check_branch
        %206 = sbr.rel (%p203) target = $region36
      $region35: #{tpu_custom_call.1} parent=5 // pred_region
        %s207 = ssub.s32 %s17, 1
        %s208 = sand.u32 %s30, 1
        %s209 = scalar_lea.sflag [#allocation3], %s208
        %s210 = sand.u32 %s30, 1
        %s211 = smul.addr %s210, 192
        %s212 = scalar_lea.vmem [#allocation2], %s211
        // Predicated region
        $region37: #{tpu_custom_call.1} parent=35 // pred_check
          %p213 = pneg %p43
        $region38: #{tpu_custom_call.1} parent=35 // pred_check_branch
          %215 = sbr.rel (%p213) target = $region40
        $region39: #{tpu_custom_call.1} parent=35 // pred_region
          %216 = dma.done %s209, 3072
        $region40: #{tpu_custom_call.1} parent=35 // pred_fallthru
          _
        // Predicated region
        $region41: #{tpu_custom_call.1} parent=35 // pred_check
          %p217 = pneg %p64
        $region42: #{tpu_custom_call.1} parent=35 // pred_check_branch
          %219 = sbr.rel (%p217) target = $region44
        $region43: #{tpu_custom_call.1} parent=35 // pred_region
          %220 = dma.done [#allocation6], 27648
        $region44: #{tpu_custom_call.1} parent=35 // pred_fallthru
          _
        // Predicated region
        $region45: #{tpu_custom_call.1} parent=35 // pred_check
          %p221 = pneg %p85
        $region46: #{tpu_custom_call.1} parent=35 // pred_check_branch
          %223 = sbr.rel (%p221) target = $region48
        $region47: #{tpu_custom_call.1} parent=35 // pred_region
          %224 = dma.done [#allocation6], 9216
        $region48: #{tpu_custom_call.1} parent=35 // pred_fallthru
          _
        %s225 = sand.u32 %s30, 1
        %s226 = scalar_lea.sflag [#allocation3], %s225
        %s227 = sand.u32 %s30, 1
        %s228 = smul.addr %s227, 192
        %s229 = scalar_lea.vmem [#allocation2], %s228
        %p230 = pneg %p43
        %p231 = pneg %p40
        %p232 = pneg %p64
        %p233 = pneg %p61
        %p234 = pneg %p85
        %p235 = pneg %p82
        %p236 = pneg %p106
        %p237 = pneg %p103
        %p238 = pneg %p132
        %p239 = pneg %p129
        %s240 = sand.u32 %s119, 1
        %s241 = scalar_lea.sflag [#allocation4], %s240
        %s242 = sand.u32 %s119, 1
        %s243 = smul.addr %s242, 192
        %s244 = scalar_lea.vmem [#allocation8], %s243
        %v246 = vld [vmem:[%s212] sm:$0xff]
        %v247 = vld [vmem:[%s212 + $0x8] sm:$0xf]
        %v248 = vld [vmem:[%s212 + $0xc] sm:$0xff]
        %v249 = vld [vmem:[%s212 + $0x14] sm:$0xf]
        %v250 = vld [vmem:[%s212 + $0x18] sm:$0xff]
        %v251 = vld [vmem:[%s212 + $0x20] sm:$0xf]
        %v252 = vld [vmem:[%s212 + $0x24] sm:$0xff]
        %v253 = vld [vmem:[%s212 + $0x2c] sm:$0xf]
        %v254 = vld [vmem:[%s212 + $0x30] sm:$0xff]
        %v255 = vld [vmem:[%s212 + $0x38] sm:$0xf]
        %v256 = vld [vmem:[%s212 + $0x3c] sm:$0xff]
        %v257 = vld [vmem:[%s212 + $0x44] sm:$0xf]
        %v258 = vld [vmem:[%s212 + $0x48] sm:$0xff]
        %v259 = vld [vmem:[%s212 + $0x50] sm:$0xf]
        %v260 = vld [vmem:[%s212 + $0x54] sm:$0xff]
        %v261 = vld [vmem:[%s212 + $0x5c] sm:$0xf]
        %v262 = vld [vmem:[%s212 + $0x60] sm:$0xff]
        %v263 = vld [vmem:[%s212 + $0x68] sm:$0xf]
        %v264 = vld [vmem:[%s212 + $0x6c] sm:$0xff]
        %v265 = vld [vmem:[%s212 + $0x74] sm:$0xf]
        %v266 = vld [vmem:[%s212 + $0x78] sm:$0xff]
        %v267 = vld [vmem:[%s212 + $0x80] sm:$0xf]
        %v268 = vld [vmem:[%s212 + $0x84] sm:$0xff]
        %v269 = vld [vmem:[%s212 + $0x8c] sm:$0xf]
        %v270 = vld [vmem:[%s212 + $0x90] sm:$0xff]
        %v271 = vld [vmem:[%s212 + $0x98] sm:$0xf]
        %v272 = vld [vmem:[%s212 + $0x9c] sm:$0xff]
        %v273 = vld [vmem:[%s212 + $0xa4] sm:$0xf]
        %v274 = vld [vmem:[%s212 + $0xa8] sm:$0xff]
        %v275 = vld [vmem:[%s212 + $0xb0] sm:$0xf]
        %v276 = vld [vmem:[%s212 + $0xb4] sm:$0xff]
        %v277 = vld [vmem:[%s212 + $0xbc] sm:$0xf]
        %v278 = vld [vmem:[#allocation5] sm:$0xff]
        %v279 = vld [vmem:[#allocation5 + $0x8] sm:$0xff]
        %v280 = vld [vmem:[#allocation5 + $0x10] sm:$0xff]
        %v281 = vld [vmem:[#allocation5 + $0x18] sm:$0xff]
        %v282 = vld [vmem:[#allocation5 + $0x20] sm:$0xf]
        %v283 = vld [vmem:[#allocation5 + $0x24] sm:$0xff]
        %v284 = vld [vmem:[#allocation5 + $0x2c] sm:$0xff]
        %v285 = vld [vmem:[#allocation5 + $0x34] sm:$0xff]
        %v286 = vld [vmem:[#allocation5 + $0x3c] sm:$0xff]
        %v287 = vld [vmem:[#allocation5 + $0x44] sm:$0xf]
        %v288 = vld [vmem:[#allocation5 + $0x48] sm:$0xff]
        %v289 = vld [vmem:[#allocation5 + $0x50] sm:$0xff]
        %v290 = vld [vmem:[#allocation5 + $0x58] sm:$0xff]
        %v291 = vld [vmem:[#allocation5 + $0x60] sm:$0xff]
        %v292 = vld [vmem:[#allocation5 + $0x68] sm:$0xf]
        %v293 = vld [vmem:[#allocation5 + $0x6c] sm:$0xff]
        %v294 = vld [vmem:[#allocation5 + $0x74] sm:$0xff]
        %v295 = vld [vmem:[#allocation5 + $0x7c] sm:$0xff]
        %v296 = vld [vmem:[#allocation5 + $0x84] sm:$0xff]
        %v297 = vld [vmem:[#allocation5 + $0x8c] sm:$0xf]
        %v298 = vld [vmem:[#allocation5 + $0x90] sm:$0xff]
        %v299 = vld [vmem:[#allocation5 + $0x98] sm:$0xff]
        %v300 = vld [vmem:[#allocation5 + $0xa0] sm:$0xff]
        %v301 = vld [vmem:[#allocation5 + $0xa8] sm:$0xff]
        %v302 = vld [vmem:[#allocation5 + $0xb0] sm:$0xf]
        %v303 = vld [vmem:[#allocation5 + $0xb4] sm:$0xff]
        %v304 = vld [vmem:[#allocation5 + $0xbc] sm:$0xff]
        %v305 = vld [vmem:[#allocation5 + $0xc4] sm:$0xff]
        %v306 = vld [vmem:[#allocation5 + $0xcc] sm:$0xff]
        %v307 = vld [vmem:[#allocation5 + $0xd4] sm:$0xf]
        %v308 = vld [vmem:[#allocation5 + $0xd8] sm:$0xff]
        %v309 = vld [vmem:[#allocation5 + $0xe0] sm:$0xff]
        %v310 = vld [vmem:[#allocation5 + $0xe8] sm:$0xff]
        %v311 = vld [vmem:[#allocation5 + $0xf0] sm:$0xff]
        %v312 = vld [vmem:[#allocation5 + $0xf8] sm:$0xf]
        %v313 = vld [vmem:[#allocation5 + $0xfc] sm:$0xff]
        %v314 = vld [vmem:[#allocation5 + $0x104] sm:$0xff]
        %v315 = vld [vmem:[#allocation5 + $0x10c] sm:$0xff]
        %v316 = vld [vmem:[#allocation5 + $0x114] sm:$0xff]
        %v317 = vld [vmem:[#allocation5 + $0x11c] sm:$0xf]
        %v318 = vld [vmem:[#allocation5 + $0x120] sm:$0xff]
        %v319 = vld [vmem:[#allocation5 + $0x128] sm:$0xff]
        %v320 = vld [vmem:[#allocation5 + $0x130] sm:$0xff]
        %v321 = vld [vmem:[#allocation5 + $0x138] sm:$0xff]
        %v322 = vld [vmem:[#allocation5 + $0x140] sm:$0xf]
        %v323 = vld [vmem:[#allocation5 + $0x144] sm:$0xff]
        %v324 = vld [vmem:[#allocation5 + $0x14c] sm:$0xff]
        %v325 = vld [vmem:[#allocation5 + $0x154] sm:$0xff]
        %v326 = vld [vmem:[#allocation5 + $0x15c] sm:$0xff]
        %v327 = vld [vmem:[#allocation5 + $0x164] sm:$0xf]
        %v328 = vld [vmem:[#allocation5 + $0x168] sm:$0xff]
        %v329 = vld [vmem:[#allocation5 + $0x170] sm:$0xff]
        %v330 = vld [vmem:[#allocation5 + $0x178] sm:$0xff]
        %v331 = vld [vmem:[#allocation5 + $0x180] sm:$0xff]
        %v332 = vld [vmem:[#allocation5 + $0x188] sm:$0xf]
        %v333 = vld [vmem:[#allocation5 + $0x18c] sm:$0xff]
        %v334 = vld [vmem:[#allocation5 + $0x194] sm:$0xff]
        %v335 = vld [vmem:[#allocation5 + $0x19c] sm:$0xff]
        %v336 = vld [vmem:[#allocation5 + $0x1a4] sm:$0xff]
        %v337 = vld [vmem:[#allocation5 + $0x1ac] sm:$0xf]
        %v338 = vld [vmem:[#allocation5 + $0x1b0] sm:$0xff]
        %v339 = vld [vmem:[#allocation5 + $0x1b8] sm:$0xff]
        %v340 = vld [vmem:[#allocation5 + $0x1c0] sm:$0xff]
        %v341 = vld [vmem:[#allocation5 + $0x1c8] sm:$0xff]
        %v342 = vld [vmem:[#allocation5 + $0x1d0] sm:$0xf]
        %v343 = vld [vmem:[#allocation5 + $0x1d4] sm:$0xff]
        %v344 = vld [vmem:[#allocation5 + $0x1dc] sm:$0xff]
        %v345 = vld [vmem:[#allocation5 + $0x1e4] sm:$0xff]
        %v346 = vld [vmem:[#allocation5 + $0x1ec] sm:$0xff]
        %v347 = vld [vmem:[#allocation5 + $0x1f4] sm:$0xf]
        %v348 = vld [vmem:[#allocation5 + $0x1f8] sm:$0xff]
        %v349 = vld [vmem:[#allocation5 + $0x200] sm:$0xff]
        %v350 = vld [vmem:[#allocation5 + $0x208] sm:$0xff]
        %v351 = vld [vmem:[#allocation5 + $0x210] sm:$0xff]
        %v352 = vld [vmem:[#allocation5 + $0x218] sm:$0xf]
        %v353 = vld [vmem:[#allocation5 + $0x21c] sm:$0xff]
        %v354 = vld [vmem:[#allocation5 + $0x224] sm:$0xff]
        %v355 = vld [vmem:[#allocation5 + $0x22c] sm:$0xff]
        %v356 = vld [vmem:[#allocation5 + $0x234] sm:$0xff]
        %v357 = vld [vmem:[#allocation5 + $0x23c] sm:$0xf]
        %v358 = vld [vmem:[#allocation5 + $0x240] sm:$0xff]
        %v359 = vld [vmem:[#allocation5 + $0x248] sm:$0xff]
        %v360 = vld [vmem:[#allocation5 + $0x250] sm:$0xff]
        %v361 = vld [vmem:[#allocation5 + $0x258] sm:$0xff]
        %v362 = vld [vmem:[#allocation5 + $0x260] sm:$0xf]
        %v363 = vld [vmem:[#allocation5 + $0x264] sm:$0xff]
        %v364 = vld [vmem:[#allocation5 + $0x26c] sm:$0xff]
        %v365 = vld [vmem:[#allocation5 + $0x274] sm:$0xff]
        %v366 = vld [vmem:[#allocation5 + $0x27c] sm:$0xff]
        %v367 = vld [vmem:[#allocation5 + $0x284] sm:$0xf]
        %v368 = vld [vmem:[#allocation5 + $0x288] sm:$0xff]
        %v369 = vld [vmem:[#allocation5 + $0x290] sm:$0xff]
        %v370 = vld [vmem:[#allocation5 + $0x298] sm:$0xff]
        %v371 = vld [vmem:[#allocation5 + $0x2a0] sm:$0xff]
        %v372 = vld [vmem:[#allocation5 + $0x2a8] sm:$0xf]
        %v373 = vld [vmem:[#allocation5 + $0x2ac] sm:$0xff]
        %v374 = vld [vmem:[#allocation5 + $0x2b4] sm:$0xff]
        %v375 = vld [vmem:[#allocation5 + $0x2bc] sm:$0xff]
        %v376 = vld [vmem:[#allocation5 + $0x2c4] sm:$0xff]
        %v377 = vld [vmem:[#allocation5 + $0x2cc] sm:$0xf]
        %v378 = vld [vmem:[#allocation5 + $0x2d0] sm:$0xff]
        %v379 = vld [vmem:[#allocation5 + $0x2d8] sm:$0xff]
        %v380 = vld [vmem:[#allocation5 + $0x2e0] sm:$0xff]
        %v381 = vld [vmem:[#allocation5 + $0x2e8] sm:$0xff]
        %v382 = vld [vmem:[#allocation5 + $0x2f0] sm:$0xf]
        %v383 = vld [vmem:[#allocation5 + $0x2f4] sm:$0xff]
        %v384 = vld [vmem:[#allocation5 + $0x2fc] sm:$0xff]
        %v385 = vld [vmem:[#allocation5 + $0x304] sm:$0xff]
        %v386 = vld [vmem:[#allocation5 + $0x30c] sm:$0xff]
        %v387 = vld [vmem:[#allocation5 + $0x314] sm:$0xf]
        %v388 = vld [vmem:[#allocation5 + $0x318] sm:$0xff]
        %v389 = vld [vmem:[#allocation5 + $0x320] sm:$0xff]
        %v390 = vld [vmem:[#allocation5 + $0x328] sm:$0xff]
        %v391 = vld [vmem:[#allocation5 + $0x330] sm:$0xff]
        %v392 = vld [vmem:[#allocation5 + $0x338] sm:$0xf]
        %v393 = vld [vmem:[#allocation5 + $0x33c] sm:$0xff]
        %v394 = vld [vmem:[#allocation5 + $0x344] sm:$0xff]
        %v395 = vld [vmem:[#allocation5 + $0x34c] sm:$0xff]
        %v396 = vld [vmem:[#allocation5 + $0x354] sm:$0xff]
        %v397 = vld [vmem:[#allocation5 + $0x35c] sm:$0xf]
        %v398 = vld [vmem:[#allocation5 + $0x360] sm:$0xff]
        %v399 = vld [vmem:[#allocation5 + $0x368] sm:$0xff]
        %v400 = vld [vmem:[#allocation5 + $0x370] sm:$0xff]
        %v401 = vld [vmem:[#allocation5 + $0x378] sm:$0xff]
        %v402 = vld [vmem:[#allocation5 + $0x380] sm:$0xf]
        %v403 = vld [vmem:[#allocation5 + $0x384] sm:$0xff]
        %v404 = vld [vmem:[#allocation5 + $0x38c] sm:$0xff]
        %v405 = vld [vmem:[#allocation5 + $0x394] sm:$0xff]
        %v406 = vld [vmem:[#allocation5 + $0x39c] sm:$0xff]
        %v407 = vld [vmem:[#allocation5 + $0x3a4] sm:$0xf]
        %v408 = vld [vmem:[#allocation5 + $0x3a8] sm:$0xff]
        %v409 = vld [vmem:[#allocation5 + $0x3b0] sm:$0xff]
        %v410 = vld [vmem:[#allocation5 + $0x3b8] sm:$0xff]
        %v411 = vld [vmem:[#allocation5 + $0x3c0] sm:$0xff]
        %v412 = vld [vmem:[#allocation5 + $0x3c8] sm:$0xf]
        %v413 = vld [vmem:[#allocation5 + $0x3cc] sm:$0xff]
        %v414 = vld [vmem:[#allocation5 + $0x3d4] sm:$0xff]
        %v415 = vld [vmem:[#allocation5 + $0x3dc] sm:$0xff]
        %v416 = vld [vmem:[#allocation5 + $0x3e4] sm:$0xff]
        %v417 = vld [vmem:[#allocation5 + $0x3ec] sm:$0xf]
        %v418 = vld [vmem:[#allocation5 + $0x3f0] sm:$0xff]
        %v419 = vld [vmem:[#allocation5 + $0x3f8] sm:$0xff]
        %v420 = vld [vmem:[#allocation5 + $0x400] sm:$0xff]
        %v421 = vld [vmem:[#allocation5 + $0x408] sm:$0xff]
        %v422 = vld [vmem:[#allocation5 + $0x410] sm:$0xf]
        %v423 = vld [vmem:[#allocation5 + $0x414] sm:$0xff]
        %v424 = vld [vmem:[#allocation5 + $0x41c] sm:$0xff]
        %v425 = vld [vmem:[#allocation5 + $0x424] sm:$0xff]
        %v426 = vld [vmem:[#allocation5 + $0x42c] sm:$0xff]
        %v427 = vld [vmem:[#allocation5 + $0x434] sm:$0xf]
        %v428 = vld [vmem:[#allocation5 + $0x438] sm:$0xff]
        %v429 = vld [vmem:[#allocation5 + $0x440] sm:$0xff]
        %v430 = vld [vmem:[#allocation5 + $0x448] sm:$0xff]
        %v431 = vld [vmem:[#allocation5 + $0x450] sm:$0xff]
        %v432 = vld [vmem:[#allocation5 + $0x458] sm:$0xf]
        %v433 = vld [vmem:[#allocation5 + $0x45c] sm:$0xff]
        %v434 = vld [vmem:[#allocation5 + $0x464] sm:$0xff]
        %v435 = vld [vmem:[#allocation5 + $0x46c] sm:$0xff]
        %v436 = vld [vmem:[#allocation5 + $0x474] sm:$0xff]
        %v437 = vld [vmem:[#allocation5 + $0x47c] sm:$0xf]
        %v438 = vld [vmem:[#allocation5 + $0x480] sm:$0xff]
        %v439 = vld [vmem:[#allocation5 + $0x488] sm:$0xff]
        %v440 = vld [vmem:[#allocation5 + $0x490] sm:$0xff]
        %v441 = vld [vmem:[#allocation5 + $0x498] sm:$0xff]
        %v442 = vld [vmem:[#allocation5 + $0x4a0] sm:$0xf]
        %v443 = vld [vmem:[#allocation5 + $0x4a4] sm:$0xff]
        %v444 = vld [vmem:[#allocation5 + $0x4ac] sm:$0xff]
        %v445 = vld [vmem:[#allocation5 + $0x4b4] sm:$0xff]
        %v446 = vld [vmem:[#allocation5 + $0x4bc] sm:$0xff]
        %v447 = vld [vmem:[#allocation5 + $0x4c4] sm:$0xf]
        %v448 = vld [vmem:[#allocation5 + $0x4c8] sm:$0xff]
        %v449 = vld [vmem:[#allocation5 + $0x4d0] sm:$0xff]
        %v450 = vld [vmem:[#allocation5 + $0x4d8] sm:$0xff]
        %v451 = vld [vmem:[#allocation5 + $0x4e0] sm:$0xff]
        %v452 = vld [vmem:[#allocation5 + $0x4e8] sm:$0xf]
        %v453 = vld [vmem:[#allocation5 + $0x4ec] sm:$0xff]
        %v454 = vld [vmem:[#allocation5 + $0x4f4] sm:$0xff]
        %v455 = vld [vmem:[#allocation5 + $0x4fc] sm:$0xff]
        %v456 = vld [vmem:[#allocation5 + $0x504] sm:$0xff]
        %v457 = vld [vmem:[#allocation5 + $0x50c] sm:$0xf]
        %v458 = vld [vmem:[#allocation5 + $0x510] sm:$0xff]
        %v459 = vld [vmem:[#allocation5 + $0x518] sm:$0xff]
        %v460 = vld [vmem:[#allocation5 + $0x520] sm:$0xff]
        %v461 = vld [vmem:[#allocation5 + $0x528] sm:$0xff]
        %v462 = vld [vmem:[#allocation5 + $0x530] sm:$0xf]
        %v463 = vld [vmem:[#allocation5 + $0x534] sm:$0xff]
        %v464 = vld [vmem:[#allocation5 + $0x53c] sm:$0xff]
        %v465 = vld [vmem:[#allocation5 + $0x544] sm:$0xff]
        %v466 = vld [vmem:[#allocation5 + $0x54c] sm:$0xff]
        %v467 = vld [vmem:[#allocation5 + $0x554] sm:$0xf]
        %v468 = vld [vmem:[#allocation5 + $0x558] sm:$0xff]
        %v469 = vld [vmem:[#allocation5 + $0x560] sm:$0xff]
        %v470 = vld [vmem:[#allocation5 + $0x568] sm:$0xff]
        %v471 = vld [vmem:[#allocation5 + $0x570] sm:$0xff]
        %v472 = vld [vmem:[#allocation5 + $0x578] sm:$0xf]
        %v473 = vld [vmem:[#allocation5 + $0x57c] sm:$0xff]
        %v474 = vld [vmem:[#allocation5 + $0x584] sm:$0xff]
        %v475 = vld [vmem:[#allocation5 + $0x58c] sm:$0xff]
        %v476 = vld [vmem:[#allocation5 + $0x594] sm:$0xff]
        %v477 = vld [vmem:[#allocation5 + $0x59c] sm:$0xf]
        %v478 = vld [vmem:[#allocation5 + $0x5a0] sm:$0xff]
        %v479 = vld [vmem:[#allocation5 + $0x5a8] sm:$0xff]
        %v480 = vld [vmem:[#allocation5 + $0x5b0] sm:$0xff]
        %v481 = vld [vmem:[#allocation5 + $0x5b8] sm:$0xff]
        %v482 = vld [vmem:[#allocation5 + $0x5c0] sm:$0xf]
        %v483 = vld [vmem:[#allocation5 + $0x5c4] sm:$0xff]
        %v484 = vld [vmem:[#allocation5 + $0x5cc] sm:$0xff]
        %v485 = vld [vmem:[#allocation5 + $0x5d4] sm:$0xff]
        %v486 = vld [vmem:[#allocation5 + $0x5dc] sm:$0xff]
        %v487 = vld [vmem:[#allocation5 + $0x5e4] sm:$0xf]
        %v488 = vld [vmem:[#allocation5 + $0x5e8] sm:$0xff]
        %v489 = vld [vmem:[#allocation5 + $0x5f0] sm:$0xff]
        %v490 = vld [vmem:[#allocation5 + $0x5f8] sm:$0xff]
        %v491 = vld [vmem:[#allocation5 + $0x600] sm:$0xff]
        %v492 = vld [vmem:[#allocation5 + $0x608] sm:$0xf]
        %v493 = vld [vmem:[#allocation5 + $0x60c] sm:$0xff]
        %v494 = vld [vmem:[#allocation5 + $0x614] sm:$0xff]
        %v495 = vld [vmem:[#allocation5 + $0x61c] sm:$0xff]
        %v496 = vld [vmem:[#allocation5 + $0x624] sm:$0xff]
        %v497 = vld [vmem:[#allocation5 + $0x62c] sm:$0xf]
        %v498 = vld [vmem:[#allocation5 + $0x630] sm:$0xff]
        %v499 = vld [vmem:[#allocation5 + $0x638] sm:$0xff]
        %v500 = vld [vmem:[#allocation5 + $0x640] sm:$0xff]
        %v501 = vld [vmem:[#allocation5 + $0x648] sm:$0xff]
        %v502 = vld [vmem:[#allocation5 + $0x650] sm:$0xf]
        %v503 = vld [vmem:[#allocation5 + $0x654] sm:$0xff]
        %v504 = vld [vmem:[#allocation5 + $0x65c] sm:$0xff]
        %v505 = vld [vmem:[#allocation5 + $0x664] sm:$0xff]
        %v506 = vld [vmem:[#allocation5 + $0x66c] sm:$0xff]
        %v507 = vld [vmem:[#allocation5 + $0x674] sm:$0xf]
        %v508 = vld [vmem:[#allocation5 + $0x678] sm:$0xff]
        %v509 = vld [vmem:[#allocation5 + $0x680] sm:$0xff]
        %v510 = vld [vmem:[#allocation5 + $0x688] sm:$0xff]
        %v511 = vld [vmem:[#allocation5 + $0x690] sm:$0xff]
        %v512 = vld [vmem:[#allocation5 + $0x698] sm:$0xf]
        %v513 = vld [vmem:[#allocation5 + $0x69c] sm:$0xff]
        %v514 = vld [vmem:[#allocation5 + $0x6a4] sm:$0xff]
        %v515 = vld [vmem:[#allocation5 + $0x6ac] sm:$0xff]
        %v516 = vld [vmem:[#allocation5 + $0x6b4] sm:$0xff]
        %v517 = vld [vmem:[#allocation5 + $0x6bc] sm:$0xf]
        %v550 = vunpack.c.l.b16 %v246
        %v551 = vunpack.c.h.b16 %v246
        %v552 = vunpack.c.l.b16 %v247
        %v553 = vunpack.c.l.b16 %v248
        %v554 = vunpack.c.h.b16 %v248
        %v555 = vunpack.c.l.b16 %v249
        %v556 = vunpack.c.l.b16 %v250
        %v557 = vunpack.c.h.b16 %v250
        %v558 = vunpack.c.l.b16 %v251
        %v559 = vunpack.c.l.b16 %v252
        %v560 = vunpack.c.h.b16 %v252
        %v561 = vunpack.c.l.b16 %v253
        %v562 = vunpack.c.l.b16 %v254
        %v563 = vunpack.c.h.b16 %v254
        %v564 = vunpack.c.l.b16 %v255
        %v565 = vunpack.c.l.b16 %v256
        %v566 = vunpack.c.h.b16 %v256
        %v567 = vunpack.c.l.b16 %v257
        %v568 = vunpack.c.l.b16 %v258
        %v569 = vunpack.c.h.b16 %v258
        %v570 = vunpack.c.l.b16 %v259
        %v571 = vunpack.c.l.b16 %v260
        %v572 = vunpack.c.h.b16 %v260
        %v573 = vunpack.c.l.b16 %v261
        %v574 = vunpack.c.l.b16 %v262
        %v575 = vunpack.c.h.b16 %v262
        %v576 = vunpack.c.l.b16 %v263
        %v577 = vunpack.c.l.b16 %v264
        %v578 = vunpack.c.h.b16 %v264
        %v579 = vunpack.c.l.b16 %v265
        %v580 = vunpack.c.l.b16 %v266
        %v581 = vunpack.c.h.b16 %v266
        %v582 = vunpack.c.l.b16 %v267
        %v583 = vunpack.c.l.b16 %v268
        %v584 = vunpack.c.h.b16 %v268
        %v585 = vunpack.c.l.b16 %v269
        %v586 = vunpack.c.l.b16 %v270
        %v587 = vunpack.c.h.b16 %v270
        %v588 = vunpack.c.l.b16 %v271
        %v589 = vunpack.c.l.b16 %v272
        %v590 = vunpack.c.h.b16 %v272
        %v591 = vunpack.c.l.b16 %v273
        %v592 = vunpack.c.l.b16 %v274
        %v593 = vunpack.c.h.b16 %v274
        %v594 = vunpack.c.l.b16 %v275
        %v595 = vunpack.c.l.b16 %v276
        %v596 = vunpack.c.h.b16 %v276
        %v597 = vunpack.c.l.b16 %v277
        %v598 = vpack.c.b16 %v553, %v550
        %v599 = vpack.c.b16 %v554, %v551
        %v600 = vpack.c.b16 %v555, %v552
        %v601 = vpack.c.b16 %v559, %v556
        %v602 = vpack.c.b16 %v560, %v557
        %v603 = vpack.c.b16 %v561, %v558
        %v604 = vpack.c.b16 %v565, %v562
        %v605 = vpack.c.b16 %v566, %v563
        %v606 = vpack.c.b16 %v567, %v564
        %v607 = vpack.c.b16 %v571, %v568
        %v608 = vpack.c.b16 %v572, %v569
        %v609 = vpack.c.b16 %v573, %v570
        %v610 = vpack.c.b16 %v577, %v574
        %v611 = vpack.c.b16 %v578, %v575
        %v612 = vpack.c.b16 %v579, %v576
        %v613 = vpack.c.b16 %v583, %v580
        %v614 = vpack.c.b16 %v584, %v581
        %v615 = vpack.c.b16 %v585, %v582
        %v616 = vpack.c.b16 %v589, %v586
        %v617 = vpack.c.b16 %v590, %v587
        %v618 = vpack.c.b16 %v591, %v588
        %v619 = vpack.c.b16 %v595, %v592
        %v620 = vpack.c.b16 %v596, %v593
        %v621 = vpack.c.b16 %v597, %v594
        %v886 = vunpack.c.l.b16 %v278
        %v887 = vunpack.c.h.b16 %v278
        %v888 = vunpack.c.l.b16 %v279
        %v889 = vunpack.c.h.b16 %v279
        %v890 = vunpack.c.l.b16 %v280
        %v891 = vunpack.c.h.b16 %v280
        %v892 = vunpack.c.l.b16 %v281
        %v893 = vunpack.c.h.b16 %v281
        %v894 = vunpack.c.l.b16 %v282
        %v895 = vunpack.c.l.b16 %v283
        %v896 = vunpack.c.h.b16 %v283
        %v897 = vunpack.c.l.b16 %v284
        %v898 = vunpack.c.h.b16 %v284
        %v899 = vunpack.c.l.b16 %v285
        %v900 = vunpack.c.h.b16 %v285
        %v901 = vunpack.c.l.b16 %v286
        %v902 = vunpack.c.h.b16 %v286
        %v903 = vunpack.c.l.b16 %v287
        %v904 = vunpack.c.l.b16 %v288
        %v905 = vunpack.c.h.b16 %v288
        %v906 = vunpack.c.l.b16 %v289
        %v907 = vunpack.c.h.b16 %v289
        %v908 = vunpack.c.l.b16 %v290
        %v909 = vunpack.c.h.b16 %v290
        %v910 = vunpack.c.l.b16 %v291
        %v911 = vunpack.c.h.b16 %v291
        %v912 = vunpack.c.l.b16 %v292
        %v913 = vunpack.c.l.b16 %v293
        %v914 = vunpack.c.h.b16 %v293
        %v915 = vunpack.c.l.b16 %v294
        %v916 = vunpack.c.h.b16 %v294
        %v917 = vunpack.c.l.b16 %v295
        %v918 = vunpack.c.h.b16 %v295
        %v919 = vunpack.c.l.b16 %v296
        %v920 = vunpack.c.h.b16 %v296
        %v921 = vunpack.c.l.b16 %v297
        %v922 = vunpack.c.l.b16 %v298
        %v923 = vunpack.c.h.b16 %v298
        %v924 = vunpack.c.l.b16 %v299
        %v925 = vunpack.c.h.b16 %v299
        %v926 = vunpack.c.l.b16 %v300
        %v927 = vunpack.c.h.b16 %v300
        %v928 = vunpack.c.l.b16 %v301
        %v929 = vunpack.c.h.b16 %v301
        %v930 = vunpack.c.l.b16 %v302
        %v931 = vunpack.c.l.b16 %v303
        %v932 = vunpack.c.h.b16 %v303
        %v933 = vunpack.c.l.b16 %v304
        %v934 = vunpack.c.h.b16 %v304
        %v935 = vunpack.c.l.b16 %v305
        %v936 = vunpack.c.h.b16 %v305
        %v937 = vunpack.c.l.b16 %v306
        %v938 = vunpack.c.h.b16 %v306
        %v939 = vunpack.c.l.b16 %v307
        %v940 = vunpack.c.l.b16 %v308
        %v941 = vunpack.c.h.b16 %v308
        %v942 = vunpack.c.l.b16 %v309
        %v943 = vunpack.c.h.b16 %v309
        %v944 = vunpack.c.l.b16 %v310
        %v945 = vunpack.c.h.b16 %v310
        %v946 = vunpack.c.l.b16 %v311
        %v947 = vunpack.c.h.b16 %v311
        %v948 = vunpack.c.l.b16 %v312
        %v949 = vunpack.c.l.b16 %v313
        %v950 = vunpack.c.h.b16 %v313
        %v951 = vunpack.c.l.b16 %v314
        %v952 = vunpack.c.h.b16 %v314
        %v953 = vunpack.c.l.b16 %v315
        %v954 = vunpack.c.h.b16 %v315
        %v955 = vunpack.c.l.b16 %v316
        %v956 = vunpack.c.h.b16 %v316
        %v957 = vunpack.c.l.b16 %v317
        %v958 = vunpack.c.l.b16 %v318
        %v959 = vunpack.c.h.b16 %v318
        %v960 = vunpack.c.l.b16 %v319
        %v961 = vunpack.c.h.b16 %v319
        %v962 = vunpack.c.l.b16 %v320
        %v963 = vunpack.c.h.b16 %v320
        %v964 = vunpack.c.l.b16 %v321
        %v965 = vunpack.c.h.b16 %v321
        %v966 = vunpack.c.l.b16 %v322
        %v967 = vunpack.c.l.b16 %v323
        %v968 = vunpack.c.h.b16 %v323
        %v969 = vunpack.c.l.b16 %v324
        %v970 = vunpack.c.h.b16 %v324
        %v971 = vunpack.c.l.b16 %v325
        %v972 = vunpack.c.h.b16 %v325
        %v973 = vunpack.c.l.b16 %v326
        %v974 = vunpack.c.h.b16 %v326
        %v975 = vunpack.c.l.b16 %v327
        %v976 = vunpack.c.l.b16 %v328
        %v977 = vunpack.c.h.b16 %v328
        %v978 = vunpack.c.l.b16 %v329
        %v979 = vunpack.c.h.b16 %v329
        %v980 = vunpack.c.l.b16 %v330
        %v981 = vunpack.c.h.b16 %v330
        %v982 = vunpack.c.l.b16 %v331
        %v983 = vunpack.c.h.b16 %v331
        %v984 = vunpack.c.l.b16 %v332
        %v985 = vunpack.c.l.b16 %v333
        %v986 = vunpack.c.h.b16 %v333
        %v987 = vunpack.c.l.b16 %v334
        %v988 = vunpack.c.h.b16 %v334
        %v989 = vunpack.c.l.b16 %v335
        %v990 = vunpack.c.h.b16 %v335
        %v991 = vunpack.c.l.b16 %v336
        %v992 = vunpack.c.h.b16 %v336
        %v993 = vunpack.c.l.b16 %v337
        %v994 = vunpack.c.l.b16 %v338
        %v995 = vunpack.c.h.b16 %v338
        %v996 = vunpack.c.l.b16 %v339
        %v997 = vunpack.c.h.b16 %v339
        %v998 = vunpack.c.l.b16 %v340
        %v999 = vunpack.c.h.b16 %v340
        %v1000 = vunpack.c.l.b16 %v341
        %v1001 = vunpack.c.h.b16 %v341
        %v1002 = vunpack.c.l.b16 %v342
        %v1003 = vunpack.c.l.b16 %v343
        %v1004 = vunpack.c.h.b16 %v343
        %v1005 = vunpack.c.l.b16 %v344
        %v1006 = vunpack.c.h.b16 %v344
        %v1007 = vunpack.c.l.b16 %v345
        %v1008 = vunpack.c.h.b16 %v345
        %v1009 = vunpack.c.l.b16 %v346
        %v1010 = vunpack.c.h.b16 %v346
        %v1011 = vunpack.c.l.b16 %v347
        %v1012 = vunpack.c.l.b16 %v348
        %v1013 = vunpack.c.h.b16 %v348
        %v1014 = vunpack.c.l.b16 %v349
        %v1015 = vunpack.c.h.b16 %v349
        %v1016 = vunpack.c.l.b16 %v350
        %v1017 = vunpack.c.h.b16 %v350
        %v1018 = vunpack.c.l.b16 %v351
        %v1019 = vunpack.c.h.b16 %v351
        %v1020 = vunpack.c.l.b16 %v352
        %v1021 = vunpack.c.l.b16 %v353
        %v1022 = vunpack.c.h.b16 %v353
        %v1023 = vunpack.c.l.b16 %v354
        %v1024 = vunpack.c.h.b16 %v354
        %v1025 = vunpack.c.l.b16 %v355
        %v1026 = vunpack.c.h.b16 %v355
        %v1027 = vunpack.c.l.b16 %v356
        %v1028 = vunpack.c.h.b16 %v356
        %v1029 = vunpack.c.l.b16 %v357
        %v1030 = vunpack.c.l.b16 %v358
        %v1031 = vunpack.c.h.b16 %v358
        %v1032 = vunpack.c.l.b16 %v359
        %v1033 = vunpack.c.h.b16 %v359
        %v1034 = vunpack.c.l.b16 %v360
        %v1035 = vunpack.c.h.b16 %v360
        %v1036 = vunpack.c.l.b16 %v361
        %v1037 = vunpack.c.h.b16 %v361
        %v1038 = vunpack.c.l.b16 %v362
        %v1039 = vunpack.c.l.b16 %v363
        %v1040 = vunpack.c.h.b16 %v363
        %v1041 = vunpack.c.l.b16 %v364
        %v1042 = vunpack.c.h.b16 %v364
        %v1043 = vunpack.c.l.b16 %v365
        %v1044 = vunpack.c.h.b16 %v365
        %v1045 = vunpack.c.l.b16 %v366
        %v1046 = vunpack.c.h.b16 %v366
        %v1047 = vunpack.c.l.b16 %v367
        %v1048 = vunpack.c.l.b16 %v368
        %v1049 = vunpack.c.h.b16 %v368
        %v1050 = vunpack.c.l.b16 %v369
        %v1051 = vunpack.c.h.b16 %v369
        %v1052 = vunpack.c.l.b16 %v370
        %v1053 = vunpack.c.h.b16 %v370
        %v1054 = vunpack.c.l.b16 %v371
        %v1055 = vunpack.c.h.b16 %v371
        %v1056 = vunpack.c.l.b16 %v372
        %v1057 = vunpack.c.l.b16 %v373
        %v1058 = vunpack.c.h.b16 %v373
        %v1059 = vunpack.c.l.b16 %v374
        %v1060 = vunpack.c.h.b16 %v374
        %v1061 = vunpack.c.l.b16 %v375
        %v1062 = vunpack.c.h.b16 %v375
        %v1063 = vunpack.c.l.b16 %v376
        %v1064 = vunpack.c.h.b16 %v376
        %v1065 = vunpack.c.l.b16 %v377
        %v1066 = vunpack.c.l.b16 %v378
        %v1067 = vunpack.c.h.b16 %v378
        %v1068 = vunpack.c.l.b16 %v379
        %v1069 = vunpack.c.h.b16 %v379
        %v1070 = vunpack.c.l.b16 %v380
        %v1071 = vunpack.c.h.b16 %v380
        %v1072 = vunpack.c.l.b16 %v381
        %v1073 = vunpack.c.h.b16 %v381
        %v1074 = vunpack.c.l.b16 %v382
        %v1075 = vunpack.c.l.b16 %v383
        %v1076 = vunpack.c.h.b16 %v383
        %v1077 = vunpack.c.l.b16 %v384
        %v1078 = vunpack.c.h.b16 %v384
        %v1079 = vunpack.c.l.b16 %v385
        %v1080 = vunpack.c.h.b16 %v385
        %v1081 = vunpack.c.l.b16 %v386
        %v1082 = vunpack.c.h.b16 %v386
        %v1083 = vunpack.c.l.b16 %v387
        %v1084 = vunpack.c.l.b16 %v388
        %v1085 = vunpack.c.h.b16 %v388
        %v1086 = vunpack.c.l.b16 %v389
        %v1087 = vunpack.c.h.b16 %v389
        %v1088 = vunpack.c.l.b16 %v390
        %v1089 = vunpack.c.h.b16 %v390
        %v1090 = vunpack.c.l.b16 %v391
        %v1091 = vunpack.c.h.b16 %v391
        %v1092 = vunpack.c.l.b16 %v392
        %v1093 = vunpack.c.l.b16 %v393
        %v1094 = vunpack.c.h.b16 %v393
        %v1095 = vunpack.c.l.b16 %v394
        %v1096 = vunpack.c.h.b16 %v394
        %v1097 = vunpack.c.l.b16 %v395
        %v1098 = vunpack.c.h.b16 %v395
        %v1099 = vunpack.c.l.b16 %v396
        %v1100 = vunpack.c.h.b16 %v396
        %v1101 = vunpack.c.l.b16 %v397
        %v1102 = vunpack.c.l.b16 %v398
        %v1103 = vunpack.c.h.b16 %v398
        %v1104 = vunpack.c.l.b16 %v399
        %v1105 = vunpack.c.h.b16 %v399
        %v1106 = vunpack.c.l.b16 %v400
        %v1107 = vunpack.c.h.b16 %v400
        %v1108 = vunpack.c.l.b16 %v401
        %v1109 = vunpack.c.h.b16 %v401
        %v1110 = vunpack.c.l.b16 %v402
        %v1111 = vunpack.c.l.b16 %v403
        %v1112 = vunpack.c.h.b16 %v403
        %v1113 = vunpack.c.l.b16 %v404
        %v1114 = vunpack.c.h.b16 %v404
        %v1115 = vunpack.c.l.b16 %v405
        %v1116 = vunpack.c.h.b16 %v405
        %v1117 = vunpack.c.l.b16 %v406
        %v1118 = vunpack.c.h.b16 %v406
        %v1119 = vunpack.c.l.b16 %v407
        %v1120 = vunpack.c.l.b16 %v408
        %v1121 = vunpack.c.h.b16 %v408
        %v1122 = vunpack.c.l.b16 %v409
        %v1123 = vunpack.c.h.b16 %v409
        %v1124 = vunpack.c.l.b16 %v410
        %v1125 = vunpack.c.h.b16 %v410
        %v1126 = vunpack.c.l.b16 %v411
        %v1127 = vunpack.c.h.b16 %v411
        %v1128 = vunpack.c.l.b16 %v412
        %v1129 = vunpack.c.l.b16 %v413
        %v1130 = vunpack.c.h.b16 %v413
        %v1131 = vunpack.c.l.b16 %v414
        %v1132 = vunpack.c.h.b16 %v414
        %v1133 = vunpack.c.l.b16 %v415
        %v1134 = vunpack.c.h.b16 %v415
        %v1135 = vunpack.c.l.b16 %v416
        %v1136 = vunpack.c.h.b16 %v416
        %v1137 = vunpack.c.l.b16 %v417
        %v1138 = vunpack.c.l.b16 %v418
        %v1139 = vunpack.c.h.b16 %v418
        %v1140 = vunpack.c.l.b16 %v419
        %v1141 = vunpack.c.h.b16 %v419
        %v1142 = vunpack.c.l.b16 %v420
        %v1143 = vunpack.c.h.b16 %v420
        %v1144 = vunpack.c.l.b16 %v421
        %v1145 = vunpack.c.h.b16 %v421
        %v1146 = vunpack.c.l.b16 %v422
        %v1147 = vunpack.c.l.b16 %v423
        %v1148 = vunpack.c.h.b16 %v423
        %v1149 = vunpack.c.l.b16 %v424
        %v1150 = vunpack.c.h.b16 %v424
        %v1151 = vunpack.c.l.b16 %v425
        %v1152 = vunpack.c.h.b16 %v425
        %v1153 = vunpack.c.l.b16 %v426
        %v1154 = vunpack.c.h.b16 %v426
        %v1155 = vunpack.c.l.b16 %v427
        %v1156 = vunpack.c.l.b16 %v428
        %v1157 = vunpack.c.h.b16 %v428
        %v1158 = vunpack.c.l.b16 %v429
        %v1159 = vunpack.c.h.b16 %v429
        %v1160 = vunpack.c.l.b16 %v430
        %v1161 = vunpack.c.h.b16 %v430
        %v1162 = vunpack.c.l.b16 %v431
        %v1163 = vunpack.c.h.b16 %v431
        %v1164 = vunpack.c.l.b16 %v432
        %v1165 = vunpack.c.l.b16 %v433
        %v1166 = vunpack.c.h.b16 %v433
        %v1167 = vunpack.c.l.b16 %v434
        %v1168 = vunpack.c.h.b16 %v434
        %v1169 = vunpack.c.l.b16 %v435
        %v1170 = vunpack.c.h.b16 %v435
        %v1171 = vunpack.c.l.b16 %v436
        %v1172 = vunpack.c.h.b16 %v436
        %v1173 = vunpack.c.l.b16 %v437
        %v1174 = vunpack.c.l.b16 %v438
        %v1175 = vunpack.c.h.b16 %v438
        %v1176 = vunpack.c.l.b16 %v439
        %v1177 = vunpack.c.h.b16 %v439
        %v1178 = vunpack.c.l.b16 %v440
        %v1179 = vunpack.c.h.b16 %v440
        %v1180 = vunpack.c.l.b16 %v441
        %v1181 = vunpack.c.h.b16 %v441
        %v1182 = vunpack.c.l.b16 %v442
        %v1183 = vunpack.c.l.b16 %v443
        %v1184 = vunpack.c.h.b16 %v443
        %v1185 = vunpack.c.l.b16 %v444
        %v1186 = vunpack.c.h.b16 %v444
        %v1187 = vunpack.c.l.b16 %v445
        %v1188 = vunpack.c.h.b16 %v445
        %v1189 = vunpack.c.l.b16 %v446
        %v1190 = vunpack.c.h.b16 %v446
        %v1191 = vunpack.c.l.b16 %v447
        %v1192 = vunpack.c.l.b16 %v448
        %v1193 = vunpack.c.h.b16 %v448
        %v1194 = vunpack.c.l.b16 %v449
        %v1195 = vunpack.c.h.b16 %v449
        %v1196 = vunpack.c.l.b16 %v450
        %v1197 = vunpack.c.h.b16 %v450
        %v1198 = vunpack.c.l.b16 %v451
        %v1199 = vunpack.c.h.b16 %v451
        %v1200 = vunpack.c.l.b16 %v452
        %v1201 = vunpack.c.l.b16 %v453
        %v1202 = vunpack.c.h.b16 %v453
        %v1203 = vunpack.c.l.b16 %v454
        %v1204 = vunpack.c.h.b16 %v454
        %v1205 = vunpack.c.l.b16 %v455
        %v1206 = vunpack.c.h.b16 %v455
        %v1207 = vunpack.c.l.b16 %v456
        %v1208 = vunpack.c.h.b16 %v456
        %v1209 = vunpack.c.l.b16 %v457
        %v1210 = vunpack.c.l.b16 %v458
        %v1211 = vunpack.c.h.b16 %v458
        %v1212 = vunpack.c.l.b16 %v459
        %v1213 = vunpack.c.h.b16 %v459
        %v1214 = vunpack.c.l.b16 %v460
        %v1215 = vunpack.c.h.b16 %v460
        %v1216 = vunpack.c.l.b16 %v461
        %v1217 = vunpack.c.h.b16 %v461
        %v1218 = vunpack.c.l.b16 %v462
        %v1219 = vunpack.c.l.b16 %v463
        %v1220 = vunpack.c.h.b16 %v463
        %v1221 = vunpack.c.l.b16 %v464
        %v1222 = vunpack.c.h.b16 %v464
        %v1223 = vunpack.c.l.b16 %v465
        %v1224 = vunpack.c.h.b16 %v465
        %v1225 = vunpack.c.l.b16 %v466
        %v1226 = vunpack.c.h.b16 %v466
        %v1227 = vunpack.c.l.b16 %v467
        %v1228 = vunpack.c.l.b16 %v468
        %v1229 = vunpack.c.h.b16 %v468
        %v1230 = vunpack.c.l.b16 %v469
        %v1231 = vunpack.c.h.b16 %v469
        %v1232 = vunpack.c.l.b16 %v470
        %v1233 = vunpack.c.h.b16 %v470
        %v1234 = vunpack.c.l.b16 %v471
        %v1235 = vunpack.c.h.b16 %v471
        %v1236 = vunpack.c.l.b16 %v472
        %v1237 = vunpack.c.l.b16 %v473
        %v1238 = vunpack.c.h.b16 %v473
        %v1239 = vunpack.c.l.b16 %v474
        %v1240 = vunpack.c.h.b16 %v474
        %v1241 = vunpack.c.l.b16 %v475
        %v1242 = vunpack.c.h.b16 %v475
        %v1243 = vunpack.c.l.b16 %v476
        %v1244 = vunpack.c.h.b16 %v476
        %v1245 = vunpack.c.l.b16 %v477
        %v1246 = vunpack.c.l.b16 %v478
        %v1247 = vunpack.c.h.b16 %v478
        %v1248 = vunpack.c.l.b16 %v479
        %v1249 = vunpack.c.h.b16 %v479
        %v1250 = vunpack.c.l.b16 %v480
        %v1251 = vunpack.c.h.b16 %v480
        %v1252 = vunpack.c.l.b16 %v481
        %v1253 = vunpack.c.h.b16 %v481
        %v1254 = vunpack.c.l.b16 %v482
        %v1255 = vunpack.c.l.b16 %v483
        %v1256 = vunpack.c.h.b16 %v483
        %v1257 = vunpack.c.l.b16 %v484
        %v1258 = vunpack.c.h.b16 %v484
        %v1259 = vunpack.c.l.b16 %v485
        %v1260 = vunpack.c.h.b16 %v485
        %v1261 = vunpack.c.l.b16 %v486
        %v1262 = vunpack.c.h.b16 %v486
        %v1263 = vunpack.c.l.b16 %v487
        %v1264 = vunpack.c.l.b16 %v488
        %v1265 = vunpack.c.h.b16 %v488
        %v1266 = vunpack.c.l.b16 %v489
        %v1267 = vunpack.c.h.b16 %v489
        %v1268 = vunpack.c.l.b16 %v490
        %v1269 = vunpack.c.h.b16 %v490
        %v1270 = vunpack.c.l.b16 %v491
        %v1271 = vunpack.c.h.b16 %v491
        %v1272 = vunpack.c.l.b16 %v492
        %v1273 = vunpack.c.l.b16 %v493
        %v1274 = vunpack.c.h.b16 %v493
        %v1275 = vunpack.c.l.b16 %v494
        %v1276 = vunpack.c.h.b16 %v494
        %v1277 = vunpack.c.l.b16 %v495
        %v1278 = vunpack.c.h.b16 %v495
        %v1279 = vunpack.c.l.b16 %v496
        %v1280 = vunpack.c.h.b16 %v496
        %v1281 = vunpack.c.l.b16 %v497
        %v1282 = vunpack.c.l.b16 %v498
        %v1283 = vunpack.c.h.b16 %v498
        %v1284 = vunpack.c.l.b16 %v499
        %v1285 = vunpack.c.h.b16 %v499
        %v1286 = vunpack.c.l.b16 %v500
        %v1287 = vunpack.c.h.b16 %v500
        %v1288 = vunpack.c.l.b16 %v501
        %v1289 = vunpack.c.h.b16 %v501
        %v1290 = vunpack.c.l.b16 %v502
        %v1291 = vunpack.c.l.b16 %v503
        %v1292 = vunpack.c.h.b16 %v503
        %v1293 = vunpack.c.l.b16 %v504
        %v1294 = vunpack.c.h.b16 %v504
        %v1295 = vunpack.c.l.b16 %v505
        %v1296 = vunpack.c.h.b16 %v505
        %v1297 = vunpack.c.l.b16 %v506
        %v1298 = vunpack.c.h.b16 %v506
        %v1299 = vunpack.c.l.b16 %v507
        %v1300 = vunpack.c.l.b16 %v508
        %v1301 = vunpack.c.h.b16 %v508
        %v1302 = vunpack.c.l.b16 %v509
        %v1303 = vunpack.c.h.b16 %v509
        %v1304 = vunpack.c.l.b16 %v510
        %v1305 = vunpack.c.h.b16 %v510
        %v1306 = vunpack.c.l.b16 %v511
        %v1307 = vunpack.c.h.b16 %v511
        %v1308 = vunpack.c.l.b16 %v512
        %v1309 = vunpack.c.l.b16 %v513
        %v1310 = vunpack.c.h.b16 %v513
        %v1311 = vunpack.c.l.b16 %v514
        %v1312 = vunpack.c.h.b16 %v514
        %v1313 = vunpack.c.l.b16 %v515
        %v1314 = vunpack.c.h.b16 %v515
        %v1315 = vunpack.c.l.b16 %v516
        %v1316 = vunpack.c.h.b16 %v516
        %v1317 = vunpack.c.l.b16 %v517
        %v1318 = vpack.c.b16 %v895, %v886
        %v1319 = vpack.c.b16 %v896, %v887
        %v1320 = vpack.c.b16 %v897, %v888
        %v1321 = vpack.c.b16 %v898, %v889
        %v1322 = vpack.c.b16 %v899, %v890
        %v1323 = vpack.c.b16 %v900, %v891
        %v1324 = vpack.c.b16 %v901, %v892
        %v1325 = vpack.c.b16 %v902, %v893
        %v1326 = vpack.c.b16 %v903, %v894
        %v1327 = vpack.c.b16 %v913, %v904
        %v1328 = vpack.c.b16 %v914, %v905
        %v1329 = vpack.c.b16 %v915, %v906
        %v1330 = vpack.c.b16 %v916, %v907
        %v1331 = vpack.c.b16 %v917, %v908
        %v1332 = vpack.c.b16 %v918, %v909
        %v1333 = vpack.c.b16 %v919, %v910
        %v1334 = vpack.c.b16 %v920, %v911
        %v1335 = vpack.c.b16 %v921, %v912
        %v1336 = vpack.c.b16 %v931, %v922
        %v1337 = vpack.c.b16 %v932, %v923
        %v1338 = vpack.c.b16 %v933, %v924
        %v1339 = vpack.c.b16 %v934, %v925
        %v1340 = vpack.c.b16 %v935, %v926
        %v1341 = vpack.c.b16 %v936, %v927
        %v1342 = vpack.c.b16 %v937, %v928
        %v1343 = vpack.c.b16 %v938, %v929
        %v1344 = vpack.c.b16 %v939, %v930
        %v1345 = vpack.c.b16 %v949, %v940
        %v1346 = vpack.c.b16 %v950, %v941
        %v1347 = vpack.c.b16 %v951, %v942
        %v1348 = vpack.c.b16 %v952, %v943
        %v1349 = vpack.c.b16 %v953, %v944
        %v1350 = vpack.c.b16 %v954, %v945
        %v1351 = vpack.c.b16 %v955, %v946
        %v1352 = vpack.c.b16 %v956, %v947
        %v1353 = vpack.c.b16 %v957, %v948
        %v1354 = vpack.c.b16 %v967, %v958
        %v1355 = vpack.c.b16 %v968, %v959
        %v1356 = vpack.c.b16 %v969, %v960
        %v1357 = vpack.c.b16 %v970, %v961
        %v1358 = vpack.c.b16 %v971, %v962
        %v1359 = vpack.c.b16 %v972, %v963
        %v1360 = vpack.c.b16 %v973, %v964
        %v1361 = vpack.c.b16 %v974, %v965
        %v1362 = vpack.c.b16 %v975, %v966
        %v1363 = vpack.c.b16 %v985, %v976
        %v1364 = vpack.c.b16 %v986, %v977
        %v1365 = vpack.c.b16 %v987, %v978
        %v1366 = vpack.c.b16 %v988, %v979
        %v1367 = vpack.c.b16 %v989, %v980
        %v1368 = vpack.c.b16 %v990, %v981
        %v1369 = vpack.c.b16 %v991, %v982
        %v1370 = vpack.c.b16 %v992, %v983
        %v1371 = vpack.c.b16 %v993, %v984
        %v1372 = vpack.c.b16 %v1003, %v994
        %v1373 = vpack.c.b16 %v1004, %v995
        %v1374 = vpack.c.b16 %v1005, %v996
        %v1375 = vpack.c.b16 %v1006, %v997
        %v1376 = vpack.c.b16 %v1007, %v998
        %v1377 = vpack.c.b16 %v1008, %v999
        %v1378 = vpack.c.b16 %v1009, %v1000
        %v1379 = vpack.c.b16 %v1010, %v1001
        %v1380 = vpack.c.b16 %v1011, %v1002
        %v1381 = vpack.c.b16 %v1021, %v1012
        %v1382 = vpack.c.b16 %v1022, %v1013
        %v1383 = vpack.c.b16 %v1023, %v1014
        %v1384 = vpack.c.b16 %v1024, %v1015
        %v1385 = vpack.c.b16 %v1025, %v1016
        %v1386 = vpack.c.b16 %v1026, %v1017
        %v1387 = vpack.c.b16 %v1027, %v1018
        %v1388 = vpack.c.b16 %v1028, %v1019
        %v1389 = vpack.c.b16 %v1029, %v1020
        %v1390 = vpack.c.b16 %v1039, %v1030
        %v1391 = vpack.c.b16 %v1040, %v1031
        %v1392 = vpack.c.b16 %v1041, %v1032
        %v1393 = vpack.c.b16 %v1042, %v1033
        %v1394 = vpack.c.b16 %v1043, %v1034
        %v1395 = vpack.c.b16 %v1044, %v1035
        %v1396 = vpack.c.b16 %v1045, %v1036
        %v1397 = vpack.c.b16 %v1046, %v1037
        %v1398 = vpack.c.b16 %v1047, %v1038
        %v1399 = vpack.c.b16 %v1057, %v1048
        %v1400 = vpack.c.b16 %v1058, %v1049
        %v1401 = vpack.c.b16 %v1059, %v1050
        %v1402 = vpack.c.b16 %v1060, %v1051
        %v1403 = vpack.c.b16 %v1061, %v1052
        %v1404 = vpack.c.b16 %v1062, %v1053
        %v1405 = vpack.c.b16 %v1063, %v1054
        %v1406 = vpack.c.b16 %v1064, %v1055
        %v1407 = vpack.c.b16 %v1065, %v1056
        %v1408 = vpack.c.b16 %v1075, %v1066
        %v1409 = vpack.c.b16 %v1076, %v1067
        %v1410 = vpack.c.b16 %v1077, %v1068
        %v1411 = vpack.c.b16 %v1078, %v1069
        %v1412 = vpack.c.b16 %v1079, %v1070
        %v1413 = vpack.c.b16 %v1080, %v1071
        %v1414 = vpack.c.b16 %v1081, %v1072
        %v1415 = vpack.c.b16 %v1082, %v1073
        %v1416 = vpack.c.b16 %v1083, %v1074
        %v1417 = vpack.c.b16 %v1093, %v1084
        %v1418 = vpack.c.b16 %v1094, %v1085
        %v1419 = vpack.c.b16 %v1095, %v1086
        %v1420 = vpack.c.b16 %v1096, %v1087
        %v1421 = vpack.c.b16 %v1097, %v1088
        %v1422 = vpack.c.b16 %v1098, %v1089
        %v1423 = vpack.c.b16 %v1099, %v1090
        %v1424 = vpack.c.b16 %v1100, %v1091
        %v1425 = vpack.c.b16 %v1101, %v1092
        %v1426 = vpack.c.b16 %v1111, %v1102
        %v1427 = vpack.c.b16 %v1112, %v1103
        %v1428 = vpack.c.b16 %v1113, %v1104
        %v1429 = vpack.c.b16 %v1114, %v1105
        %v1430 = vpack.c.b16 %v1115, %v1106
        %v1431 = vpack.c.b16 %v1116, %v1107
        %v1432 = vpack.c.b16 %v1117, %v1108
        %v1433 = vpack.c.b16 %v1118, %v1109
        %v1434 = vpack.c.b16 %v1119, %v1110
        %v1435 = vpack.c.b16 %v1129, %v1120
        %v1436 = vpack.c.b16 %v1130, %v1121
        %v1437 = vpack.c.b16 %v1131, %v1122
        %v1438 = vpack.c.b16 %v1132, %v1123
        %v1439 = vpack.c.b16 %v1133, %v1124
        %v1440 = vpack.c.b16 %v1134, %v1125
        %v1441 = vpack.c.b16 %v1135, %v1126
        %v1442 = vpack.c.b16 %v1136, %v1127
        %v1443 = vpack.c.b16 %v1137, %v1128
        %v1444 = vpack.c.b16 %v1147, %v1138
        %v1445 = vpack.c.b16 %v1148, %v1139
        %v1446 = vpack.c.b16 %v1149, %v1140
        %v1447 = vpack.c.b16 %v1150, %v1141
        %v1448 = vpack.c.b16 %v1151, %v1142
        %v1449 = vpack.c.b16 %v1152, %v1143
        %v1450 = vpack.c.b16 %v1153, %v1144
        %v1451 = vpack.c.b16 %v1154, %v1145
        %v1452 = vpack.c.b16 %v1155, %v1146
        %v1453 = vpack.c.b16 %v1165, %v1156
        %v1454 = vpack.c.b16 %v1166, %v1157
        %v1455 = vpack.c.b16 %v1167, %v1158
        %v1456 = vpack.c.b16 %v1168, %v1159
        %v1457 = vpack.c.b16 %v1169, %v1160
        %v1458 = vpack.c.b16 %v1170, %v1161
        %v1459 = vpack.c.b16 %v1171, %v1162
        %v1460 = vpack.c.b16 %v1172, %v1163
        %v1461 = vpack.c.b16 %v1173, %v1164
        %v1462 = vpack.c.b16 %v1183, %v1174
        %v1463 = vpack.c.b16 %v1184, %v1175
        %v1464 = vpack.c.b16 %v1185, %v1176
        %v1465 = vpack.c.b16 %v1186, %v1177
        %v1466 = vpack.c.b16 %v1187, %v1178
        %v1467 = vpack.c.b16 %v1188, %v1179
        %v1468 = vpack.c.b16 %v1189, %v1180
        %v1469 = vpack.c.b16 %v1190, %v1181
        %v1470 = vpack.c.b16 %v1191, %v1182
        %v1471 = vpack.c.b16 %v1201, %v1192
        %v1472 = vpack.c.b16 %v1202, %v1193
        %v1473 = vpack.c.b16 %v1203, %v1194
        %v1474 = vpack.c.b16 %v1204, %v1195
        %v1475 = vpack.c.b16 %v1205, %v1196
        %v1476 = vpack.c.b16 %v1206, %v1197
        %v1477 = vpack.c.b16 %v1207, %v1198
        %v1478 = vpack.c.b16 %v1208, %v1199
        %v1479 = vpack.c.b16 %v1209, %v1200
        %v1480 = vpack.c.b16 %v1219, %v1210
        %v1481 = vpack.c.b16 %v1220, %v1211
        %v1482 = vpack.c.b16 %v1221, %v1212
        %v1483 = vpack.c.b16 %v1222, %v1213
        %v1484 = vpack.c.b16 %v1223, %v1214
        %v1485 = vpack.c.b16 %v1224, %v1215
        %v1486 = vpack.c.b16 %v1225, %v1216
        %v1487 = vpack.c.b16 %v1226, %v1217
        %v1488 = vpack.c.b16 %v1227, %v1218
        %v1489 = vpack.c.b16 %v1237, %v1228
        %v1490 = vpack.c.b16 %v1238, %v1229
        %v1491 = vpack.c.b16 %v1239, %v1230
        %v1492 = vpack.c.b16 %v1240, %v1231
        %v1493 = vpack.c.b16 %v1241, %v1232
        %v1494 = vpack.c.b16 %v1242, %v1233
        %v1495 = vpack.c.b16 %v1243, %v1234
        %v1496 = vpack.c.b16 %v1244, %v1235
        %v1497 = vpack.c.b16 %v1245, %v1236
        %v1498 = vpack.c.b16 %v1255, %v1246
        %v1499 = vpack.c.b16 %v1256, %v1247
        %v1500 = vpack.c.b16 %v1257, %v1248
        %v1501 = vpack.c.b16 %v1258, %v1249
        %v1502 = vpack.c.b16 %v1259, %v1250
        %v1503 = vpack.c.b16 %v1260, %v1251
        %v1504 = vpack.c.b16 %v1261, %v1252
        %v1505 = vpack.c.b16 %v1262, %v1253
        %v1506 = vpack.c.b16 %v1263, %v1254
        %v1507 = vpack.c.b16 %v1273, %v1264
        %v1508 = vpack.c.b16 %v1274, %v1265
        %v1509 = vpack.c.b16 %v1275, %v1266
        %v1510 = vpack.c.b16 %v1276, %v1267
        %v1511 = vpack.c.b16 %v1277, %v1268
        %v1512 = vpack.c.b16 %v1278, %v1269
        %v1513 = vpack.c.b16 %v1279, %v1270
        %v1514 = vpack.c.b16 %v1280, %v1271
        %v1515 = vpack.c.b16 %v1281, %v1272
        %v1516 = vpack.c.b16 %v1291, %v1282
        %v1517 = vpack.c.b16 %v1292, %v1283
        %v1518 = vpack.c.b16 %v1293, %v1284
        %v1519 = vpack.c.b16 %v1294, %v1285
        %v1520 = vpack.c.b16 %v1295, %v1286
        %v1521 = vpack.c.b16 %v1296, %v1287
        %v1522 = vpack.c.b16 %v1297, %v1288
        %v1523 = vpack.c.b16 %v1298, %v1289
        %v1524 = vpack.c.b16 %v1299, %v1290
        %v1525 = vpack.c.b16 %v1309, %v1300
        %v1526 = vpack.c.b16 %v1310, %v1301
        %v1527 = vpack.c.b16 %v1311, %v1302
        %v1528 = vpack.c.b16 %v1312, %v1303
        %v1529 = vpack.c.b16 %v1313, %v1304
        %v1530 = vpack.c.b16 %v1314, %v1305
        %v1531 = vpack.c.b16 %v1315, %v1306
        %v1532 = vpack.c.b16 %v1316, %v1307
        %v1533 = vpack.c.b16 %v1317, %v1308
        %1750 = vmatprep.subr.bf16.mxu0 %v1382
        %1751 = vmatpush1.bf16.msra.mxu0 %v1381
        %1752 = vmatprep.subr.bf16.mxu0 %v1373
        %1753 = vmatpush1.bf16.msra.mxu0 %v1372
        %1754 = vmatprep.subr.bf16.mxu0 %v1364
        %1755 = vmatpush1.bf16.msra.mxu0 %v1363
        %1756 = vmatprep.subr.bf16.mxu0 %v1355
        %1757 = vmatpush1.bf16.msra.mxu0 %v1354
        %1758 = vmatprep.subr.bf16.mxu0 %v1346
        %1759 = vmatpush1.bf16.msra.mxu0 %v1345
        %1760 = vmatprep.subr.bf16.mxu0 %v1337
        %1761 = vmatpush1.bf16.msra.mxu0 %v1336
        %1762 = vmatprep.subr.bf16.mxu0 %v1328
        %1763 = vmatpush1.bf16.msra.mxu0 %v1327
        %1764 = vmatprep.subr.bf16.mxu0 %v1319
        %1765 = vmatpush1.bf16.msra.mxu0 %v1318
        %1766 = vmatprep.subr.bf16.mxu0 %v1454
        %1767 = vmatpush2.bf16.msra.mxu0 %v1453
        %1768 = vmatprep.subr.bf16.mxu0 %v1445
        %1769 = vmatpush2.bf16.msra.mxu0 %v1444
        %1770 = vmatprep.subr.bf16.mxu0 %v1436
        %1771 = vmatpush2.bf16.msra.mxu0 %v1435
        %1772 = vmatprep.subr.bf16.mxu0 %v1427
        %1773 = vmatpush2.bf16.msra.mxu0 %v1426
        %1774 = vmatprep.subr.bf16.mxu0 %v1418
        %1775 = vmatpush2.bf16.msra.mxu0 %v1417
        %1776 = vmatprep.subr.bf16.mxu0 %v1409
        %1777 = vmatpush2.bf16.msra.mxu0 %v1408
        %1778 = vmatprep.subr.bf16.mxu0 %v1400
        %1779 = vmatpush2.bf16.msra.mxu0 %v1399
        %1780 = vmatprep.subr.bf16.mxu0 %v1391
        %1781 = vmatpush2.bf16.msra.mxu0 %v1390
        %1782 = vmatprep.mubr.bf16.mxu0 %v599
        %1783 = vmatmul.mubr.bf16.gmra.mxu0 %v598
        %v1784 = vpop.f32.mrf.mxu0
        %v1785 = vadd.f32 0.0, %v1784
        %v1786 = vpop.f32.mrf.mxu0
        %v1787 = vadd.f32 0.0, %v1786
        %v1788 = vpop.f32.mrf.mxu0
        %v1789 = vadd.f32 0.0, %v1788
        %v1790 = vpop.f32.mrf.mxu0
        %v1791 = vadd.f32 0.0, %v1790
        %1792 = vmatprep.mubr.bf16.mxu0 %v602
        %1793 = vmatmul.mubr.bf16.gmra.mxu0 %v601
        %v1794 = vpop.f32.mrf.mxu0
        %v1795 = vadd.f32 0.0, %v1794
        %v1796 = vpop.f32.mrf.mxu0
        %v1797 = vadd.f32 0.0, %v1796
        %v1798 = vpop.f32.mrf.mxu0
        %v1799 = vadd.f32 0.0, %v1798
        %v1800 = vpop.f32.mrf.mxu0
        %v1801 = vadd.f32 0.0, %v1800
        %1802 = vmatprep.mubr.bf16.mxu0 %v605
        %1803 = vmatmul.mubr.bf16.gmra.mxu0 %v604
        %v1804 = vpop.f32.mrf.mxu0
        %v1805 = vadd.f32 0.0, %v1804
        %v1806 = vpop.f32.mrf.mxu0
        %v1807 = vadd.f32 0.0, %v1806
        %v1808 = vpop.f32.mrf.mxu0
        %v1809 = vadd.f32 0.0, %v1808
        %v1810 = vpop.f32.mrf.mxu0
        %v1811 = vadd.f32 0.0, %v1810
        %1812 = vmatprep.mubr.bf16.mxu0 %v608
        %1813 = vmatmul.mubr.bf16.gmra.mxu0 %v607
        %v1814 = vpop.f32.mrf.mxu0
        %v1815 = vadd.f32 0.0, %v1814
        %v1816 = vpop.f32.mrf.mxu0
        %v1817 = vadd.f32 0.0, %v1816
        %v1818 = vpop.f32.mrf.mxu0
        %v1819 = vadd.f32 0.0, %v1818
        %v1820 = vpop.f32.mrf.mxu0
        %v1821 = vadd.f32 0.0, %v1820
        %1822 = vmatprep.mubr.bf16.mxu0 %v611
        %1823 = vmatmul.mubr.bf16.gmra.mxu0 %v610
        %v1824 = vpop.f32.mrf.mxu0
        %v1825 = vadd.f32 0.0, %v1824
        %v1826 = vpop.f32.mrf.mxu0
        %v1827 = vadd.f32 0.0, %v1826
        %v1828 = vpop.f32.mrf.mxu0
        %v1829 = vadd.f32 0.0, %v1828
        %v1830 = vpop.f32.mrf.mxu0
        %v1831 = vadd.f32 0.0, %v1830
        %1832 = vmatprep.mubr.bf16.mxu0 %v614
        %1833 = vmatmul.mubr.bf16.gmra.mxu0 %v613
        %v1834 = vpop.f32.mrf.mxu0
        %v1835 = vadd.f32 0.0, %v1834
        %v1836 = vpop.f32.mrf.mxu0
        %v1837 = vadd.f32 0.0, %v1836
        %v1838 = vpop.f32.mrf.mxu0
        %v1839 = vadd.f32 0.0, %v1838
        %v1840 = vpop.f32.mrf.mxu0
        %v1841 = vadd.f32 0.0, %v1840
        %1842 = vmatprep.mubr.bf16.mxu0 %v617
        %1843 = vmatmul.mubr.bf16.gmra.mxu0 %v616
        %v1844 = vpop.f32.mrf.mxu0
        %v1845 = vadd.f32 0.0, %v1844
        %v1846 = vpop.f32.mrf.mxu0
        %v1847 = vadd.f32 0.0, %v1846
        %v1848 = vpop.f32.mrf.mxu0
        %v1849 = vadd.f32 0.0, %v1848
        %v1850 = vpop.f32.mrf.mxu0
        %v1851 = vadd.f32 0.0, %v1850
        %1852 = vmatprep.mubr.bf16.mxu0 %v620
        %1853 = vmatmul.mubr.bf16.gmra.mxu0 %v619
        %v1854 = vpop.f32.mrf.mxu0
        %v1855 = vadd.f32 0.0, %v1854
        %v1856 = vpop.f32.mrf.mxu0
        %v1857 = vadd.f32 0.0, %v1856
        %v1858 = vpop.f32.mrf.mxu0
        %v1859 = vadd.f32 0.0, %v1858
        %v1860 = vpop.f32.mrf.mxu0
        %v1861 = vadd.f32 0.0, %v1860
        %1862 = vdwg.mxu0
        %1863 = vmatprep.subr.bf16.mxu0 %v1526
        %1864 = vmatpush1.bf16.msra.mxu0 %v1525
        %1865 = vmatprep.subr.bf16.mxu0 %v1517
        %1866 = vmatpush1.bf16.msra.mxu0 %v1516
        %1867 = vmatprep.subr.bf16.mxu0 %v1508
        %1868 = vmatpush1.bf16.msra.mxu0 %v1507
        %1869 = vmatprep.subr.bf16.mxu0 %v1499
        %1870 = vmatpush1.bf16.msra.mxu0 %v1498
        %1871 = vmatprep.subr.bf16.mxu0 %v1490
        %1872 = vmatpush1.bf16.msra.mxu0 %v1489
        %1873 = vmatprep.subr.bf16.mxu0 %v1481
        %1874 = vmatpush1.bf16.msra.mxu0 %v1480
        %1875 = vmatprep.subr.bf16.mxu0 %v1472
        %1876 = vmatpush1.bf16.msra.mxu0 %v1471
        %1877 = vmatprep.subr.bf16.mxu0 %v1463
        %1878 = vmatpush1.bf16.msra.mxu0 %v1462
        %1879 = vmatprep.subr.bf16.mxu0 0
        %1880 = vmatpush2.bf16.msra.mxu0 0
        %1881 = vmatprep.subr.bf16.mxu0 0
        %1882 = vmatpush2.bf16.msra.mxu0 0
        %1883 = vmatprep.subr.bf16.mxu0 0
        %1884 = vmatpush2.bf16.msra.mxu0 0
        %1885 = vmatprep.subr.bf16.mxu0 0
        %1886 = vmatpush2.bf16.msra.mxu0 0
        %1887 = vmatprep.subr.bf16.mxu0 0
        %1888 = vmatpush2.bf16.msra.mxu0 0
        %1889 = vmatprep.subr.bf16.mxu0 0
        %1890 = vmatpush2.bf16.msra.mxu0 0
        %1891 = vmatprep.subr.bf16.mxu0 0
        %1892 = vmatpush2.bf16.msra.mxu0 0
        %1893 = vmatprep.subr.bf16.mxu0 0
        %1894 = vmatpush2.bf16.msra.mxu0 0
        %1895 = vmatprep.mubr.bf16.mxu0 0
        %1896 = vmatmul.mubr.bf16.gmra.mxu0 %v600
        %v1897 = vpop.f32.mrf.mxu0
        %v1898 = vadd.f32 %v1785, %v1897
        %v1899 = vpop.f32.mrf.mxu0
        %v1900 = vadd.f32 %v1787, %v1899
        %v1901 = vpop.f32.mrf.mxu0
        %v1902 = vadd.f32 %v1789, %v1901
        %v1903 = vpop.f32.mrf.mxu0
        %v1904 = vadd.f32 %v1791, %v1903
        %1905 = vmatprep.mubr.bf16.mxu0 0
        %1906 = vmatmul.mubr.bf16.gmra.mxu0 %v603
        %v1907 = vpop.f32.mrf.mxu0
        %v1908 = vadd.f32 %v1795, %v1907
        %v1909 = vpop.f32.mrf.mxu0
        %v1910 = vadd.f32 %v1797, %v1909
        %v1911 = vpop.f32.mrf.mxu0
        %v1912 = vadd.f32 %v1799, %v1911
        %v1913 = vpop.f32.mrf.mxu0
        %v1914 = vadd.f32 %v1801, %v1913
        %1915 = vmatprep.mubr.bf16.mxu0 0
        %1916 = vmatmul.mubr.bf16.gmra.mxu0 %v606
        %v1917 = vpop.f32.mrf.mxu0
        %v1918 = vadd.f32 %v1805, %v1917
        %v1919 = vpop.f32.mrf.mxu0
        %v1920 = vadd.f32 %v1807, %v1919
        %v1921 = vpop.f32.mrf.mxu0
        %v1922 = vadd.f32 %v1809, %v1921
        %v1923 = vpop.f32.mrf.mxu0
        %v1924 = vadd.f32 %v1811, %v1923
        %1925 = vmatprep.mubr.bf16.mxu0 0
        %1926 = vmatmul.mubr.bf16.gmra.mxu0 %v609
        %v1927 = vpop.f32.mrf.mxu0
        %v1928 = vadd.f32 %v1815, %v1927
        %v1929 = vpop.f32.mrf.mxu0
        %v1930 = vadd.f32 %v1817, %v1929
        %v1931 = vpop.f32.mrf.mxu0
        %v1932 = vadd.f32 %v1819, %v1931
        %v1933 = vpop.f32.mrf.mxu0
        %v1934 = vadd.f32 %v1821, %v1933
        %1935 = vmatprep.mubr.bf16.mxu0 0
        %1936 = vmatmul.mubr.bf16.gmra.mxu0 %v612
        %v1937 = vpop.f32.mrf.mxu0
        %v1938 = vadd.f32 %v1825, %v1937
        %v1939 = vpop.f32.mrf.mxu0
        %v1940 = vadd.f32 %v1827, %v1939
        %v1941 = vpop.f32.mrf.mxu0
        %v1942 = vadd.f32 %v1829, %v1941
        %v1943 = vpop.f32.mrf.mxu0
        %v1944 = vadd.f32 %v1831, %v1943
        %1945 = vmatprep.mubr.bf16.mxu0 0
        %1946 = vmatmul.mubr.bf16.gmra.mxu0 %v615
        %v1947 = vpop.f32.mrf.mxu0
        %v1948 = vadd.f32 %v1835, %v1947
        %v1949 = vpop.f32.mrf.mxu0
        %v1950 = vadd.f32 %v1837, %v1949
        %v1951 = vpop.f32.mrf.mxu0
        %v1952 = vadd.f32 %v1839, %v1951
        %v1953 = vpop.f32.mrf.mxu0
        %v1954 = vadd.f32 %v1841, %v1953
        %1955 = vmatprep.mubr.bf16.mxu0 0
        %1956 = vmatmul.mubr.bf16.gmra.mxu0 %v618
        %v1957 = vpop.f32.mrf.mxu0
        %v1958 = vadd.f32 %v1845, %v1957
        %v1959 = vpop.f32.mrf.mxu0
        %v1960 = vadd.f32 %v1847, %v1959
        %v1961 = vpop.f32.mrf.mxu0
        %v1962 = vadd.f32 %v1849, %v1961
        %v1963 = vpop.f32.mrf.mxu0
        %v1964 = vadd.f32 %v1851, %v1963
        %1965 = vmatprep.mubr.bf16.mxu0 0
        %1966 = vmatmul.mubr.bf16.gmra.mxu0 %v621
        %v1967 = vpop.f32.mrf.mxu0
        %v1968 = vadd.f32 %v1855, %v1967
        %v1969 = vpop.f32.mrf.mxu0
        %v1970 = vadd.f32 %v1857, %v1969
        %v1971 = vpop.f32.mrf.mxu0
        %v1972 = vadd.f32 %v1859, %v1971
        %v1973 = vpop.f32.mrf.mxu0
        %v1974 = vadd.f32 %v1861, %v1973
        %1975 = vdwg.mxu0
        %1976 = vmatprep.subr.bf16.mxu0 %v1384
        %1977 = vmatpush1.bf16.msra.mxu0 %v1383
        %1978 = vmatprep.subr.bf16.mxu0 %v1375
        %1979 = vmatpush1.bf16.msra.mxu0 %v1374
        %1980 = vmatprep.subr.bf16.mxu0 %v1366
        %1981 = vmatpush1.bf16.msra.mxu0 %v1365
        %1982 = vmatprep.subr.bf16.mxu0 %v1357
        %1983 = vmatpush1.bf16.msra.mxu0 %v1356
        %1984 = vmatprep.subr.bf16.mxu0 %v1348
        %1985 = vmatpush1.bf16.msra.mxu0 %v1347
        %1986 = vmatprep.subr.bf16.mxu0 %v1339
        %1987 = vmatpush1.bf16.msra.mxu0 %v1338
        %1988 = vmatprep.subr.bf16.mxu0 %v1330
        %1989 = vmatpush1.bf16.msra.mxu0 %v1329
        %1990 = vmatprep.subr.bf16.mxu0 %v1321
        %1991 = vmatpush1.bf16.msra.mxu0 %v1320
        %1992 = vmatprep.subr.bf16.mxu0 %v1456
        %1993 = vmatpush2.bf16.msra.mxu0 %v1455
        %1994 = vmatprep.subr.bf16.mxu0 %v1447
        %1995 = vmatpush2.bf16.msra.mxu0 %v1446
        %1996 = vmatprep.subr.bf16.mxu0 %v1438
        %1997 = vmatpush2.bf16.msra.mxu0 %v1437
        %1998 = vmatprep.subr.bf16.mxu0 %v1429
        %1999 = vmatpush2.bf16.msra.mxu0 %v1428
        %2000 = vmatprep.subr.bf16.mxu0 %v1420
        %2001 = vmatpush2.bf16.msra.mxu0 %v1419
        %2002 = vmatprep.subr.bf16.mxu0 %v1411
        %2003 = vmatpush2.bf16.msra.mxu0 %v1410
        %2004 = vmatprep.subr.bf16.mxu0 %v1402
        %2005 = vmatpush2.bf16.msra.mxu0 %v1401
        %2006 = vmatprep.subr.bf16.mxu0 %v1393
        %2007 = vmatpush2.bf16.msra.mxu0 %v1392
        %2008 = vmatprep.mubr.bf16.mxu0 %v599
        %2009 = vmatmul.mubr.bf16.gmra.mxu0 %v598
        %v2010 = vpop.f32.mrf.mxu0
        %v2011 = vadd.f32 0.0, %v2010
        %v2012 = vpop.f32.mrf.mxu0
        %v2013 = vadd.f32 0.0, %v2012
        %v2014 = vpop.f32.mrf.mxu0
        %v2015 = vadd.f32 0.0, %v2014
        %v2016 = vpop.f32.mrf.mxu0
        %v2017 = vadd.f32 0.0, %v2016
        %2018 = vmatprep.mubr.bf16.mxu0 %v602
        %2019 = vmatmul.mubr.bf16.gmra.mxu0 %v601
        %v2020 = vpop.f32.mrf.mxu0
        %v2021 = vadd.f32 0.0, %v2020
        %v2022 = vpop.f32.mrf.mxu0
        %v2023 = vadd.f32 0.0, %v2022
        %v2024 = vpop.f32.mrf.mxu0
        %v2025 = vadd.f32 0.0, %v2024
        %v2026 = vpop.f32.mrf.mxu0
        %v2027 = vadd.f32 0.0, %v2026
        %2028 = vmatprep.mubr.bf16.mxu0 %v605
        %2029 = vmatmul.mubr.bf16.gmra.mxu0 %v604
        %v2030 = vpop.f32.mrf.mxu0
        %v2031 = vadd.f32 0.0, %v2030
        %v2032 = vpop.f32.mrf.mxu0
        %v2033 = vadd.f32 0.0, %v2032
        %v2034 = vpop.f32.mrf.mxu0
        %v2035 = vadd.f32 0.0, %v2034
        %v2036 = vpop.f32.mrf.mxu0
        %v2037 = vadd.f32 0.0, %v2036
        %2038 = vmatprep.mubr.bf16.mxu0 %v608
        %2039 = vmatmul.mubr.bf16.gmra.mxu0 %v607
        %v2040 = vpop.f32.mrf.mxu0
        %v2041 = vadd.f32 0.0, %v2040
        %v2042 = vpop.f32.mrf.mxu0
        %v2043 = vadd.f32 0.0, %v2042
        %v2044 = vpop.f32.mrf.mxu0
        %v2045 = vadd.f32 0.0, %v2044
        %v2046 = vpop.f32.mrf.mxu0
        %v2047 = vadd.f32 0.0, %v2046
        %2048 = vmatprep.mubr.bf16.mxu0 %v611
        %2049 = vmatmul.mubr.bf16.gmra.mxu0 %v610
        %v2050 = vpop.f32.mrf.mxu0
        %v2051 = vadd.f32 0.0, %v2050
        %v2052 = vpop.f32.mrf.mxu0
        %v2053 = vadd.f32 0.0, %v2052
        %v2054 = vpop.f32.mrf.mxu0
        %v2055 = vadd.f32 0.0, %v2054
        %v2056 = vpop.f32.mrf.mxu0
        %v2057 = vadd.f32 0.0, %v2056
        %2058 = vmatprep.mubr.bf16.mxu0 %v614
        %2059 = vmatmul.mubr.bf16.gmra.mxu0 %v613
        %v2060 = vpop.f32.mrf.mxu0
        %v2061 = vadd.f32 0.0, %v2060
        %v2062 = vpop.f32.mrf.mxu0
        %v2063 = vadd.f32 0.0, %v2062
        %v2064 = vpop.f32.mrf.mxu0
        %v2065 = vadd.f32 0.0, %v2064
        %v2066 = vpop.f32.mrf.mxu0
        %v2067 = vadd.f32 0.0, %v2066
        %2068 = vmatprep.mubr.bf16.mxu0 %v617
        %2069 = vmatmul.mubr.bf16.gmra.mxu0 %v616
        %v2070 = vpop.f32.mrf.mxu0
        %v2071 = vadd.f32 0.0, %v2070
        %v2072 = vpop.f32.mrf.mxu0
        %v2073 = vadd.f32 0.0, %v2072
        %v2074 = vpop.f32.mrf.mxu0
        %v2075 = vadd.f32 0.0, %v2074
        %v2076 = vpop.f32.mrf.mxu0
        %v2077 = vadd.f32 0.0, %v2076
        %2078 = vmatprep.mubr.bf16.mxu0 %v620
        %2079 = vmatmul.mubr.bf16.gmra.mxu0 %v619
        %v2080 = vpop.f32.mrf.mxu0
        %v2081 = vadd.f32 0.0, %v2080
        %v2082 = vpop.f32.mrf.mxu0
        %v2083 = vadd.f32 0.0, %v2082
        %v2084 = vpop.f32.mrf.mxu0
        %v2085 = vadd.f32 0.0, %v2084
        %v2086 = vpop.f32.mrf.mxu0
        %v2087 = vadd.f32 0.0, %v2086
        %2088 = vdwg.mxu0
        %2089 = vmatprep.subr.bf16.mxu0 %v1528
        %2090 = vmatpush1.bf16.msra.mxu0 %v1527
        %2091 = vmatprep.subr.bf16.mxu0 %v1519
        %2092 = vmatpush1.bf16.msra.mxu0 %v1518
        %2093 = vmatprep.subr.bf16.mxu0 %v1510
        %2094 = vmatpush1.bf16.msra.mxu0 %v1509
        %2095 = vmatprep.subr.bf16.mxu0 %v1501
        %2096 = vmatpush1.bf16.msra.mxu0 %v1500
        %2097 = vmatprep.subr.bf16.mxu0 %v1492
        %2098 = vmatpush1.bf16.msra.mxu0 %v1491
        %2099 = vmatprep.subr.bf16.mxu0 %v1483
        %2100 = vmatpush1.bf16.msra.mxu0 %v1482
        %2101 = vmatprep.subr.bf16.mxu0 %v1474
        %2102 = vmatpush1.bf16.msra.mxu0 %v1473
        %2103 = vmatprep.subr.bf16.mxu0 %v1465
        %2104 = vmatpush1.bf16.msra.mxu0 %v1464
        %2105 = vmatprep.subr.bf16.mxu0 0
        %2106 = vmatpush2.bf16.msra.mxu0 0
        %2107 = vmatprep.subr.bf16.mxu0 0
        %2108 = vmatpush2.bf16.msra.mxu0 0
        %2109 = vmatprep.subr.bf16.mxu0 0
        %2110 = vmatpush2.bf16.msra.mxu0 0
        %2111 = vmatprep.subr.bf16.mxu0 0
        %2112 = vmatpush2.bf16.msra.mxu0 0
        %2113 = vmatprep.subr.bf16.mxu0 0
        %2114 = vmatpush2.bf16.msra.mxu0 0
        %2115 = vmatprep.subr.bf16.mxu0 0
        %2116 = vmatpush2.bf16.msra.mxu0 0
        %2117 = vmatprep.subr.bf16.mxu0 0
        %2118 = vmatpush2.bf16.msra.mxu0 0
        %2119 = vmatprep.subr.bf16.mxu0 0
        %2120 = vmatpush2.bf16.msra.mxu0 0
        %2121 = vmatprep.mubr.bf16.mxu0 0
        %2122 = vmatmul.mubr.bf16.gmra.mxu0 %v600
        %v2123 = vpop.f32.mrf.mxu0
        %v2124 = vadd.f32 %v2011, %v2123
        %v2125 = vpop.f32.mrf.mxu0
        %v2126 = vadd.f32 %v2013, %v2125
        %v2127 = vpop.f32.mrf.mxu0
        %v2128 = vadd.f32 %v2015, %v2127
        %v2129 = vpop.f32.mrf.mxu0
        %v2130 = vadd.f32 %v2017, %v2129
        %2131 = vmatprep.mubr.bf16.mxu0 0
        %2132 = vmatmul.mubr.bf16.gmra.mxu0 %v603
        %v2133 = vpop.f32.mrf.mxu0
        %v2134 = vadd.f32 %v2021, %v2133
        %v2135 = vpop.f32.mrf.mxu0
        %v2136 = vadd.f32 %v2023, %v2135
        %v2137 = vpop.f32.mrf.mxu0
        %v2138 = vadd.f32 %v2025, %v2137
        %v2139 = vpop.f32.mrf.mxu0
        %v2140 = vadd.f32 %v2027, %v2139
        %2141 = vmatprep.mubr.bf16.mxu0 0
        %2142 = vmatmul.mubr.bf16.gmra.mxu0 %v606
        %v2143 = vpop.f32.mrf.mxu0
        %v2144 = vadd.f32 %v2031, %v2143
        %v2145 = vpop.f32.mrf.mxu0
        %v2146 = vadd.f32 %v2033, %v2145
        %v2147 = vpop.f32.mrf.mxu0
        %v2148 = vadd.f32 %v2035, %v2147
        %v2149 = vpop.f32.mrf.mxu0
        %v2150 = vadd.f32 %v2037, %v2149
        %2151 = vmatprep.mubr.bf16.mxu0 0
        %2152 = vmatmul.mubr.bf16.gmra.mxu0 %v609
        %v2153 = vpop.f32.mrf.mxu0
        %v2154 = vadd.f32 %v2041, %v2153
        %v2155 = vpop.f32.mrf.mxu0
        %v2156 = vadd.f32 %v2043, %v2155
        %v2157 = vpop.f32.mrf.mxu0
        %v2158 = vadd.f32 %v2045, %v2157
        %v2159 = vpop.f32.mrf.mxu0
        %v2160 = vadd.f32 %v2047, %v2159
        %2161 = vmatprep.mubr.bf16.mxu0 0
        %2162 = vmatmul.mubr.bf16.gmra.mxu0 %v612
        %v2163 = vpop.f32.mrf.mxu0
        %v2164 = vadd.f32 %v2051, %v2163
        %v2165 = vpop.f32.mrf.mxu0
        %v2166 = vadd.f32 %v2053, %v2165
        %v2167 = vpop.f32.mrf.mxu0
        %v2168 = vadd.f32 %v2055, %v2167
        %v2169 = vpop.f32.mrf.mxu0
        %v2170 = vadd.f32 %v2057, %v2169
        %2171 = vmatprep.mubr.bf16.mxu0 0
        %2172 = vmatmul.mubr.bf16.gmra.mxu0 %v615
        %v2173 = vpop.f32.mrf.mxu0
        %v2174 = vadd.f32 %v2061, %v2173
        %v2175 = vpop.f32.mrf.mxu0
        %v2176 = vadd.f32 %v2063, %v2175
        %v2177 = vpop.f32.mrf.mxu0
        %v2178 = vadd.f32 %v2065, %v2177
        %v2179 = vpop.f32.mrf.mxu0
        %v2180 = vadd.f32 %v2067, %v2179
        %2181 = vmatprep.mubr.bf16.mxu0 0
        %2182 = vmatmul.mubr.bf16.gmra.mxu0 %v618
        %v2183 = vpop.f32.mrf.mxu0
        %v2184 = vadd.f32 %v2071, %v2183
        %v2185 = vpop.f32.mrf.mxu0
        %v2186 = vadd.f32 %v2073, %v2185
        %v2187 = vpop.f32.mrf.mxu0
        %v2188 = vadd.f32 %v2075, %v2187
        %v2189 = vpop.f32.mrf.mxu0
        %v2190 = vadd.f32 %v2077, %v2189
        %2191 = vmatprep.mubr.bf16.mxu0 0
        %2192 = vmatmul.mubr.bf16.gmra.mxu0 %v621
        %v2193 = vpop.f32.mrf.mxu0
        %v2194 = vadd.f32 %v2081, %v2193
        %v2195 = vpop.f32.mrf.mxu0
        %v2196 = vadd.f32 %v2083, %v2195
        %v2197 = vpop.f32.mrf.mxu0
        %v2198 = vadd.f32 %v2085, %v2197
        %v2199 = vpop.f32.mrf.mxu0
        %v2200 = vadd.f32 %v2087, %v2199
        %2201 = vdwg.mxu0
        %2202 = vmatprep.subr.bf16.mxu0 %v1386
        %2203 = vmatpush1.bf16.msra.mxu0 %v1385
        %2204 = vmatprep.subr.bf16.mxu0 %v1377
        %2205 = vmatpush1.bf16.msra.mxu0 %v1376
        %2206 = vmatprep.subr.bf16.mxu0 %v1368
        %2207 = vmatpush1.bf16.msra.mxu0 %v1367
        %2208 = vmatprep.subr.bf16.mxu0 %v1359
        %2209 = vmatpush1.bf16.msra.mxu0 %v1358
        %2210 = vmatprep.subr.bf16.mxu0 %v1350
        %2211 = vmatpush1.bf16.msra.mxu0 %v1349
        %2212 = vmatprep.subr.bf16.mxu0 %v1341
        %2213 = vmatpush1.bf16.msra.mxu0 %v1340
        %2214 = vmatprep.subr.bf16.mxu0 %v1332
        %2215 = vmatpush1.bf16.msra.mxu0 %v1331
        %2216 = vmatprep.subr.bf16.mxu0 %v1323
        %2217 = vmatpush1.bf16.msra.mxu0 %v1322
        %2218 = vmatprep.subr.bf16.mxu0 %v1458
        %2219 = vmatpush2.bf16.msra.mxu0 %v1457
        %2220 = vmatprep.subr.bf16.mxu0 %v1449
        %2221 = vmatpush2.bf16.msra.mxu0 %v1448
        %2222 = vmatprep.subr.bf16.mxu0 %v1440
        %2223 = vmatpush2.bf16.msra.mxu0 %v1439
        %2224 = vmatprep.subr.bf16.mxu0 %v1431
        %2225 = vmatpush2.bf16.msra.mxu0 %v1430
        %2226 = vmatprep.subr.bf16.mxu0 %v1422
        %2227 = vmatpush2.bf16.msra.mxu0 %v1421
        %2228 = vmatprep.subr.bf16.mxu0 %v1413
        %2229 = vmatpush2.bf16.msra.mxu0 %v1412
        %2230 = vmatprep.subr.bf16.mxu0 %v1404
        %2231 = vmatpush2.bf16.msra.mxu0 %v1403
        %2232 = vmatprep.subr.bf16.mxu0 %v1395
        %2233 = vmatpush2.bf16.msra.mxu0 %v1394
        %2234 = vmatprep.mubr.bf16.mxu0 %v599
        %2235 = vmatmul.mubr.bf16.gmra.mxu0 %v598
        %v2236 = vpop.f32.mrf.mxu0
        %v2237 = vadd.f32 0.0, %v2236
        %v2238 = vpop.f32.mrf.mxu0
        %v2239 = vadd.f32 0.0, %v2238
        %v2240 = vpop.f32.mrf.mxu0
        %v2241 = vadd.f32 0.0, %v2240
        %v2242 = vpop.f32.mrf.mxu0
        %v2243 = vadd.f32 0.0, %v2242
        %2244 = vmatprep.mubr.bf16.mxu0 %v602
        %2245 = vmatmul.mubr.bf16.gmra.mxu0 %v601
        %v2246 = vpop.f32.mrf.mxu0
        %v2247 = vadd.f32 0.0, %v2246
        %v2248 = vpop.f32.mrf.mxu0
        %v2249 = vadd.f32 0.0, %v2248
        %v2250 = vpop.f32.mrf.mxu0
        %v2251 = vadd.f32 0.0, %v2250
        %v2252 = vpop.f32.mrf.mxu0
        %v2253 = vadd.f32 0.0, %v2252
        %2254 = vmatprep.mubr.bf16.mxu0 %v605
        %2255 = vmatmul.mubr.bf16.gmra.mxu0 %v604
        %v2256 = vpop.f32.mrf.mxu0
        %v2257 = vadd.f32 0.0, %v2256
        %v2258 = vpop.f32.mrf.mxu0
        %v2259 = vadd.f32 0.0, %v2258
        %v2260 = vpop.f32.mrf.mxu0
        %v2261 = vadd.f32 0.0, %v2260
        %v2262 = vpop.f32.mrf.mxu0
        %v2263 = vadd.f32 0.0, %v2262
        %2264 = vmatprep.mubr.bf16.mxu0 %v608
        %2265 = vmatmul.mubr.bf16.gmra.mxu0 %v607
        %v2266 = vpop.f32.mrf.mxu0
        %v2267 = vadd.f32 0.0, %v2266
        %v2268 = vpop.f32.mrf.mxu0
        %v2269 = vadd.f32 0.0, %v2268
        %v2270 = vpop.f32.mrf.mxu0
        %v2271 = vadd.f32 0.0, %v2270
        %v2272 = vpop.f32.mrf.mxu0
        %v2273 = vadd.f32 0.0, %v2272
        %2274 = vmatprep.mubr.bf16.mxu0 %v611
        %2275 = vmatmul.mubr.bf16.gmra.mxu0 %v610
        %v2276 = vpop.f32.mrf.mxu0
        %v2277 = vadd.f32 0.0, %v2276
        %v2278 = vpop.f32.mrf.mxu0
        %v2279 = vadd.f32 0.0, %v2278
        %v2280 = vpop.f32.mrf.mxu0
        %v2281 = vadd.f32 0.0, %v2280
        %v2282 = vpop.f32.mrf.mxu0
        %v2283 = vadd.f32 0.0, %v2282
        %2284 = vmatprep.mubr.bf16.mxu0 %v614
        %2285 = vmatmul.mubr.bf16.gmra.mxu0 %v613
        %v2286 = vpop.f32.mrf.mxu0
        %v2287 = vadd.f32 0.0, %v2286
        %v2288 = vpop.f32.mrf.mxu0
        %v2289 = vadd.f32 0.0, %v2288
        %v2290 = vpop.f32.mrf.mxu0
        %v2291 = vadd.f32 0.0, %v2290
        %v2292 = vpop.f32.mrf.mxu0
        %v2293 = vadd.f32 0.0, %v2292
        %2294 = vmatprep.mubr.bf16.mxu0 %v617
        %2295 = vmatmul.mubr.bf16.gmra.mxu0 %v616
        %v2296 = vpop.f32.mrf.mxu0
        %v2297 = vadd.f32 0.0, %v2296
        %v2298 = vpop.f32.mrf.mxu0
        %v2299 = vadd.f32 0.0, %v2298
        %v2300 = vpop.f32.mrf.mxu0
        %v2301 = vadd.f32 0.0, %v2300
        %v2302 = vpop.f32.mrf.mxu0
        %v2303 = vadd.f32 0.0, %v2302
        %2304 = vmatprep.mubr.bf16.mxu0 %v620
        %2305 = vmatmul.mubr.bf16.gmra.mxu0 %v619
        %v2306 = vpop.f32.mrf.mxu0
        %v2307 = vadd.f32 0.0, %v2306
        %v2308 = vpop.f32.mrf.mxu0
        %v2309 = vadd.f32 0.0, %v2308
        %v2310 = vpop.f32.mrf.mxu0
        %v2311 = vadd.f32 0.0, %v2310
        %v2312 = vpop.f32.mrf.mxu0
        %v2313 = vadd.f32 0.0, %v2312
        %2314 = vdwg.mxu0
        %2315 = vmatprep.subr.bf16.mxu0 %v1530
        %2316 = vmatpush1.bf16.msra.mxu0 %v1529
        %2317 = vmatprep.subr.bf16.mxu0 %v1521
        %2318 = vmatpush1.bf16.msra.mxu0 %v1520
        %2319 = vmatprep.subr.bf16.mxu0 %v1512
        %2320 = vmatpush1.bf16.msra.mxu0 %v1511
        %2321 = vmatprep.subr.bf16.mxu0 %v1503
        %2322 = vmatpush1.bf16.msra.mxu0 %v1502
        %2323 = vmatprep.subr.bf16.mxu0 %v1494
        %2324 = vmatpush1.bf16.msra.mxu0 %v1493
        %2325 = vmatprep.subr.bf16.mxu0 %v1485
        %2326 = vmatpush1.bf16.msra.mxu0 %v1484
        %2327 = vmatprep.subr.bf16.mxu0 %v1476
        %2328 = vmatpush1.bf16.msra.mxu0 %v1475
        %2329 = vmatprep.subr.bf16.mxu0 %v1467
        %2330 = vmatpush1.bf16.msra.mxu0 %v1466
        %2331 = vmatprep.subr.bf16.mxu0 0
        %2332 = vmatpush2.bf16.msra.mxu0 0
        %2333 = vmatprep.subr.bf16.mxu0 0
        %2334 = vmatpush2.bf16.msra.mxu0 0
        %2335 = vmatprep.subr.bf16.mxu0 0
        %2336 = vmatpush2.bf16.msra.mxu0 0
        %2337 = vmatprep.subr.bf16.mxu0 0
        %2338 = vmatpush2.bf16.msra.mxu0 0
        %2339 = vmatprep.subr.bf16.mxu0 0
        %2340 = vmatpush2.bf16.msra.mxu0 0
        %2341 = vmatprep.subr.bf16.mxu0 0
        %2342 = vmatpush2.bf16.msra.mxu0 0
        %2343 = vmatprep.subr.bf16.mxu0 0
        %2344 = vmatpush2.bf16.msra.mxu0 0
        %2345 = vmatprep.subr.bf16.mxu0 0
        %2346 = vmatpush2.bf16.msra.mxu0 0
        %2347 = vmatprep.mubr.bf16.mxu0 0
        %2348 = vmatmul.mubr.bf16.gmra.mxu0 %v600
        %v2349 = vpop.f32.mrf.mxu0
        %v2350 = vadd.f32 %v2237, %v2349
        %v2351 = vpop.f32.mrf.mxu0
        %v2352 = vadd.f32 %v2239, %v2351
        %v2353 = vpop.f32.mrf.mxu0
        %v2354 = vadd.f32 %v2241, %v2353
        %v2355 = vpop.f32.mrf.mxu0
        %v2356 = vadd.f32 %v2243, %v2355
        %2357 = vmatprep.mubr.bf16.mxu0 0
        %2358 = vmatmul.mubr.bf16.gmra.mxu0 %v603
        %v2359 = vpop.f32.mrf.mxu0
        %v2360 = vadd.f32 %v2247, %v2359
        %v2361 = vpop.f32.mrf.mxu0
        %v2362 = vadd.f32 %v2249, %v2361
        %v2363 = vpop.f32.mrf.mxu0
        %v2364 = vadd.f32 %v2251, %v2363
        %v2365 = vpop.f32.mrf.mxu0
        %v2366 = vadd.f32 %v2253, %v2365
        %2367 = vmatprep.mubr.bf16.mxu0 0
        %2368 = vmatmul.mubr.bf16.gmra.mxu0 %v606
        %v2369 = vpop.f32.mrf.mxu0
        %v2370 = vadd.f32 %v2257, %v2369
        %v2371 = vpop.f32.mrf.mxu0
        %v2372 = vadd.f32 %v2259, %v2371
        %v2373 = vpop.f32.mrf.mxu0
        %v2374 = vadd.f32 %v2261, %v2373
        %v2375 = vpop.f32.mrf.mxu0
        %v2376 = vadd.f32 %v2263, %v2375
        %2377 = vmatprep.mubr.bf16.mxu0 0
        %2378 = vmatmul.mubr.bf16.gmra.mxu0 %v609
        %v2379 = vpop.f32.mrf.mxu0
        %v2380 = vadd.f32 %v2267, %v2379
        %v2381 = vpop.f32.mrf.mxu0
        %v2382 = vadd.f32 %v2269, %v2381
        %v2383 = vpop.f32.mrf.mxu0
        %v2384 = vadd.f32 %v2271, %v2383
        %v2385 = vpop.f32.mrf.mxu0
        %v2386 = vadd.f32 %v2273, %v2385
        %2387 = vmatprep.mubr.bf16.mxu0 0
        %2388 = vmatmul.mubr.bf16.gmra.mxu0 %v612
        %v2389 = vpop.f32.mrf.mxu0
        %v2390 = vadd.f32 %v2277, %v2389
        %v2391 = vpop.f32.mrf.mxu0
        %v2392 = vadd.f32 %v2279, %v2391
        %v2393 = vpop.f32.mrf.mxu0
        %v2394 = vadd.f32 %v2281, %v2393
        %v2395 = vpop.f32.mrf.mxu0
        %v2396 = vadd.f32 %v2283, %v2395
        %2397 = vmatprep.mubr.bf16.mxu0 0
        %2398 = vmatmul.mubr.bf16.gmra.mxu0 %v615
        %v2399 = vpop.f32.mrf.mxu0
        %v2400 = vadd.f32 %v2287, %v2399
        %v2401 = vpop.f32.mrf.mxu0
        %v2402 = vadd.f32 %v2289, %v2401
        %v2403 = vpop.f32.mrf.mxu0
        %v2404 = vadd.f32 %v2291, %v2403
        %v2405 = vpop.f32.mrf.mxu0
        %v2406 = vadd.f32 %v2293, %v2405
        %2407 = vmatprep.mubr.bf16.mxu0 0
        %2408 = vmatmul.mubr.bf16.gmra.mxu0 %v618
        %v2409 = vpop.f32.mrf.mxu0
        %v2410 = vadd.f32 %v2297, %v2409
        %v2411 = vpop.f32.mrf.mxu0
        %v2412 = vadd.f32 %v2299, %v2411
        %v2413 = vpop.f32.mrf.mxu0
        %v2414 = vadd.f32 %v2301, %v2413
        %v2415 = vpop.f32.mrf.mxu0
        %v2416 = vadd.f32 %v2303, %v2415
        %2417 = vmatprep.mubr.bf16.mxu0 0
        %2418 = vmatmul.mubr.bf16.gmra.mxu0 %v621
        %v2419 = vpop.f32.mrf.mxu0
        %v2420 = vadd.f32 %v2307, %v2419
        %v2421 = vpop.f32.mrf.mxu0
        %v2422 = vadd.f32 %v2309, %v2421
        %v2423 = vpop.f32.mrf.mxu0
        %v2424 = vadd.f32 %v2311, %v2423
        %v2425 = vpop.f32.mrf.mxu0
        %v2426 = vadd.f32 %v2313, %v2425
        %2427 = vdwg.mxu0
        %2428 = vmatprep.subr.bf16.mxu0 %v1388
        %2429 = vmatpush1.bf16.msra.mxu0 %v1387
        %2430 = vmatprep.subr.bf16.mxu0 %v1379
        %2431 = vmatpush1.bf16.msra.mxu0 %v1378
        %2432 = vmatprep.subr.bf16.mxu0 %v1370
        %2433 = vmatpush1.bf16.msra.mxu0 %v1369
        %2434 = vmatprep.subr.bf16.mxu0 %v1361
        %2435 = vmatpush1.bf16.msra.mxu0 %v1360
        %2436 = vmatprep.subr.bf16.mxu0 %v1352
        %2437 = vmatpush1.bf16.msra.mxu0 %v1351
        %2438 = vmatprep.subr.bf16.mxu0 %v1343
        %2439 = vmatpush1.bf16.msra.mxu0 %v1342
        %2440 = vmatprep.subr.bf16.mxu0 %v1334
        %2441 = vmatpush1.bf16.msra.mxu0 %v1333
        %2442 = vmatprep.subr.bf16.mxu0 %v1325
        %2443 = vmatpush1.bf16.msra.mxu0 %v1324
        %2444 = vmatprep.subr.bf16.mxu0 %v1460
        %2445 = vmatpush2.bf16.msra.mxu0 %v1459
        %2446 = vmatprep.subr.bf16.mxu0 %v1451
        %2447 = vmatpush2.bf16.msra.mxu0 %v1450
        %2448 = vmatprep.subr.bf16.mxu0 %v1442
        %2449 = vmatpush2.bf16.msra.mxu0 %v1441
        %2450 = vmatprep.subr.bf16.mxu0 %v1433
        %2451 = vmatpush2.bf16.msra.mxu0 %v1432
        %2452 = vmatprep.subr.bf16.mxu0 %v1424
        %2453 = vmatpush2.bf16.msra.mxu0 %v1423
        %2454 = vmatprep.subr.bf16.mxu0 %v1415
        %2455 = vmatpush2.bf16.msra.mxu0 %v1414
        %2456 = vmatprep.subr.bf16.mxu0 %v1406
        %2457 = vmatpush2.bf16.msra.mxu0 %v1405
        %2458 = vmatprep.subr.bf16.mxu0 %v1397
        %2459 = vmatpush2.bf16.msra.mxu0 %v1396
        %2460 = vmatprep.mubr.bf16.mxu0 %v599
        %2461 = vmatmul.mubr.bf16.gmra.mxu0 %v598
        %v2462 = vpop.f32.mrf.mxu0
        %v2463 = vadd.f32 0.0, %v2462
        %v2464 = vpop.f32.mrf.mxu0
        %v2465 = vadd.f32 0.0, %v2464
        %v2466 = vpop.f32.mrf.mxu0
        %v2467 = vadd.f32 0.0, %v2466
        %v2468 = vpop.f32.mrf.mxu0
        %v2469 = vadd.f32 0.0, %v2468
        %2470 = vmatprep.mubr.bf16.mxu0 %v602
        %2471 = vmatmul.mubr.bf16.gmra.mxu0 %v601
        %v2472 = vpop.f32.mrf.mxu0
        %v2473 = vadd.f32 0.0, %v2472
        %v2474 = vpop.f32.mrf.mxu0
        %v2475 = vadd.f32 0.0, %v2474
        %v2476 = vpop.f32.mrf.mxu0
        %v2477 = vadd.f32 0.0, %v2476
        %v2478 = vpop.f32.mrf.mxu0
        %v2479 = vadd.f32 0.0, %v2478
        %2480 = vmatprep.mubr.bf16.mxu0 %v605
        %2481 = vmatmul.mubr.bf16.gmra.mxu0 %v604
        %v2482 = vpop.f32.mrf.mxu0
        %v2483 = vadd.f32 0.0, %v2482
        %v2484 = vpop.f32.mrf.mxu0
        %v2485 = vadd.f32 0.0, %v2484
        %v2486 = vpop.f32.mrf.mxu0
        %v2487 = vadd.f32 0.0, %v2486
        %v2488 = vpop.f32.mrf.mxu0
        %v2489 = vadd.f32 0.0, %v2488
        %2490 = vmatprep.mubr.bf16.mxu0 %v608
        %2491 = vmatmul.mubr.bf16.gmra.mxu0 %v607
        %v2492 = vpop.f32.mrf.mxu0
        %v2493 = vadd.f32 0.0, %v2492
        %v2494 = vpop.f32.mrf.mxu0
        %v2495 = vadd.f32 0.0, %v2494
        %v2496 = vpop.f32.mrf.mxu0
        %v2497 = vadd.f32 0.0, %v2496
        %v2498 = vpop.f32.mrf.mxu0
        %v2499 = vadd.f32 0.0, %v2498
        %2500 = vmatprep.mubr.bf16.mxu0 %v611
        %2501 = vmatmul.mubr.bf16.gmra.mxu0 %v610
        %v2502 = vpop.f32.mrf.mxu0
        %v2503 = vadd.f32 0.0, %v2502
        %v2504 = vpop.f32.mrf.mxu0
        %v2505 = vadd.f32 0.0, %v2504
        %v2506 = vpop.f32.mrf.mxu0
        %v2507 = vadd.f32 0.0, %v2506
        %v2508 = vpop.f32.mrf.mxu0
        %v2509 = vadd.f32 0.0, %v2508
        %2510 = vmatprep.mubr.bf16.mxu0 %v614
        %2511 = vmatmul.mubr.bf16.gmra.mxu0 %v613
        %v2512 = vpop.f32.mrf.mxu0
        %v2513 = vadd.f32 0.0, %v2512
        %v2514 = vpop.f32.mrf.mxu0
        %v2515 = vadd.f32 0.0, %v2514
        %v2516 = vpop.f32.mrf.mxu0
        %v2517 = vadd.f32 0.0, %v2516
        %v2518 = vpop.f32.mrf.mxu0
        %v2519 = vadd.f32 0.0, %v2518
        %2520 = vmatprep.mubr.bf16.mxu0 %v617
        %2521 = vmatmul.mubr.bf16.gmra.mxu0 %v616
        %v2522 = vpop.f32.mrf.mxu0
        %v2523 = vadd.f32 0.0, %v2522
        %v2524 = vpop.f32.mrf.mxu0
        %v2525 = vadd.f32 0.0, %v2524
        %v2526 = vpop.f32.mrf.mxu0
        %v2527 = vadd.f32 0.0, %v2526
        %v2528 = vpop.f32.mrf.mxu0
        %v2529 = vadd.f32 0.0, %v2528
        %2530 = vmatprep.mubr.bf16.mxu0 %v620
        %2531 = vmatmul.mubr.bf16.gmra.mxu0 %v619
        %v2532 = vpop.f32.mrf.mxu0
        %v2533 = vadd.f32 0.0, %v2532
        %v2534 = vpop.f32.mrf.mxu0
        %v2535 = vadd.f32 0.0, %v2534
        %v2536 = vpop.f32.mrf.mxu0
        %v2537 = vadd.f32 0.0, %v2536
        %v2538 = vpop.f32.mrf.mxu0
        %v2539 = vadd.f32 0.0, %v2538
        %2540 = vdwg.mxu0
        %2541 = vmatprep.subr.bf16.mxu0 %v1532
        %2542 = vmatpush1.bf16.msra.mxu0 %v1531
        %2543 = vmatprep.subr.bf16.mxu0 %v1523
        %2544 = vmatpush1.bf16.msra.mxu0 %v1522
        %2545 = vmatprep.subr.bf16.mxu0 %v1514
        %2546 = vmatpush1.bf16.msra.mxu0 %v1513
        %2547 = vmatprep.subr.bf16.mxu0 %v1505
        %2548 = vmatpush1.bf16.msra.mxu0 %v1504
        %2549 = vmatprep.subr.bf16.mxu0 %v1496
        %2550 = vmatpush1.bf16.msra.mxu0 %v1495
        %2551 = vmatprep.subr.bf16.mxu0 %v1487
        %2552 = vmatpush1.bf16.msra.mxu0 %v1486
        %2553 = vmatprep.subr.bf16.mxu0 %v1478
        %2554 = vmatpush1.bf16.msra.mxu0 %v1477
        %2555 = vmatprep.subr.bf16.mxu0 %v1469
        %2556 = vmatpush1.bf16.msra.mxu0 %v1468
        %2557 = vmatprep.subr.bf16.mxu0 0
        %2558 = vmatpush2.bf16.msra.mxu0 0
        %2559 = vmatprep.subr.bf16.mxu0 0
        %2560 = vmatpush2.bf16.msra.mxu0 0
        %2561 = vmatprep.subr.bf16.mxu0 0
        %2562 = vmatpush2.bf16.msra.mxu0 0
        %2563 = vmatprep.subr.bf16.mxu0 0
        %2564 = vmatpush2.bf16.msra.mxu0 0
        %2565 = vmatprep.subr.bf16.mxu0 0
        %2566 = vmatpush2.bf16.msra.mxu0 0
        %2567 = vmatprep.subr.bf16.mxu0 0
        %2568 = vmatpush2.bf16.msra.mxu0 0
        %2569 = vmatprep.subr.bf16.mxu0 0
        %2570 = vmatpush2.bf16.msra.mxu0 0
        %2571 = vmatprep.subr.bf16.mxu0 0
        %2572 = vmatpush2.bf16.msra.mxu0 0
        %2573 = vmatprep.mubr.bf16.mxu0 0
        %2574 = vmatmul.mubr.bf16.gmra.mxu0 %v600
        %v2575 = vpop.f32.mrf.mxu0
        %v2576 = vadd.f32 %v2463, %v2575
        %v2577 = vpop.f32.mrf.mxu0
        %v2578 = vadd.f32 %v2465, %v2577
        %v2579 = vpop.f32.mrf.mxu0
        %v2580 = vadd.f32 %v2467, %v2579
        %v2581 = vpop.f32.mrf.mxu0
        %v2582 = vadd.f32 %v2469, %v2581
        %2583 = vmatprep.mubr.bf16.mxu0 0
        %2584 = vmatmul.mubr.bf16.gmra.mxu0 %v603
        %v2585 = vpop.f32.mrf.mxu0
        %v2586 = vadd.f32 %v2473, %v2585
        %v2587 = vpop.f32.mrf.mxu0
        %v2588 = vadd.f32 %v2475, %v2587
        %v2589 = vpop.f32.mrf.mxu0
        %v2590 = vadd.f32 %v2477, %v2589
        %v2591 = vpop.f32.mrf.mxu0
        %v2592 = vadd.f32 %v2479, %v2591
        %2593 = vmatprep.mubr.bf16.mxu0 0
        %2594 = vmatmul.mubr.bf16.gmra.mxu0 %v606
        %v2595 = vpop.f32.mrf.mxu0
        %v2596 = vadd.f32 %v2483, %v2595
        %v2597 = vpop.f32.mrf.mxu0
        %v2598 = vadd.f32 %v2485, %v2597
        %v2599 = vpop.f32.mrf.mxu0
        %v2600 = vadd.f32 %v2487, %v2599
        %v2601 = vpop.f32.mrf.mxu0
        %v2602 = vadd.f32 %v2489, %v2601
        %2603 = vmatprep.mubr.bf16.mxu0 0
        %2604 = vmatmul.mubr.bf16.gmra.mxu0 %v609
        %v2605 = vpop.f32.mrf.mxu0
        %v2606 = vadd.f32 %v2493, %v2605
        %v2607 = vpop.f32.mrf.mxu0
        %v2608 = vadd.f32 %v2495, %v2607
        %v2609 = vpop.f32.mrf.mxu0
        %v2610 = vadd.f32 %v2497, %v2609
        %v2611 = vpop.f32.mrf.mxu0
        %v2612 = vadd.f32 %v2499, %v2611
        %2613 = vmatprep.mubr.bf16.mxu0 0
        %2614 = vmatmul.mubr.bf16.gmra.mxu0 %v612
        %v2615 = vpop.f32.mrf.mxu0
        %v2616 = vadd.f32 %v2503, %v2615
        %v2617 = vpop.f32.mrf.mxu0
        %v2618 = vadd.f32 %v2505, %v2617
        %v2619 = vpop.f32.mrf.mxu0
        %v2620 = vadd.f32 %v2507, %v2619
        %v2621 = vpop.f32.mrf.mxu0
        %v2622 = vadd.f32 %v2509, %v2621
        %2623 = vmatprep.mubr.bf16.mxu0 0
        %2624 = vmatmul.mubr.bf16.gmra.mxu0 %v615
        %v2625 = vpop.f32.mrf.mxu0
        %v2626 = vadd.f32 %v2513, %v2625
        %v2627 = vpop.f32.mrf.mxu0
        %v2628 = vadd.f32 %v2515, %v2627
        %v2629 = vpop.f32.mrf.mxu0
        %v2630 = vadd.f32 %v2517, %v2629
        %v2631 = vpop.f32.mrf.mxu0
        %v2632 = vadd.f32 %v2519, %v2631
        %2633 = vmatprep.mubr.bf16.mxu0 0
        %2634 = vmatmul.mubr.bf16.gmra.mxu0 %v618
        %v2635 = vpop.f32.mrf.mxu0
        %v2636 = vadd.f32 %v2523, %v2635
        %v2637 = vpop.f32.mrf.mxu0
        %v2638 = vadd.f32 %v2525, %v2637
        %v2639 = vpop.f32.mrf.mxu0
        %v2640 = vadd.f32 %v2527, %v2639
        %v2641 = vpop.f32.mrf.mxu0
        %v2642 = vadd.f32 %v2529, %v2641
        %2643 = vmatprep.mubr.bf16.mxu0 0
        %2644 = vmatmul.mubr.bf16.gmra.mxu0 %v621
        %v2645 = vpop.f32.mrf.mxu0
        %v2646 = vadd.f32 %v2533, %v2645
        %v2647 = vpop.f32.mrf.mxu0
        %v2648 = vadd.f32 %v2535, %v2647
        %v2649 = vpop.f32.mrf.mxu0
        %v2650 = vadd.f32 %v2537, %v2649
        %v2651 = vpop.f32.mrf.mxu0
        %v2652 = vadd.f32 %v2539, %v2651
        %2653 = vdwg.mxu0
        %2654 = vmatprep.subr.bf16.mxu0 0
        %2655 = vmatpush1.bf16.msra.mxu0 %v1389
        %2656 = vmatprep.subr.bf16.mxu0 0
        %2657 = vmatpush1.bf16.msra.mxu0 %v1380
        %2658 = vmatprep.subr.bf16.mxu0 0
        %2659 = vmatpush1.bf16.msra.mxu0 %v1371
        %2660 = vmatprep.subr.bf16.mxu0 0
        %2661 = vmatpush1.bf16.msra.mxu0 %v1362
        %2662 = vmatprep.subr.bf16.mxu0 0
        %2663 = vmatpush1.bf16.msra.mxu0 %v1353
        %2664 = vmatprep.subr.bf16.mxu0 0
        %2665 = vmatpush1.bf16.msra.mxu0 %v1344
        %2666 = vmatprep.subr.bf16.mxu0 0
        %2667 = vmatpush1.bf16.msra.mxu0 %v1335
        %2668 = vmatprep.subr.bf16.mxu0 0
        %2669 = vmatpush1.bf16.msra.mxu0 %v1326
        %2670 = vmatprep.subr.bf16.mxu0 0
        %2671 = vmatpush2.bf16.msra.mxu0 %v1461
        %2672 = vmatprep.subr.bf16.mxu0 0
        %2673 = vmatpush2.bf16.msra.mxu0 %v1452
        %2674 = vmatprep.subr.bf16.mxu0 0
        %2675 = vmatpush2.bf16.msra.mxu0 %v1443
        %2676 = vmatprep.subr.bf16.mxu0 0
        %2677 = vmatpush2.bf16.msra.mxu0 %v1434
        %2678 = vmatprep.subr.bf16.mxu0 0
        %2679 = vmatpush2.bf16.msra.mxu0 %v1425
        %2680 = vmatprep.subr.bf16.mxu0 0
        %2681 = vmatpush2.bf16.msra.mxu0 %v1416
        %2682 = vmatprep.subr.bf16.mxu0 0
        %2683 = vmatpush2.bf16.msra.mxu0 %v1407
        %2684 = vmatprep.subr.bf16.mxu0 0
        %2685 = vmatpush2.bf16.msra.mxu0 %v1398
        %2686 = vmatprep.mubr.bf16.mxu0 %v599
        %2687 = vmatmul.mubr.bf16.gmra.mxu0 %v598
        %v2688 = vpop.f32.mrf.mxu0
        %v2689 = vadd.f32 0.0, %v2688
        %v2690 = vpop.f32.mrf.mxu0
        %v2691 = vpop.f32.mrf.mxu0
        %v2692 = vadd.f32 0.0, %v2691
        %v2693 = vpop.f32.mrf.mxu0
        %2694 = vmatprep.mubr.bf16.mxu0 %v602
        %2695 = vmatmul.mubr.bf16.gmra.mxu0 %v601
        %v2696 = vpop.f32.mrf.mxu0
        %v2697 = vadd.f32 0.0, %v2696
        %v2698 = vpop.f32.mrf.mxu0
        %v2699 = vpop.f32.mrf.mxu0
        %v2700 = vadd.f32 0.0, %v2699
        %v2701 = vpop.f32.mrf.mxu0
        %2702 = vmatprep.mubr.bf16.mxu0 %v605
        %2703 = vmatmul.mubr.bf16.gmra.mxu0 %v604
        %v2704 = vpop.f32.mrf.mxu0
        %v2705 = vadd.f32 0.0, %v2704
        %v2706 = vpop.f32.mrf.mxu0
        %v2707 = vpop.f32.mrf.mxu0
        %v2708 = vadd.f32 0.0, %v2707
        %v2709 = vpop.f32.mrf.mxu0
        %2710 = vmatprep.mubr.bf16.mxu0 %v608
        %2711 = vmatmul.mubr.bf16.gmra.mxu0 %v607
        %v2712 = vpop.f32.mrf.mxu0
        %v2713 = vadd.f32 0.0, %v2712
        %v2714 = vpop.f32.mrf.mxu0
        %v2715 = vpop.f32.mrf.mxu0
        %v2716 = vadd.f32 0.0, %v2715
        %v2717 = vpop.f32.mrf.mxu0
        %2718 = vmatprep.mubr.bf16.mxu0 %v611
        %2719 = vmatmul.mubr.bf16.gmra.mxu0 %v610
        %v2720 = vpop.f32.mrf.mxu0
        %v2721 = vadd.f32 0.0, %v2720
        %v2722 = vpop.f32.mrf.mxu0
        %v2723 = vpop.f32.mrf.mxu0
        %v2724 = vadd.f32 0.0, %v2723
        %v2725 = vpop.f32.mrf.mxu0
        %2726 = vmatprep.mubr.bf16.mxu0 %v614
        %2727 = vmatmul.mubr.bf16.gmra.mxu0 %v613
        %v2728 = vpop.f32.mrf.mxu0
        %v2729 = vadd.f32 0.0, %v2728
        %v2730 = vpop.f32.mrf.mxu0
        %v2731 = vpop.f32.mrf.mxu0
        %v2732 = vadd.f32 0.0, %v2731
        %v2733 = vpop.f32.mrf.mxu0
        %2734 = vmatprep.mubr.bf16.mxu0 %v617
        %2735 = vmatmul.mubr.bf16.gmra.mxu0 %v616
        %v2736 = vpop.f32.mrf.mxu0
        %v2737 = vadd.f32 0.0, %v2736
        %v2738 = vpop.f32.mrf.mxu0
        %v2739 = vpop.f32.mrf.mxu0
        %v2740 = vadd.f32 0.0, %v2739
        %v2741 = vpop.f32.mrf.mxu0
        %2742 = vmatprep.mubr.bf16.mxu0 %v620
        %2743 = vmatmul.mubr.bf16.gmra.mxu0 %v619
        %v2744 = vpop.f32.mrf.mxu0
        %v2745 = vadd.f32 0.0, %v2744
        %v2746 = vpop.f32.mrf.mxu0
        %v2747 = vpop.f32.mrf.mxu0
        %v2748 = vadd.f32 0.0, %v2747
        %v2749 = vpop.f32.mrf.mxu0
        %2750 = vdwg.mxu0
        %2751 = vmatprep.subr.bf16.mxu0 0
        %2752 = vmatpush1.bf16.msra.mxu0 %v1533
        %2753 = vmatprep.subr.bf16.mxu0 0
        %2754 = vmatpush1.bf16.msra.mxu0 %v1524
        %2755 = vmatprep.subr.bf16.mxu0 0
        %2756 = vmatpush1.bf16.msra.mxu0 %v1515
        %2757 = vmatprep.subr.bf16.mxu0 0
        %2758 = vmatpush1.bf16.msra.mxu0 %v1506
        %2759 = vmatprep.subr.bf16.mxu0 0
        %2760 = vmatpush1.bf16.msra.mxu0 %v1497
        %2761 = vmatprep.subr.bf16.mxu0 0
        %2762 = vmatpush1.bf16.msra.mxu0 %v1488
        %2763 = vmatprep.subr.bf16.mxu0 0
        %2764 = vmatpush1.bf16.msra.mxu0 %v1479
        %2765 = vmatprep.subr.bf16.mxu0 0
        %2766 = vmatpush1.bf16.msra.mxu0 %v1470
        %2767 = vmatprep.subr.bf16.mxu0 0
        %2768 = vmatpush2.bf16.msra.mxu0 0
        %2769 = vmatprep.subr.bf16.mxu0 0
        %2770 = vmatpush2.bf16.msra.mxu0 0
        %2771 = vmatprep.subr.bf16.mxu0 0
        %2772 = vmatpush2.bf16.msra.mxu0 0
        %2773 = vmatprep.subr.bf16.mxu0 0
        %2774 = vmatpush2.bf16.msra.mxu0 0
        %2775 = vmatprep.subr.bf16.mxu0 0
        %2776 = vmatpush2.bf16.msra.mxu0 0
        %2777 = vmatprep.subr.bf16.mxu0 0
        %2778 = vmatpush2.bf16.msra.mxu0 0
        %2779 = vmatprep.subr.bf16.mxu0 0
        %2780 = vmatpush2.bf16.msra.mxu0 0
        %2781 = vmatprep.subr.bf16.mxu0 0
        %2782 = vmatpush2.bf16.msra.mxu0 0
        %2783 = vmatprep.mubr.bf16.mxu0 0
        %2784 = vmatmul.mubr.bf16.gmra.mxu0 %v600
        %v2785 = vpop.f32.mrf.mxu0
        %v2786 = vadd.f32 %v2689, %v2785
        %v2787 = vpop.f32.mrf.mxu0
        %v2788 = vpop.f32.mrf.mxu0
        %v2789 = vadd.f32 %v2692, %v2788
        %v2790 = vpop.f32.mrf.mxu0
        %2791 = vmatprep.mubr.bf16.mxu0 0
        %2792 = vmatmul.mubr.bf16.gmra.mxu0 %v603
        %v2793 = vpop.f32.mrf.mxu0
        %v2794 = vadd.f32 %v2697, %v2793
        %v2795 = vpop.f32.mrf.mxu0
        %v2796 = vpop.f32.mrf.mxu0
        %v2797 = vadd.f32 %v2700, %v2796
        %v2798 = vpop.f32.mrf.mxu0
        %2799 = vmatprep.mubr.bf16.mxu0 0
        %2800 = vmatmul.mubr.bf16.gmra.mxu0 %v606
        %v2801 = vpop.f32.mrf.mxu0
        %v2802 = vadd.f32 %v2705, %v2801
        %v2803 = vpop.f32.mrf.mxu0
        %v2804 = vpop.f32.mrf.mxu0
        %v2805 = vadd.f32 %v2708, %v2804
        %v2806 = vpop.f32.mrf.mxu0
        %2807 = vmatprep.mubr.bf16.mxu0 0
        %2808 = vmatmul.mubr.bf16.gmra.mxu0 %v609
        %v2809 = vpop.f32.mrf.mxu0
        %v2810 = vadd.f32 %v2713, %v2809
        %v2811 = vpop.f32.mrf.mxu0
        %v2812 = vpop.f32.mrf.mxu0
        %v2813 = vadd.f32 %v2716, %v2812
        %v2814 = vpop.f32.mrf.mxu0
        %2815 = vmatprep.mubr.bf16.mxu0 0
        %2816 = vmatmul.mubr.bf16.gmra.mxu0 %v612
        %v2817 = vpop.f32.mrf.mxu0
        %v2818 = vadd.f32 %v2721, %v2817
        %v2819 = vpop.f32.mrf.mxu0
        %v2820 = vpop.f32.mrf.mxu0
        %v2821 = vadd.f32 %v2724, %v2820
        %v2822 = vpop.f32.mrf.mxu0
        %2823 = vmatprep.mubr.bf16.mxu0 0
        %2824 = vmatmul.mubr.bf16.gmra.mxu0 %v615
        %v2825 = vpop.f32.mrf.mxu0
        %v2826 = vadd.f32 %v2729, %v2825
        %v2827 = vpop.f32.mrf.mxu0
        %v2828 = vpop.f32.mrf.mxu0
        %v2829 = vadd.f32 %v2732, %v2828
        %v2830 = vpop.f32.mrf.mxu0
        %2831 = vmatprep.mubr.bf16.mxu0 0
        %2832 = vmatmul.mubr.bf16.gmra.mxu0 %v618
        %v2833 = vpop.f32.mrf.mxu0
        %v2834 = vadd.f32 %v2737, %v2833
        %v2835 = vpop.f32.mrf.mxu0
        %v2836 = vpop.f32.mrf.mxu0
        %v2837 = vadd.f32 %v2740, %v2836
        %v2838 = vpop.f32.mrf.mxu0
        %2839 = vmatprep.mubr.bf16.mxu0 0
        %2840 = vmatmul.mubr.bf16.gmra.mxu0 %v621
        %v2841 = vpop.f32.mrf.mxu0
        %v2842 = vadd.f32 %v2745, %v2841
        %v2843 = vpop.f32.mrf.mxu0
        %v2844 = vpop.f32.mrf.mxu0
        %v2845 = vadd.f32 %v2748, %v2844
        %v2846 = vpop.f32.mrf.mxu0
        %2847 = vdwg.mxu0
        %v2848 = vpack.c.bf16 %v1902, %v1898
        %v2849 = vpack.c.bf16 %v1904, %v1900
        %v2850 = vpack.c.bf16 %v2128, %v2124
        %v2851 = vpack.c.bf16 %v2130, %v2126
        %v2852 = vpack.c.bf16 %v2354, %v2350
        %v2853 = vpack.c.bf16 %v2356, %v2352
        %v2854 = vpack.c.bf16 %v2580, %v2576
        %v2855 = vpack.c.bf16 %v2582, %v2578
        %v2856 = vpack.c.bf16 %v2789, %v2786
        %v2857 = vpack.c.bf16 %v1912, %v1908
        %v2858 = vpack.c.bf16 %v1914, %v1910
        %v2859 = vpack.c.bf16 %v2138, %v2134
        %v2860 = vpack.c.bf16 %v2140, %v2136
        %v2861 = vpack.c.bf16 %v2364, %v2360
        %v2862 = vpack.c.bf16 %v2366, %v2362
        %v2863 = vpack.c.bf16 %v2590, %v2586
        %v2864 = vpack.c.bf16 %v2592, %v2588
        %v2865 = vpack.c.bf16 %v2797, %v2794
        %v2866 = vpack.c.bf16 %v1922, %v1918
        %v2867 = vpack.c.bf16 %v1924, %v1920
        %v2868 = vpack.c.bf16 %v2148, %v2144
        %v2869 = vpack.c.bf16 %v2150, %v2146
        %v2870 = vpack.c.bf16 %v2374, %v2370
        %v2871 = vpack.c.bf16 %v2376, %v2372
        %v2872 = vpack.c.bf16 %v2600, %v2596
        %v2873 = vpack.c.bf16 %v2602, %v2598
        %v2874 = vpack.c.bf16 %v2805, %v2802
        %v2875 = vpack.c.bf16 %v1932, %v1928
        %v2876 = vpack.c.bf16 %v1934, %v1930
        %v2877 = vpack.c.bf16 %v2158, %v2154
        %v2878 = vpack.c.bf16 %v2160, %v2156
        %v2879 = vpack.c.bf16 %v2384, %v2380
        %v2880 = vpack.c.bf16 %v2386, %v2382
        %v2881 = vpack.c.bf16 %v2610, %v2606
        %v2882 = vpack.c.bf16 %v2612, %v2608
        %v2883 = vpack.c.bf16 %v2813, %v2810
        %v2884 = vpack.c.bf16 %v1942, %v1938
        %v2885 = vpack.c.bf16 %v1944, %v1940
        %v2886 = vpack.c.bf16 %v2168, %v2164
        %v2887 = vpack.c.bf16 %v2170, %v2166
        %v2888 = vpack.c.bf16 %v2394, %v2390
        %v2889 = vpack.c.bf16 %v2396, %v2392
        %v2890 = vpack.c.bf16 %v2620, %v2616
        %v2891 = vpack.c.bf16 %v2622, %v2618
        %v2892 = vpack.c.bf16 %v2821, %v2818
        %v2893 = vpack.c.bf16 %v1952, %v1948
        %v2894 = vpack.c.bf16 %v1954, %v1950
        %v2895 = vpack.c.bf16 %v2178, %v2174
        %v2896 = vpack.c.bf16 %v2180, %v2176
        %v2897 = vpack.c.bf16 %v2404, %v2400
        %v2898 = vpack.c.bf16 %v2406, %v2402
        %v2899 = vpack.c.bf16 %v2630, %v2626
        %v2900 = vpack.c.bf16 %v2632, %v2628
        %v2901 = vpack.c.bf16 %v2829, %v2826
        %v2902 = vpack.c.bf16 %v1962, %v1958
        %v2903 = vpack.c.bf16 %v1964, %v1960
        %v2904 = vpack.c.bf16 %v2188, %v2184
        %v2905 = vpack.c.bf16 %v2190, %v2186
        %v2906 = vpack.c.bf16 %v2414, %v2410
        %v2907 = vpack.c.bf16 %v2416, %v2412
        %v2908 = vpack.c.bf16 %v2640, %v2636
        %v2909 = vpack.c.bf16 %v2642, %v2638
        %v2910 = vpack.c.bf16 %v2837, %v2834
        %v2911 = vpack.c.bf16 %v1972, %v1968
        %v2912 = vpack.c.bf16 %v1974, %v1970
        %v2913 = vpack.c.bf16 %v2198, %v2194
        %v2914 = vpack.c.bf16 %v2200, %v2196
        %v2915 = vpack.c.bf16 %v2424, %v2420
        %v2916 = vpack.c.bf16 %v2426, %v2422
        %v2917 = vpack.c.bf16 %v2650, %v2646
        %v2918 = vpack.c.bf16 %v2652, %v2648
        %v2919 = vpack.c.bf16 %v2845, %v2842
        %v2920 = vlaneseq
        %v2921 = vshrl.u32 %v2920, 7
        %v2922 = vadd.s32 %v2921, 8
        %v2923 = vadd.s32 %v2921, 16
        %v2924 = vadd.s32 %v2921, 24
        %v2925 = vadd.s32 %v2921, 32
        %v2926 = vadd.s32 %v2921, 40
        %v2927 = vadd.s32 %v2921, 48
        %v2928 = vadd.s32 %v2921, 56
        %v2929 = vadd.s32 %v2921, 64
        %v2930 = vadd.s32 %v2921, 72
        %v2931 = vadd.s32 %v2921, 80
        %v2932 = vadd.s32 %v2921, 88
        %v2933 = vadd.s32 %v2921, 96
        %v2934 = vadd.s32 %v2921, 104
        %v2935 = vadd.s32 %v2921, 112
        %v2936 = vadd.s32 %v2921, 120
        %v2937 = vlaneseq
        %v2938 = vand.u32 %v2937, 127
        %vm2939 = vcmp.ge.s32.totalorder %v2921, %v2938
        %vm2940 = vcmp.ge.s32.totalorder %v2922, %v2938
        %vm2941 = vcmp.ge.s32.totalorder %v2923, %v2938
        %vm2942 = vcmp.ge.s32.totalorder %v2924, %v2938
        %vm2943 = vcmp.ge.s32.totalorder %v2925, %v2938
        %vm2944 = vcmp.ge.s32.totalorder %v2926, %v2938
        %vm2945 = vcmp.ge.s32.totalorder %v2927, %v2938
        %vm2946 = vcmp.ge.s32.totalorder %v2928, %v2938
        %vm2947 = vcmp.ge.s32.totalorder %v2929, %v2938
        %vm2948 = vcmp.ge.s32.totalorder %v2930, %v2938
        %vm2949 = vcmp.ge.s32.totalorder %v2931, %v2938
        %vm2950 = vcmp.ge.s32.totalorder %v2932, %v2938
        %vm2951 = vcmp.ge.s32.totalorder %v2933, %v2938
        %vm2952 = vcmp.ge.s32.totalorder %v2934, %v2938
        %vm2953 = vcmp.ge.s32.totalorder %v2935, %v2938
        %vm2954 = vcmp.ge.s32.totalorder %v2936, %v2938
        %v2955 = vsel %vm2939, 0.0, -1e+30
        %v2956 = vsel %vm2940, 0.0, -1e+30
        %v2957 = vsel %vm2941, 0.0, -1e+30
        %v2958 = vsel %vm2942, 0.0, -1e+30
        %v2959 = vsel %vm2943, 0.0, -1e+30
        %v2960 = vsel %vm2944, 0.0, -1e+30
        %v2961 = vsel %vm2945, 0.0, -1e+30
        %v2962 = vsel %vm2946, 0.0, -1e+30
        %v2963 = vsel %vm2947, 0.0, -1e+30
        %v2964 = vsel %vm2948, 0.0, -1e+30
        %v2965 = vsel %vm2949, 0.0, -1e+30
        %v2966 = vsel %vm2950, 0.0, -1e+30
        %v2967 = vsel %vm2951, 0.0, -1e+30
        %v2968 = vsel %vm2952, 0.0, -1e+30
        %v2969 = vsel %vm2953, 0.0, -1e+30
        %v2970 = vsel %vm2954, 0.0, -1e+30
        %vm2971 = vcmask 523264
        %v2973 = vsel %vm2971, %v2848, 0
        %v2976 = vsel %vm2971, %v2857, 0
        %v2979 = vsel %vm2971, %v2866, 0
        %v2982 = vsel %vm2971, %v2875, 0
        %v2985 = vsel %vm2971, %v2884, 0
        %v2988 = vsel %vm2971, %v2893, 0
        %v2991 = vsel %vm2971, %v2902, 0
        %v2994 = vsel %vm2971, %v2911, 0
        %v2997 = vsel %vm2971, %v2851, 0
        %v3000 = vsel %vm2971, %v2860, 0
        %v3003 = vsel %vm2971, %v2869, 0
        %v3006 = vsel %vm2971, %v2878, 0
        %v3009 = vsel %vm2971, %v2887, 0
        %v3012 = vsel %vm2971, %v2896, 0
        %v3015 = vsel %vm2971, %v2905, 0
        %v3018 = vsel %vm2971, %v2914, 0
        %3020 = vmatprep.subr.bf16.mxu0 0
        %3021 = vmatpush1.bf16.xpose.msra.mxu0 %v3018
        %3022 = vmatprep.subr.bf16.mxu0 0
        %3023 = vmatpush1.bf16.xpose.msra.mxu0 %v3015
        %3024 = vmatprep.subr.bf16.mxu0 0
        %3025 = vmatpush1.bf16.xpose.msra.mxu0 %v3012
        %3026 = vmatprep.subr.bf16.mxu0 0
        %3027 = vmatpush1.bf16.xpose.msra.mxu0 %v3009
        %3028 = vmatprep.subr.bf16.mxu0 0
        %3029 = vmatpush1.bf16.xpose.msra.mxu0 %v3006
        %3030 = vmatprep.subr.bf16.mxu0 0
        %3031 = vmatpush1.bf16.xpose.msra.mxu0 %v3003
        %3032 = vmatprep.subr.bf16.mxu0 0
        %3033 = vmatpush1.bf16.xpose.msra.mxu0 %v3000
        %3034 = vmatprep.subr.bf16.mxu0 0
        %3035 = vmatpush1.bf16.xpose.msra.mxu0 %v2997
        %3036 = vmatprep.subr.bf16.mxu0 0
        %3037 = vmatpush2.bf16.xpose.msra.mxu0 0
        %3038 = vmatprep.subr.bf16.mxu0 0
        %3039 = vmatpush2.bf16.xpose.msra.mxu0 0
        %3040 = vmatprep.subr.bf16.mxu0 0
        %3041 = vmatpush2.bf16.xpose.msra.mxu0 0
        %3042 = vmatprep.subr.bf16.mxu0 0
        %3043 = vmatpush2.bf16.xpose.msra.mxu0 0
        %3044 = vmatprep.subr.bf16.mxu0 0
        %3045 = vmatpush2.bf16.xpose.msra.mxu0 0
        %3046 = vmatprep.subr.bf16.mxu0 0
        %3047 = vmatpush2.bf16.xpose.msra.mxu0 0
        %3048 = vmatprep.subr.bf16.mxu0 0
        %3049 = vmatpush2.bf16.xpose.msra.mxu0 0
        %3050 = vmatprep.subr.bf16.mxu0 0
        %3051 = vmatpush2.bf16.xpose.msra.mxu0 0
        %3052 = vmatprep.mubr.bf16.mxu0 0
        %3053 = vmatmul.mubr.bf16.gmra.mxu0 %v2973
        %v3054 = vpop.f32.mrf.mxu0
        %v3055 = vadd.f32 %v2955, %v3054
        %v3056 = vpop.f32.mrf.mxu0
        %v3057 = vpop.f32.mrf.mxu0
        %v3058 = vadd.f32 %v2956, %v3057
        %v3059 = vpop.f32.mrf.mxu0
        %3060 = vmatprep.mubr.bf16.mxu0 0
        %3061 = vmatmul.mubr.bf16.gmra.mxu0 %v2976
        %v3062 = vpop.f32.mrf.mxu0
        %v3063 = vadd.f32 %v2957, %v3062
        %v3064 = vpop.f32.mrf.mxu0
        %v3065 = vpop.f32.mrf.mxu0
        %v3066 = vadd.f32 %v2958, %v3065
        %v3067 = vpop.f32.mrf.mxu0
        %3068 = vmatprep.mubr.bf16.mxu0 0
        %3069 = vmatmul.mubr.bf16.gmra.mxu0 %v2979
        %v3070 = vpop.f32.mrf.mxu0
        %v3071 = vadd.f32 %v2959, %v3070
        %v3072 = vpop.f32.mrf.mxu0
        %v3073 = vpop.f32.mrf.mxu0
        %v3074 = vadd.f32 %v2960, %v3073
        %v3075 = vpop.f32.mrf.mxu0
        %3076 = vmatprep.mubr.bf16.mxu0 0
        %3077 = vmatmul.mubr.bf16.gmra.mxu0 %v2982
        %v3078 = vpop.f32.mrf.mxu0
        %v3079 = vadd.f32 %v2961, %v3078
        %v3080 = vpop.f32.mrf.mxu0
        %v3081 = vpop.f32.mrf.mxu0
        %v3082 = vadd.f32 %v2962, %v3081
        %v3083 = vpop.f32.mrf.mxu0
        %3084 = vmatprep.mubr.bf16.mxu0 0
        %3085 = vmatmul.mubr.bf16.gmra.mxu0 %v2985
        %v3086 = vpop.f32.mrf.mxu0
        %v3087 = vadd.f32 %v2963, %v3086
        %v3088 = vpop.f32.mrf.mxu0
        %v3089 = vpop.f32.mrf.mxu0
        %v3090 = vadd.f32 %v2964, %v3089
        %v3091 = vpop.f32.mrf.mxu0
        %3092 = vmatprep.mubr.bf16.mxu0 0
        %3093 = vmatmul.mubr.bf16.gmra.mxu0 %v2988
        %v3094 = vpop.f32.mrf.mxu0
        %v3095 = vadd.f32 %v2965, %v3094
        %v3096 = vpop.f32.mrf.mxu0
        %v3097 = vpop.f32.mrf.mxu0
        %v3098 = vadd.f32 %v2966, %v3097
        %v3099 = vpop.f32.mrf.mxu0
        %3100 = vmatprep.mubr.bf16.mxu0 0
        %3101 = vmatmul.mubr.bf16.gmra.mxu0 %v2991
        %v3102 = vpop.f32.mrf.mxu0
        %v3103 = vadd.f32 %v2967, %v3102
        %v3104 = vpop.f32.mrf.mxu0
        %v3105 = vpop.f32.mrf.mxu0
        %v3106 = vadd.f32 %v2968, %v3105
        %v3107 = vpop.f32.mrf.mxu0
        %3108 = vmatprep.mubr.bf16.mxu0 0
        %3109 = vmatmul.mubr.bf16.gmra.mxu0 %v2994
        %v3110 = vpop.f32.mrf.mxu0
        %v3111 = vadd.f32 %v2969, %v3110
        %v3112 = vpop.f32.mrf.mxu0
        %v3113 = vpop.f32.mrf.mxu0
        %v3114 = vadd.f32 %v2970, %v3113
        %v3115 = vpop.f32.mrf.mxu0
        %3116 = vdwg.mxu0
        %3117 = vmax.xlane.f32.xlu0 %v3055
        %v3118 = vpop.xlane.xlu0 %3117
        %3119 = vmax.xlane.f32.xlu0 %v3058
        %v3120 = vpop.xlane.xlu0 %3119
        %3121 = vmax.xlane.f32.xlu0 %v3063
        %v3122 = vpop.xlane.xlu0 %3121
        %3123 = vmax.xlane.f32.xlu0 %v3066
        %v3124 = vpop.xlane.xlu0 %3123
        %3125 = vmax.xlane.f32.xlu0 %v3071
        %v3126 = vpop.xlane.xlu0 %3125
        %3127 = vmax.xlane.f32.xlu0 %v3074
        %v3128 = vpop.xlane.xlu0 %3127
        %3129 = vmax.xlane.f32.xlu0 %v3079
        %v3130 = vpop.xlane.xlu0 %3129
        %3131 = vmax.xlane.f32.xlu0 %v3082
        %v3132 = vpop.xlane.xlu0 %3131
        %3133 = vmax.xlane.f32.xlu0 %v3087
        %v3134 = vpop.xlane.xlu0 %3133
        %3135 = vmax.xlane.f32.xlu0 %v3090
        %v3136 = vpop.xlane.xlu0 %3135
        %3137 = vmax.xlane.f32.xlu0 %v3095
        %v3138 = vpop.xlane.xlu0 %3137
        %3139 = vmax.xlane.f32.xlu0 %v3098
        %v3140 = vpop.xlane.xlu0 %3139
        %3141 = vmax.xlane.f32.xlu0 %v3103
        %v3142 = vpop.xlane.xlu0 %3141
        %3143 = vmax.xlane.f32.xlu0 %v3106
        %v3144 = vpop.xlane.xlu0 %3143
        %3145 = vmax.xlane.f32.xlu0 %v3111
        %v3146 = vpop.xlane.xlu0 %3145
        %3147 = vmax.xlane.f32.xlu0 %v3114
        %v3148 = vpop.xlane.xlu0 %3147
        %v3149 = vsub.f32 %v3055, %v3118
        %v3150 = vsub.f32 %v3058, %v3120
        %v3151 = vsub.f32 %v3063, %v3122
        %v3152 = vsub.f32 %v3066, %v3124
        %v3153 = vsub.f32 %v3071, %v3126
        %v3154 = vsub.f32 %v3074, %v3128
        %v3155 = vsub.f32 %v3079, %v3130
        %v3156 = vsub.f32 %v3082, %v3132
        %v3157 = vsub.f32 %v3087, %v3134
        %v3158 = vsub.f32 %v3090, %v3136
        %v3159 = vsub.f32 %v3095, %v3138
        %v3160 = vsub.f32 %v3098, %v3140
        %v3161 = vsub.f32 %v3103, %v3142
        %v3162 = vsub.f32 %v3106, %v3144
        %v3163 = vsub.f32 %v3111, %v3146
        %v3164 = vsub.f32 %v3114, %v3148
        %v3165 = vmul.f32 %v3149, 1.442695
        %v3166 = vpow.pop %v3165
        %v3167 = vmul.f32 %v3150, 1.442695
        %v3168 = vpow.pop %v3167
        %v3169 = vmul.f32 %v3151, 1.442695
        %v3170 = vpow.pop %v3169
        %v3171 = vmul.f32 %v3152, 1.442695
        %v3172 = vpow.pop %v3171
        %v3173 = vmul.f32 %v3153, 1.442695
        %v3174 = vpow.pop %v3173
        %v3175 = vmul.f32 %v3154, 1.442695
        %v3176 = vpow.pop %v3175
        %v3177 = vmul.f32 %v3155, 1.442695
        %v3178 = vpow.pop %v3177
        %v3179 = vmul.f32 %v3156, 1.442695
        %v3180 = vpow.pop %v3179
        %v3181 = vmul.f32 %v3157, 1.442695
        %v3182 = vpow.pop %v3181
        %v3183 = vmul.f32 %v3158, 1.442695
        %v3184 = vpow.pop %v3183
        %v3185 = vmul.f32 %v3159, 1.442695
        %v3186 = vpow.pop %v3185
        %v3187 = vmul.f32 %v3160, 1.442695
        %v3188 = vpow.pop %v3187
        %v3189 = vmul.f32 %v3161, 1.442695
        %v3190 = vpow.pop %v3189
        %v3191 = vmul.f32 %v3162, 1.442695
        %v3192 = vpow.pop %v3191
        %v3193 = vmul.f32 %v3163, 1.442695
        %v3194 = vpow.pop %v3193
        %v3195 = vmul.f32 %v3164, 1.442695
        %v3196 = vpow.pop %v3195
        %3197 = vadd.xlane.f32.xlu0 %v3166
        %v3198 = vpop.xlane.xlu0 %3197
        %3199 = vadd.xlane.f32.xlu0 %v3168
        %v3200 = vpop.xlane.xlu0 %3199
        %3201 = vadd.xlane.f32.xlu0 %v3170
        %v3202 = vpop.xlane.xlu0 %3201
        %3203 = vadd.xlane.f32.xlu0 %v3172
        %v3204 = vpop.xlane.xlu0 %3203
        %3205 = vadd.xlane.f32.xlu0 %v3174
        %v3206 = vpop.xlane.xlu0 %3205
        %3207 = vadd.xlane.f32.xlu0 %v3176
        %v3208 = vpop.xlane.xlu0 %3207
        %3209 = vadd.xlane.f32.xlu0 %v3178
        %v3210 = vpop.xlane.xlu0 %3209
        %3211 = vadd.xlane.f32.xlu0 %v3180
        %v3212 = vpop.xlane.xlu0 %3211
        %3213 = vadd.xlane.f32.xlu0 %v3182
        %v3214 = vpop.xlane.xlu0 %3213
        %3215 = vadd.xlane.f32.xlu0 %v3184
        %v3216 = vpop.xlane.xlu0 %3215
        %3217 = vadd.xlane.f32.xlu0 %v3186
        %v3218 = vpop.xlane.xlu0 %3217
        %3219 = vadd.xlane.f32.xlu0 %v3188
        %v3220 = vpop.xlane.xlu0 %3219
        %3221 = vadd.xlane.f32.xlu0 %v3190
        %v3222 = vpop.xlane.xlu0 %3221
        %3223 = vadd.xlane.f32.xlu0 %v3192
        %v3224 = vpop.xlane.xlu0 %3223
        %3225 = vadd.xlane.f32.xlu0 %v3194
        %v3226 = vpop.xlane.xlu0 %3225
        %3227 = vadd.xlane.f32.xlu0 %v3196
        %v3228 = vpop.xlane.xlu0 %3227
        %v3229 = vrcp.pop %v3198
        %v3230 = vrcp.pop %v3200
        %v3231 = vrcp.pop %v3202
        %v3232 = vrcp.pop %v3204
        %v3233 = vrcp.pop %v3206
        %v3234 = vrcp.pop %v3208
        %v3235 = vrcp.pop %v3210
        %v3236 = vrcp.pop %v3212
        %v3237 = vrcp.pop %v3214
        %v3238 = vrcp.pop %v3216
        %v3239 = vrcp.pop %v3218
        %v3240 = vrcp.pop %v3220
        %v3241 = vrcp.pop %v3222
        %v3242 = vrcp.pop %v3224
        %v3243 = vrcp.pop %v3226
        %v3244 = vrcp.pop %v3228
        %v3245 = vpack.c.bf16 %v3168, %v3166
        %v3246 = vpack.c.bf16 %v3172, %v3170
        %v3247 = vpack.c.bf16 %v3176, %v3174
        %v3248 = vpack.c.bf16 %v3180, %v3178
        %v3249 = vpack.c.bf16 %v3184, %v3182
        %v3250 = vpack.c.bf16 %v3188, %v3186
        %v3251 = vpack.c.bf16 %v3192, %v3190
        %v3252 = vpack.c.bf16 %v3196, %v3194
        %3253 = vmatprep.subr.bf16.mxu0 0
        %3254 = vmatpush1.bf16.msra.mxu0 %v2917
        %3255 = vmatprep.subr.bf16.mxu0 0
        %3256 = vmatpush1.bf16.msra.mxu0 %v2908
        %3257 = vmatprep.subr.bf16.mxu0 0
        %3258 = vmatpush1.bf16.msra.mxu0 %v2899
        %3259 = vmatprep.subr.bf16.mxu0 0
        %3260 = vmatpush1.bf16.msra.mxu0 %v2890
        %3261 = vmatprep.subr.bf16.mxu0 0
        %3262 = vmatpush1.bf16.msra.mxu0 %v2881
        %3263 = vmatprep.subr.bf16.mxu0 0
        %3264 = vmatpush1.bf16.msra.mxu0 %v2872
        %3265 = vmatprep.subr.bf16.mxu0 0
        %3266 = vmatpush1.bf16.msra.mxu0 %v2863
        %3267 = vmatprep.subr.bf16.mxu0 0
        %3268 = vmatpush1.bf16.msra.mxu0 %v2854
        %3269 = vmatprep.subr.bf16.mxu0 0
        %3270 = vmatpush2.bf16.msra.mxu0 0
        %3271 = vmatprep.subr.bf16.mxu0 0
        %3272 = vmatpush2.bf16.msra.mxu0 0
        %3273 = vmatprep.subr.bf16.mxu0 0
        %3274 = vmatpush2.bf16.msra.mxu0 0
        %3275 = vmatprep.subr.bf16.mxu0 0
        %3276 = vmatpush2.bf16.msra.mxu0 0
        %3277 = vmatprep.subr.bf16.mxu0 0
        %3278 = vmatpush2.bf16.msra.mxu0 0
        %3279 = vmatprep.subr.bf16.mxu0 0
        %3280 = vmatpush2.bf16.msra.mxu0 0
        %3281 = vmatprep.subr.bf16.mxu0 0
        %3282 = vmatpush2.bf16.msra.mxu0 0
        %3283 = vmatprep.subr.bf16.mxu0 0
        %3284 = vmatpush2.bf16.msra.mxu0 0
        %3285 = vmatprep.mubr.bf16.mxu0 0
        %3286 = vmatmul.mubr.bf16.gmra.mxu0 %v3245
        %v3287 = vpop.f32.mrf.mxu0
        %v3288 = vadd.f32 0.0, %v3287
        %v3289 = vpop.f32.mrf.mxu0
        %v3290 = vpop.f32.mrf.mxu0
        %v3291 = vadd.f32 0.0, %v3290
        %v3292 = vpop.f32.mrf.mxu0
        %3293 = vmatprep.mubr.bf16.mxu0 0
        %3294 = vmatmul.mubr.bf16.gmra.mxu0 %v3246
        %v3295 = vpop.f32.mrf.mxu0
        %v3296 = vadd.f32 0.0, %v3295
        %v3297 = vpop.f32.mrf.mxu0
        %v3298 = vpop.f32.mrf.mxu0
        %v3299 = vadd.f32 0.0, %v3298
        %v3300 = vpop.f32.mrf.mxu0
        %3301 = vmatprep.mubr.bf16.mxu0 0
        %3302 = vmatmul.mubr.bf16.gmra.mxu0 %v3247
        %v3303 = vpop.f32.mrf.mxu0
        %v3304 = vadd.f32 0.0, %v3303
        %v3305 = vpop.f32.mrf.mxu0
        %v3306 = vpop.f32.mrf.mxu0
        %v3307 = vadd.f32 0.0, %v3306
        %v3308 = vpop.f32.mrf.mxu0
        %3309 = vmatprep.mubr.bf16.mxu0 0
        %3310 = vmatmul.mubr.bf16.gmra.mxu0 %v3248
        %v3311 = vpop.f32.mrf.mxu0
        %v3312 = vadd.f32 0.0, %v3311
        %v3313 = vpop.f32.mrf.mxu0
        %v3314 = vpop.f32.mrf.mxu0
        %v3315 = vadd.f32 0.0, %v3314
        %v3316 = vpop.f32.mrf.mxu0
        %3317 = vmatprep.mubr.bf16.mxu0 0
        %3318 = vmatmul.mubr.bf16.gmra.mxu0 %v3249
        %v3319 = vpop.f32.mrf.mxu0
        %v3320 = vadd.f32 0.0, %v3319
        %v3321 = vpop.f32.mrf.mxu0
        %v3322 = vpop.f32.mrf.mxu0
        %v3323 = vadd.f32 0.0, %v3322
        %v3324 = vpop.f32.mrf.mxu0
        %3325 = vmatprep.mubr.bf16.mxu0 0
        %3326 = vmatmul.mubr.bf16.gmra.mxu0 %v3250
        %v3327 = vpop.f32.mrf.mxu0
        %v3328 = vadd.f32 0.0, %v3327
        %v3329 = vpop.f32.mrf.mxu0
        %v3330 = vpop.f32.mrf.mxu0
        %v3331 = vadd.f32 0.0, %v3330
        %v3332 = vpop.f32.mrf.mxu0
        %3333 = vmatprep.mubr.bf16.mxu0 0
        %3334 = vmatmul.mubr.bf16.gmra.mxu0 %v3251
        %v3335 = vpop.f32.mrf.mxu0
        %v3336 = vadd.f32 0.0, %v3335
        %v3337 = vpop.f32.mrf.mxu0
        %v3338 = vpop.f32.mrf.mxu0
        %v3339 = vadd.f32 0.0, %v3338
        %v3340 = vpop.f32.mrf.mxu0
        %3341 = vmatprep.mubr.bf16.mxu0 0
        %3342 = vmatmul.mubr.bf16.gmra.mxu0 %v3252
        %v3343 = vpop.f32.mrf.mxu0
        %v3344 = vadd.f32 0.0, %v3343
        %v3345 = vpop.f32.mrf.mxu0
        %v3346 = vpop.f32.mrf.mxu0
        %v3347 = vadd.f32 0.0, %v3346
        %v3348 = vpop.f32.mrf.mxu0
        %3349 = vdwg.mxu0
        %v3350 = vmul.f32 %v3288, %v3229
        %v3351 = vmul.f32 %v3291, %v3230
        %v3352 = vmul.f32 %v3296, %v3231
        %v3353 = vmul.f32 %v3299, %v3232
        %v3354 = vmul.f32 %v3304, %v3233
        %v3355 = vmul.f32 %v3307, %v3234
        %v3356 = vmul.f32 %v3312, %v3235
        %v3357 = vmul.f32 %v3315, %v3236
        %v3358 = vmul.f32 %v3320, %v3237
        %v3359 = vmul.f32 %v3323, %v3238
        %v3360 = vmul.f32 %v3328, %v3239
        %v3361 = vmul.f32 %v3331, %v3240
        %v3362 = vmul.f32 %v3336, %v3241
        %v3363 = vmul.f32 %v3339, %v3242
        %v3364 = vmul.f32 %v3344, %v3243
        %v3365 = vmul.f32 %v3347, %v3244
        %v3366 = vpack.c.bf16 %v3351, %v3350
        %v3367 = vpack.c.bf16 %v3353, %v3352
        %v3368 = vpack.c.bf16 %v3355, %v3354
        %v3369 = vpack.c.bf16 %v3357, %v3356
        %v3370 = vpack.c.bf16 %v3359, %v3358
        %v3371 = vpack.c.bf16 %v3361, %v3360
        %v3372 = vpack.c.bf16 %v3363, %v3362
        %v3373 = vpack.c.bf16 %v3365, %v3364
        %3382 = vrot.lane.b32.xlu0 %v2848, 64
        %v3383 = vpop.permute.xlu0 %3382
        %3384 = vrot.lane.b32.xlu0 %v2857, 64
        %v3385 = vpop.permute.xlu0 %3384
        %3386 = vrot.lane.b32.xlu0 %v2866, 64
        %v3387 = vpop.permute.xlu0 %3386
        %3388 = vrot.lane.b32.xlu0 %v2875, 64
        %v3389 = vpop.permute.xlu0 %3388
        %3390 = vrot.lane.b32.xlu0 %v2884, 64
        %v3391 = vpop.permute.xlu0 %3390
        %3392 = vrot.lane.b32.xlu0 %v2893, 64
        %v3393 = vpop.permute.xlu0 %3392
        %3394 = vrot.lane.b32.xlu0 %v2902, 64
        %v3395 = vpop.permute.xlu0 %3394
        %3396 = vrot.lane.b32.xlu0 %v2911, 64
        %v3397 = vpop.permute.xlu0 %3396
        %3406 = vrot.lane.b32.xlu0 %v2851, 64
        %v3407 = vpop.permute.xlu0 %3406
        %3408 = vrot.lane.b32.xlu0 %v2860, 64
        %v3409 = vpop.permute.xlu0 %3408
        %3410 = vrot.lane.b32.xlu0 %v2869, 64
        %v3411 = vpop.permute.xlu0 %3410
        %3412 = vrot.lane.b32.xlu0 %v2878, 64
        %v3413 = vpop.permute.xlu0 %3412
        %3414 = vrot.lane.b32.xlu0 %v2887, 64
        %v3415 = vpop.permute.xlu0 %3414
        %3416 = vrot.lane.b32.xlu0 %v2896, 64
        %v3417 = vpop.permute.xlu0 %3416
        %3418 = vrot.lane.b32.xlu0 %v2905, 64
        %v3419 = vpop.permute.xlu0 %3418
        %3420 = vrot.lane.b32.xlu0 %v2914, 64
        %v3421 = vpop.permute.xlu0 %3420
        %v3423 = vsel %vm2971, %v3383, 0
        %v3426 = vsel %vm2971, %v3385, 0
        %v3429 = vsel %vm2971, %v3387, 0
        %v3432 = vsel %vm2971, %v3389, 0
        %v3435 = vsel %vm2971, %v3391, 0
        %v3438 = vsel %vm2971, %v3393, 0
        %v3441 = vsel %vm2971, %v3395, 0
        %v3444 = vsel %vm2971, %v3397, 0
        %v3447 = vsel %vm2971, %v3407, 0
        %v3450 = vsel %vm2971, %v3409, 0
        %v3453 = vsel %vm2971, %v3411, 0
        %v3456 = vsel %vm2971, %v3413, 0
        %v3459 = vsel %vm2971, %v3415, 0
        %v3462 = vsel %vm2971, %v3417, 0
        %v3465 = vsel %vm2971, %v3419, 0
        %v3468 = vsel %vm2971, %v3421, 0
        %3470 = vmatprep.subr.bf16.mxu0 0
        %3471 = vmatpush1.bf16.xpose.msra.mxu0 %v3468
        %3472 = vmatprep.subr.bf16.mxu0 0
        %3473 = vmatpush1.bf16.xpose.msra.mxu0 %v3465
        %3474 = vmatprep.subr.bf16.mxu0 0
        %3475 = vmatpush1.bf16.xpose.msra.mxu0 %v3462
        %3476 = vmatprep.subr.bf16.mxu0 0
        %3477 = vmatpush1.bf16.xpose.msra.mxu0 %v3459
        %3478 = vmatprep.subr.bf16.mxu0 0
        %3479 = vmatpush1.bf16.xpose.msra.mxu0 %v3456
        %3480 = vmatprep.subr.bf16.mxu0 0
        %3481 = vmatpush1.bf16.xpose.msra.mxu0 %v3453
        %3482 = vmatprep.subr.bf16.mxu0 0
        %3483 = vmatpush1.bf16.xpose.msra.mxu0 %v3450
        %3484 = vmatprep.subr.bf16.mxu0 0
        %3485 = vmatpush1.bf16.xpose.msra.mxu0 %v3447
        %3486 = vmatprep.subr.bf16.mxu0 0
        %3487 = vmatpush2.bf16.xpose.msra.mxu0 0
        %3488 = vmatprep.subr.bf16.mxu0 0
        %3489 = vmatpush2.bf16.xpose.msra.mxu0 0
        %3490 = vmatprep.subr.bf16.mxu0 0
        %3491 = vmatpush2.bf16.xpose.msra.mxu0 0
        %3492 = vmatprep.subr.bf16.mxu0 0
        %3493 = vmatpush2.bf16.xpose.msra.mxu0 0
        %3494 = vmatprep.subr.bf16.mxu0 0
        %3495 = vmatpush2.bf16.xpose.msra.mxu0 0
        %3496 = vmatprep.subr.bf16.mxu0 0
        %3497 = vmatpush2.bf16.xpose.msra.mxu0 0
        %3498 = vmatprep.subr.bf16.mxu0 0
        %3499 = vmatpush2.bf16.xpose.msra.mxu0 0
        %3500 = vmatprep.subr.bf16.mxu0 0
        %3501 = vmatpush2.bf16.xpose.msra.mxu0 0
        %3502 = vmatprep.mubr.bf16.mxu0 0
        %3503 = vmatmul.mubr.bf16.gmra.mxu0 %v3423
        %v3504 = vpop.f32.mrf.mxu0
        %v3505 = vadd.f32 %v2955, %v3504
        %v3506 = vpop.f32.mrf.mxu0
        %v3507 = vpop.f32.mrf.mxu0
        %v3508 = vadd.f32 %v2956, %v3507
        %v3509 = vpop.f32.mrf.mxu0
        %3510 = vmatprep.mubr.bf16.mxu0 0
        %3511 = vmatmul.mubr.bf16.gmra.mxu0 %v3426
        %v3512 = vpop.f32.mrf.mxu0
        %v3513 = vadd.f32 %v2957, %v3512
        %v3514 = vpop.f32.mrf.mxu0
        %v3515 = vpop.f32.mrf.mxu0
        %v3516 = vadd.f32 %v2958, %v3515
        %v3517 = vpop.f32.mrf.mxu0
        %3518 = vmatprep.mubr.bf16.mxu0 0
        %3519 = vmatmul.mubr.bf16.gmra.mxu0 %v3429
        %v3520 = vpop.f32.mrf.mxu0
        %v3521 = vadd.f32 %v2959, %v3520
        %v3522 = vpop.f32.mrf.mxu0
        %v3523 = vpop.f32.mrf.mxu0
        %v3524 = vadd.f32 %v2960, %v3523
        %v3525 = vpop.f32.mrf.mxu0
        %3526 = vmatprep.mubr.bf16.mxu0 0
        %3527 = vmatmul.mubr.bf16.gmra.mxu0 %v3432
        %v3528 = vpop.f32.mrf.mxu0
        %v3529 = vadd.f32 %v2961, %v3528
        %v3530 = vpop.f32.mrf.mxu0
        %v3531 = vpop.f32.mrf.mxu0
        %v3532 = vadd.f32 %v2962, %v3531
        %v3533 = vpop.f32.mrf.mxu0
        %3534 = vmatprep.mubr.bf16.mxu0 0
        %3535 = vmatmul.mubr.bf16.gmra.mxu0 %v3435
        %v3536 = vpop.f32.mrf.mxu0
        %v3537 = vadd.f32 %v2963, %v3536
        %v3538 = vpop.f32.mrf.mxu0
        %v3539 = vpop.f32.mrf.mxu0
        %v3540 = vadd.f32 %v2964, %v3539
        %v3541 = vpop.f32.mrf.mxu0
        %3542 = vmatprep.mubr.bf16.mxu0 0
        %3543 = vmatmul.mubr.bf16.gmra.mxu0 %v3438
        %v3544 = vpop.f32.mrf.mxu0
        %v3545 = vadd.f32 %v2965, %v3544
        %v3546 = vpop.f32.mrf.mxu0
        %v3547 = vpop.f32.mrf.mxu0
        %v3548 = vadd.f32 %v2966, %v3547
        %v3549 = vpop.f32.mrf.mxu0
        %3550 = vmatprep.mubr.bf16.mxu0 0
        %3551 = vmatmul.mubr.bf16.gmra.mxu0 %v3441
        %v3552 = vpop.f32.mrf.mxu0
        %v3553 = vadd.f32 %v2967, %v3552
        %v3554 = vpop.f32.mrf.mxu0
        %v3555 = vpop.f32.mrf.mxu0
        %v3556 = vadd.f32 %v2968, %v3555
        %v3557 = vpop.f32.mrf.mxu0
        %3558 = vmatprep.mubr.bf16.mxu0 0
        %3559 = vmatmul.mubr.bf16.gmra.mxu0 %v3444
        %v3560 = vpop.f32.mrf.mxu0
        %v3561 = vadd.f32 %v2969, %v3560
        %v3562 = vpop.f32.mrf.mxu0
        %v3563 = vpop.f32.mrf.mxu0
        %v3564 = vadd.f32 %v2970, %v3563
        %v3565 = vpop.f32.mrf.mxu0
        %3566 = vdwg.mxu0
        %3567 = vmax.xlane.f32.xlu0 %v3505
        %v3568 = vpop.xlane.xlu0 %3567
        %3569 = vmax.xlane.f32.xlu0 %v3508
        %v3570 = vpop.xlane.xlu0 %3569
        %3571 = vmax.xlane.f32.xlu0 %v3513
        %v3572 = vpop.xlane.xlu0 %3571
        %3573 = vmax.xlane.f32.xlu0 %v3516
        %v3574 = vpop.xlane.xlu0 %3573
        %3575 = vmax.xlane.f32.xlu0 %v3521
        %v3576 = vpop.xlane.xlu0 %3575
        %3577 = vmax.xlane.f32.xlu0 %v3524
        %v3578 = vpop.xlane.xlu0 %3577
        %3579 = vmax.xlane.f32.xlu0 %v3529
        %v3580 = vpop.xlane.xlu0 %3579
        %3581 = vmax.xlane.f32.xlu0 %v3532
        %v3582 = vpop.xlane.xlu0 %3581
        %3583 = vmax.xlane.f32.xlu0 %v3537
        %v3584 = vpop.xlane.xlu0 %3583
        %3585 = vmax.xlane.f32.xlu0 %v3540
        %v3586 = vpop.xlane.xlu0 %3585
        %3587 = vmax.xlane.f32.xlu0 %v3545
        %v3588 = vpop.xlane.xlu0 %3587
        %3589 = vmax.xlane.f32.xlu0 %v3548
        %v3590 = vpop.xlane.xlu0 %3589
        %3591 = vmax.xlane.f32.xlu0 %v3553
        %v3592 = vpop.xlane.xlu0 %3591
        %3593 = vmax.xlane.f32.xlu0 %v3556
        %v3594 = vpop.xlane.xlu0 %3593
        %3595 = vmax.xlane.f32.xlu0 %v3561
        %v3596 = vpop.xlane.xlu0 %3595
        %3597 = vmax.xlane.f32.xlu0 %v3564
        %v3598 = vpop.xlane.xlu0 %3597
        %v3599 = vsub.f32 %v3505, %v3568
        %v3600 = vsub.f32 %v3508, %v3570
        %v3601 = vsub.f32 %v3513, %v3572
        %v3602 = vsub.f32 %v3516, %v3574
        %v3603 = vsub.f32 %v3521, %v3576
        %v3604 = vsub.f32 %v3524, %v3578
        %v3605 = vsub.f32 %v3529, %v3580
        %v3606 = vsub.f32 %v3532, %v3582
        %v3607 = vsub.f32 %v3537, %v3584
        %v3608 = vsub.f32 %v3540, %v3586
        %v3609 = vsub.f32 %v3545, %v3588
        %v3610 = vsub.f32 %v3548, %v3590
        %v3611 = vsub.f32 %v3553, %v3592
        %v3612 = vsub.f32 %v3556, %v3594
        %v3613 = vsub.f32 %v3561, %v3596
        %v3614 = vsub.f32 %v3564, %v3598
        %v3615 = vmul.f32 %v3599, 1.442695
        %v3616 = vpow.pop %v3615
        %v3617 = vmul.f32 %v3600, 1.442695
        %v3618 = vpow.pop %v3617
        %v3619 = vmul.f32 %v3601, 1.442695
        %v3620 = vpow.pop %v3619
        %v3621 = vmul.f32 %v3602, 1.442695
        %v3622 = vpow.pop %v3621
        %v3623 = vmul.f32 %v3603, 1.442695
        %v3624 = vpow.pop %v3623
        %v3625 = vmul.f32 %v3604, 1.442695
        %v3626 = vpow.pop %v3625
        %v3627 = vmul.f32 %v3605, 1.442695
        %v3628 = vpow.pop %v3627
        %v3629 = vmul.f32 %v3606, 1.442695
        %v3630 = vpow.pop %v3629
        %v3631 = vmul.f32 %v3607, 1.442695
        %v3632 = vpow.pop %v3631
        %v3633 = vmul.f32 %v3608, 1.442695
        %v3634 = vpow.pop %v3633
        %v3635 = vmul.f32 %v3609, 1.442695
        %v3636 = vpow.pop %v3635
        %v3637 = vmul.f32 %v3610, 1.442695
        %v3638 = vpow.pop %v3637
        %v3639 = vmul.f32 %v3611, 1.442695
        %v3640 = vpow.pop %v3639
        %v3641 = vmul.f32 %v3612, 1.442695
        %v3642 = vpow.pop %v3641
        %v3643 = vmul.f32 %v3613, 1.442695
        %v3644 = vpow.pop %v3643
        %v3645 = vmul.f32 %v3614, 1.442695
        %v3646 = vpow.pop %v3645
        %3647 = vadd.xlane.f32.xlu0 %v3616
        %v3648 = vpop.xlane.xlu0 %3647
        %3649 = vadd.xlane.f32.xlu0 %v3618
        %v3650 = vpop.xlane.xlu0 %3649
        %3651 = vadd.xlane.f32.xlu0 %v3620
        %v3652 = vpop.xlane.xlu0 %3651
        %3653 = vadd.xlane.f32.xlu0 %v3622
        %v3654 = vpop.xlane.xlu0 %3653
        %3655 = vadd.xlane.f32.xlu0 %v3624
        %v3656 = vpop.xlane.xlu0 %3655
        %3657 = vadd.xlane.f32.xlu0 %v3626
        %v3658 = vpop.xlane.xlu0 %3657
        %3659 = vadd.xlane.f32.xlu0 %v3628
        %v3660 = vpop.xlane.xlu0 %3659
        %3661 = vadd.xlane.f32.xlu0 %v3630
        %v3662 = vpop.xlane.xlu0 %3661
        %3663 = vadd.xlane.f32.xlu0 %v3632
        %v3664 = vpop.xlane.xlu0 %3663
        %3665 = vadd.xlane.f32.xlu0 %v3634
        %v3666 = vpop.xlane.xlu0 %3665
        %3667 = vadd.xlane.f32.xlu0 %v3636
        %v3668 = vpop.xlane.xlu0 %3667
        %3669 = vadd.xlane.f32.xlu0 %v3638
        %v3670 = vpop.xlane.xlu0 %3669
        %3671 = vadd.xlane.f32.xlu0 %v3640
        %v3672 = vpop.xlane.xlu0 %3671
        %3673 = vadd.xlane.f32.xlu0 %v3642
        %v3674 = vpop.xlane.xlu0 %3673
        %3675 = vadd.xlane.f32.xlu0 %v3644
        %v3676 = vpop.xlane.xlu0 %3675
        %3677 = vadd.xlane.f32.xlu0 %v3646
        %v3678 = vpop.xlane.xlu0 %3677
        %v3679 = vrcp.pop %v3648
        %v3680 = vrcp.pop %v3650
        %v3681 = vrcp.pop %v3652
        %v3682 = vrcp.pop %v3654
        %v3683 = vrcp.pop %v3656
        %v3684 = vrcp.pop %v3658
        %v3685 = vrcp.pop %v3660
        %v3686 = vrcp.pop %v3662
        %v3687 = vrcp.pop %v3664
        %v3688 = vrcp.pop %v3666
        %v3689 = vrcp.pop %v3668
        %v3690 = vrcp.pop %v3670
        %v3691 = vrcp.pop %v3672
        %v3692 = vrcp.pop %v3674
        %v3693 = vrcp.pop %v3676
        %v3694 = vrcp.pop %v3678
        %v3695 = vpack.c.bf16 %v3618, %v3616
        %v3696 = vpack.c.bf16 %v3622, %v3620
        %v3697 = vpack.c.bf16 %v3626, %v3624
        %v3698 = vpack.c.bf16 %v3630, %v3628
        %v3699 = vpack.c.bf16 %v3634, %v3632
        %v3700 = vpack.c.bf16 %v3638, %v3636
        %v3701 = vpack.c.bf16 %v3642, %v3640
        %v3702 = vpack.c.bf16 %v3646, %v3644
        %3711 = vrot.lane.b32.xlu0 %v2854, 64
        %v3712 = vpop.permute.xlu0 %3711
        %3713 = vrot.lane.b32.xlu0 %v2863, 64
        %v3714 = vpop.permute.xlu0 %3713
        %3715 = vrot.lane.b32.xlu0 %v2872, 64
        %v3716 = vpop.permute.xlu0 %3715
        %3717 = vrot.lane.b32.xlu0 %v2881, 64
        %v3718 = vpop.permute.xlu0 %3717
        %3719 = vrot.lane.b32.xlu0 %v2890, 64
        %v3720 = vpop.permute.xlu0 %3719
        %3721 = vrot.lane.b32.xlu0 %v2899, 64
        %v3722 = vpop.permute.xlu0 %3721
        %3723 = vrot.lane.b32.xlu0 %v2908, 64
        %v3724 = vpop.permute.xlu0 %3723
        %3725 = vrot.lane.b32.xlu0 %v2917, 64
        %v3726 = vpop.permute.xlu0 %3725
        %3735 = vmatprep.subr.bf16.mxu0 0
        %3736 = vmatpush1.bf16.msra.mxu0 %v3726
        %3737 = vmatprep.subr.bf16.mxu0 0
        %3738 = vmatpush1.bf16.msra.mxu0 %v3724
        %3739 = vmatprep.subr.bf16.mxu0 0
        %3740 = vmatpush1.bf16.msra.mxu0 %v3722
        %3741 = vmatprep.subr.bf16.mxu0 0
        %3742 = vmatpush1.bf16.msra.mxu0 %v3720
        %3743 = vmatprep.subr.bf16.mxu0 0
        %3744 = vmatpush1.bf16.msra.mxu0 %v3718
        %3745 = vmatprep.subr.bf16.mxu0 0
        %3746 = vmatpush1.bf16.msra.mxu0 %v3716
        %3747 = vmatprep.subr.bf16.mxu0 0
        %3748 = vmatpush1.bf16.msra.mxu0 %v3714
        %3749 = vmatprep.subr.bf16.mxu0 0
        %3750 = vmatpush1.bf16.msra.mxu0 %v3712
        %3751 = vmatprep.subr.bf16.mxu0 0
        %3752 = vmatpush2.bf16.msra.mxu0 0
        %3753 = vmatprep.subr.bf16.mxu0 0
        %3754 = vmatpush2.bf16.msra.mxu0 0
        %3755 = vmatprep.subr.bf16.mxu0 0
        %3756 = vmatpush2.bf16.msra.mxu0 0
        %3757 = vmatprep.subr.bf16.mxu0 0
        %3758 = vmatpush2.bf16.msra.mxu0 0
        %3759 = vmatprep.subr.bf16.mxu0 0
        %3760 = vmatpush2.bf16.msra.mxu0 0
        %3761 = vmatprep.subr.bf16.mxu0 0
        %3762 = vmatpush2.bf16.msra.mxu0 0
        %3763 = vmatprep.subr.bf16.mxu0 0
        %3764 = vmatpush2.bf16.msra.mxu0 0
        %3765 = vmatprep.subr.bf16.mxu0 0
        %3766 = vmatpush2.bf16.msra.mxu0 0
        %3767 = vmatprep.mubr.bf16.mxu0 0
        %3768 = vmatmul.mubr.bf16.gmra.mxu0 %v3695
        %v3769 = vpop.f32.mrf.mxu0
        %v3770 = vadd.f32 0.0, %v3769
        %v3771 = vpop.f32.mrf.mxu0
        %v3772 = vpop.f32.mrf.mxu0
        %v3773 = vadd.f32 0.0, %v3772
        %v3774 = vpop.f32.mrf.mxu0
        %3775 = vmatprep.mubr.bf16.mxu0 0
        %3776 = vmatmul.mubr.bf16.gmra.mxu0 %v3696
        %v3777 = vpop.f32.mrf.mxu0
        %v3778 = vadd.f32 0.0, %v3777
        %v3779 = vpop.f32.mrf.mxu0
        %v3780 = vpop.f32.mrf.mxu0
        %v3781 = vadd.f32 0.0, %v3780
        %v3782 = vpop.f32.mrf.mxu0
        %3783 = vmatprep.mubr.bf16.mxu0 0
        %3784 = vmatmul.mubr.bf16.gmra.mxu0 %v3697
        %v3785 = vpop.f32.mrf.mxu0
        %v3786 = vadd.f32 0.0, %v3785
        %v3787 = vpop.f32.mrf.mxu0
        %v3788 = vpop.f32.mrf.mxu0
        %v3789 = vadd.f32 0.0, %v3788
        %v3790 = vpop.f32.mrf.mxu0
        %3791 = vmatprep.mubr.bf16.mxu0 0
        %3792 = vmatmul.mubr.bf16.gmra.mxu0 %v3698
        %v3793 = vpop.f32.mrf.mxu0
        %v3794 = vadd.f32 0.0, %v3793
        %v3795 = vpop.f32.mrf.mxu0
        %v3796 = vpop.f32.mrf.mxu0
        %v3797 = vadd.f32 0.0, %v3796
        %v3798 = vpop.f32.mrf.mxu0
        %3799 = vmatprep.mubr.bf16.mxu0 0
        %3800 = vmatmul.mubr.bf16.gmra.mxu0 %v3699
        %v3801 = vpop.f32.mrf.mxu0
        %v3802 = vadd.f32 0.0, %v3801
        %v3803 = vpop.f32.mrf.mxu0
        %v3804 = vpop.f32.mrf.mxu0
        %v3805 = vadd.f32 0.0, %v3804
        %v3806 = vpop.f32.mrf.mxu0
        %3807 = vmatprep.mubr.bf16.mxu0 0
        %3808 = vmatmul.mubr.bf16.gmra.mxu0 %v3700
        %v3809 = vpop.f32.mrf.mxu0
        %v3810 = vadd.f32 0.0, %v3809
        %v3811 = vpop.f32.mrf.mxu0
        %v3812 = vpop.f32.mrf.mxu0
        %v3813 = vadd.f32 0.0, %v3812
        %v3814 = vpop.f32.mrf.mxu0
        %3815 = vmatprep.mubr.bf16.mxu0 0
        %3816 = vmatmul.mubr.bf16.gmra.mxu0 %v3701
        %v3817 = vpop.f32.mrf.mxu0
        %v3818 = vadd.f32 0.0, %v3817
        %v3819 = vpop.f32.mrf.mxu0
        %v3820 = vpop.f32.mrf.mxu0
        %v3821 = vadd.f32 0.0, %v3820
        %v3822 = vpop.f32.mrf.mxu0
        %3823 = vmatprep.mubr.bf16.mxu0 0
        %3824 = vmatmul.mubr.bf16.gmra.mxu0 %v3702
        %v3825 = vpop.f32.mrf.mxu0
        %v3826 = vadd.f32 0.0, %v3825
        %v3827 = vpop.f32.mrf.mxu0
        %v3828 = vpop.f32.mrf.mxu0
        %v3829 = vadd.f32 0.0, %v3828
        %v3830 = vpop.f32.mrf.mxu0
        %3831 = vdwg.mxu0
        %v3832 = vmul.f32 %v3770, %v3679
        %v3833 = vmul.f32 %v3773, %v3680
        %v3834 = vmul.f32 %v3778, %v3681
        %v3835 = vmul.f32 %v3781, %v3682
        %v3836 = vmul.f32 %v3786, %v3683
        %v3837 = vmul.f32 %v3789, %v3684
        %v3838 = vmul.f32 %v3794, %v3685
        %v3839 = vmul.f32 %v3797, %v3686
        %v3840 = vmul.f32 %v3802, %v3687
        %v3841 = vmul.f32 %v3805, %v3688
        %v3842 = vmul.f32 %v3810, %v3689
        %v3843 = vmul.f32 %v3813, %v3690
        %v3844 = vmul.f32 %v3818, %v3691
        %v3845 = vmul.f32 %v3821, %v3692
        %v3846 = vmul.f32 %v3826, %v3693
        %v3847 = vmul.f32 %v3829, %v3694
        %v3848 = vpack.c.bf16 %v3833, %v3832
        %v3849 = vpack.c.bf16 %v3835, %v3834
        %v3850 = vpack.c.bf16 %v3837, %v3836
        %v3851 = vpack.c.bf16 %v3839, %v3838
        %v3852 = vpack.c.bf16 %v3841, %v3840
        %v3853 = vpack.c.bf16 %v3843, %v3842
        %v3854 = vpack.c.bf16 %v3845, %v3844
        %v3855 = vpack.c.bf16 %v3847, %v3846
        %v3857 = vsel %vm2971, %v2849, 0
        %v3860 = vsel %vm2971, %v2858, 0
        %v3863 = vsel %vm2971, %v2867, 0
        %v3866 = vsel %vm2971, %v2876, 0
        %v3869 = vsel %vm2971, %v2885, 0
        %v3872 = vsel %vm2971, %v2894, 0
        %v3875 = vsel %vm2971, %v2903, 0
        %v3878 = vsel %vm2971, %v2912, 0
        %v3881 = vsel %vm2971, %v2852, 0
        %v3884 = vsel %vm2971, %v2861, 0
        %v3887 = vsel %vm2971, %v2870, 0
        %v3890 = vsel %vm2971, %v2879, 0
        %v3893 = vsel %vm2971, %v2888, 0
        %v3896 = vsel %vm2971, %v2897, 0
        %v3899 = vsel %vm2971, %v2906, 0
        %v3902 = vsel %vm2971, %v2915, 0
        %3904 = vmatprep.subr.bf16.mxu0 0
        %3905 = vmatpush1.bf16.xpose.msra.mxu0 %v3902
        %3906 = vmatprep.subr.bf16.mxu0 0
        %3907 = vmatpush1.bf16.xpose.msra.mxu0 %v3899
        %3908 = vmatprep.subr.bf16.mxu0 0
        %3909 = vmatpush1.bf16.xpose.msra.mxu0 %v3896
        %3910 = vmatprep.subr.bf16.mxu0 0
        %3911 = vmatpush1.bf16.xpose.msra.mxu0 %v3893
        %3912 = vmatprep.subr.bf16.mxu0 0
        %3913 = vmatpush1.bf16.xpose.msra.mxu0 %v3890
        %3914 = vmatprep.subr.bf16.mxu0 0
        %3915 = vmatpush1.bf16.xpose.msra.mxu0 %v3887
        %3916 = vmatprep.subr.bf16.mxu0 0
        %3917 = vmatpush1.bf16.xpose.msra.mxu0 %v3884
        %3918 = vmatprep.subr.bf16.mxu0 0
        %3919 = vmatpush1.bf16.xpose.msra.mxu0 %v3881
        %3920 = vmatprep.subr.bf16.mxu0 0
        %3921 = vmatpush2.bf16.xpose.msra.mxu0 0
        %3922 = vmatprep.subr.bf16.mxu0 0
        %3923 = vmatpush2.bf16.xpose.msra.mxu0 0
        %3924 = vmatprep.subr.bf16.mxu0 0
        %3925 = vmatpush2.bf16.xpose.msra.mxu0 0
        %3926 = vmatprep.subr.bf16.mxu0 0
        %3927 = vmatpush2.bf16.xpose.msra.mxu0 0
        %3928 = vmatprep.subr.bf16.mxu0 0
        %3929 = vmatpush2.bf16.xpose.msra.mxu0 0
        %3930 = vmatprep.subr.bf16.mxu0 0
        %3931 = vmatpush2.bf16.xpose.msra.mxu0 0
        %3932 = vmatprep.subr.bf16.mxu0 0
        %3933 = vmatpush2.bf16.xpose.msra.mxu0 0
        %3934 = vmatprep.subr.bf16.mxu0 0
        %3935 = vmatpush2.bf16.xpose.msra.mxu0 0
        %3936 = vmatprep.mubr.bf16.mxu0 0
        %3937 = vmatmul.mubr.bf16.gmra.mxu0 %v3857
        %v3938 = vpop.f32.mrf.mxu0
        %v3939 = vadd.f32 %v2955, %v3938
        %v3940 = vpop.f32.mrf.mxu0
        %v3941 = vpop.f32.mrf.mxu0
        %v3942 = vadd.f32 %v2956, %v3941
        %v3943 = vpop.f32.mrf.mxu0
        %3944 = vmatprep.mubr.bf16.mxu0 0
        %3945 = vmatmul.mubr.bf16.gmra.mxu0 %v3860
        %v3946 = vpop.f32.mrf.mxu0
        %v3947 = vadd.f32 %v2957, %v3946
        %v3948 = vpop.f32.mrf.mxu0
        %v3949 = vpop.f32.mrf.mxu0
        %v3950 = vadd.f32 %v2958, %v3949
        %v3951 = vpop.f32.mrf.mxu0
        %3952 = vmatprep.mubr.bf16.mxu0 0
        %3953 = vmatmul.mubr.bf16.gmra.mxu0 %v3863
        %v3954 = vpop.f32.mrf.mxu0
        %v3955 = vadd.f32 %v2959, %v3954
        %v3956 = vpop.f32.mrf.mxu0
        %v3957 = vpop.f32.mrf.mxu0
        %v3958 = vadd.f32 %v2960, %v3957
        %v3959 = vpop.f32.mrf.mxu0
        %3960 = vmatprep.mubr.bf16.mxu0 0
        %3961 = vmatmul.mubr.bf16.gmra.mxu0 %v3866
        %v3962 = vpop.f32.mrf.mxu0
        %v3963 = vadd.f32 %v2961, %v3962
        %v3964 = vpop.f32.mrf.mxu0
        %v3965 = vpop.f32.mrf.mxu0
        %v3966 = vadd.f32 %v2962, %v3965
        %v3967 = vpop.f32.mrf.mxu0
        %3968 = vmatprep.mubr.bf16.mxu0 0
        %3969 = vmatmul.mubr.bf16.gmra.mxu0 %v3869
        %v3970 = vpop.f32.mrf.mxu0
        %v3971 = vadd.f32 %v2963, %v3970
        %v3972 = vpop.f32.mrf.mxu0
        %v3973 = vpop.f32.mrf.mxu0
        %v3974 = vadd.f32 %v2964, %v3973
        %v3975 = vpop.f32.mrf.mxu0
        %3976 = vmatprep.mubr.bf16.mxu0 0
        %3977 = vmatmul.mubr.bf16.gmra.mxu0 %v3872
        %v3978 = vpop.f32.mrf.mxu0
        %v3979 = vadd.f32 %v2965, %v3978
        %v3980 = vpop.f32.mrf.mxu0
        %v3981 = vpop.f32.mrf.mxu0
        %v3982 = vadd.f32 %v2966, %v3981
        %v3983 = vpop.f32.mrf.mxu0
        %3984 = vmatprep.mubr.bf16.mxu0 0
        %3985 = vmatmul.mubr.bf16.gmra.mxu0 %v3875
        %v3986 = vpop.f32.mrf.mxu0
        %v3987 = vadd.f32 %v2967, %v3986
        %v3988 = vpop.f32.mrf.mxu0
        %v3989 = vpop.f32.mrf.mxu0
        %v3990 = vadd.f32 %v2968, %v3989
        %v3991 = vpop.f32.mrf.mxu0
        %3992 = vmatprep.mubr.bf16.mxu0 0
        %3993 = vmatmul.mubr.bf16.gmra.mxu0 %v3878
        %v3994 = vpop.f32.mrf.mxu0
        %v3995 = vadd.f32 %v2969, %v3994
        %v3996 = vpop.f32.mrf.mxu0
        %v3997 = vpop.f32.mrf.mxu0
        %v3998 = vadd.f32 %v2970, %v3997
        %v3999 = vpop.f32.mrf.mxu0
        %4000 = vdwg.mxu0
        %4001 = vmax.xlane.f32.xlu0 %v3939
        %v4002 = vpop.xlane.xlu0 %4001
        %4003 = vmax.xlane.f32.xlu0 %v3942
        %v4004 = vpop.xlane.xlu0 %4003
        %4005 = vmax.xlane.f32.xlu0 %v3947
        %v4006 = vpop.xlane.xlu0 %4005
        %4007 = vmax.xlane.f32.xlu0 %v3950
        %v4008 = vpop.xlane.xlu0 %4007
        %4009 = vmax.xlane.f32.xlu0 %v3955
        %v4010 = vpop.xlane.xlu0 %4009
        %4011 = vmax.xlane.f32.xlu0 %v3958
        %v4012 = vpop.xlane.xlu0 %4011
        %4013 = vmax.xlane.f32.xlu0 %v3963
        %v4014 = vpop.xlane.xlu0 %4013
        %4015 = vmax.xlane.f32.xlu0 %v3966
        %v4016 = vpop.xlane.xlu0 %4015
        %4017 = vmax.xlane.f32.xlu0 %v3971
        %v4018 = vpop.xlane.xlu0 %4017
        %4019 = vmax.xlane.f32.xlu0 %v3974
        %v4020 = vpop.xlane.xlu0 %4019
        %4021 = vmax.xlane.f32.xlu0 %v3979
        %v4022 = vpop.xlane.xlu0 %4021
        %4023 = vmax.xlane.f32.xlu0 %v3982
        %v4024 = vpop.xlane.xlu0 %4023
        %4025 = vmax.xlane.f32.xlu0 %v3987
        %v4026 = vpop.xlane.xlu0 %4025
        %4027 = vmax.xlane.f32.xlu0 %v3990
        %v4028 = vpop.xlane.xlu0 %4027
        %4029 = vmax.xlane.f32.xlu0 %v3995
        %v4030 = vpop.xlane.xlu0 %4029
        %4031 = vmax.xlane.f32.xlu0 %v3998
        %v4032 = vpop.xlane.xlu0 %4031
        %v4033 = vsub.f32 %v3939, %v4002
        %v4034 = vsub.f32 %v3942, %v4004
        %v4035 = vsub.f32 %v3947, %v4006
        %v4036 = vsub.f32 %v3950, %v4008
        %v4037 = vsub.f32 %v3955, %v4010
        %v4038 = vsub.f32 %v3958, %v4012
        %v4039 = vsub.f32 %v3963, %v4014
        %v4040 = vsub.f32 %v3966, %v4016
        %v4041 = vsub.f32 %v3971, %v4018
        %v4042 = vsub.f32 %v3974, %v4020
        %v4043 = vsub.f32 %v3979, %v4022
        %v4044 = vsub.f32 %v3982, %v4024
        %v4045 = vsub.f32 %v3987, %v4026
        %v4046 = vsub.f32 %v3990, %v4028
        %v4047 = vsub.f32 %v3995, %v4030
        %v4048 = vsub.f32 %v3998, %v4032
        %v4049 = vmul.f32 %v4033, 1.442695
        %v4050 = vpow.pop %v4049
        %v4051 = vmul.f32 %v4034, 1.442695
        %v4052 = vpow.pop %v4051
        %v4053 = vmul.f32 %v4035, 1.442695
        %v4054 = vpow.pop %v4053
        %v4055 = vmul.f32 %v4036, 1.442695
        %v4056 = vpow.pop %v4055
        %v4057 = vmul.f32 %v4037, 1.442695
        %v4058 = vpow.pop %v4057
        %v4059 = vmul.f32 %v4038, 1.442695
        %v4060 = vpow.pop %v4059
        %v4061 = vmul.f32 %v4039, 1.442695
        %v4062 = vpow.pop %v4061
        %v4063 = vmul.f32 %v4040, 1.442695
        %v4064 = vpow.pop %v4063
        %v4065 = vmul.f32 %v4041, 1.442695
        %v4066 = vpow.pop %v4065
        %v4067 = vmul.f32 %v4042, 1.442695
        %v4068 = vpow.pop %v4067
        %v4069 = vmul.f32 %v4043, 1.442695
        %v4070 = vpow.pop %v4069
        %v4071 = vmul.f32 %v4044, 1.442695
        %v4072 = vpow.pop %v4071
        %v4073 = vmul.f32 %v4045, 1.442695
        %v4074 = vpow.pop %v4073
        %v4075 = vmul.f32 %v4046, 1.442695
        %v4076 = vpow.pop %v4075
        %v4077 = vmul.f32 %v4047, 1.442695
        %v4078 = vpow.pop %v4077
        %v4079 = vmul.f32 %v4048, 1.442695
        %v4080 = vpow.pop %v4079
        %4081 = vadd.xlane.f32.xlu0 %v4050
        %v4082 = vpop.xlane.xlu0 %4081
        %4083 = vadd.xlane.f32.xlu0 %v4052
        %v4084 = vpop.xlane.xlu0 %4083
        %4085 = vadd.xlane.f32.xlu0 %v4054
        %v4086 = vpop.xlane.xlu0 %4085
        %4087 = vadd.xlane.f32.xlu0 %v4056
        %v4088 = vpop.xlane.xlu0 %4087
        %4089 = vadd.xlane.f32.xlu0 %v4058
        %v4090 = vpop.xlane.xlu0 %4089
        %4091 = vadd.xlane.f32.xlu0 %v4060
        %v4092 = vpop.xlane.xlu0 %4091
        %4093 = vadd.xlane.f32.xlu0 %v4062
        %v4094 = vpop.xlane.xlu0 %4093
        %4095 = vadd.xlane.f32.xlu0 %v4064
        %v4096 = vpop.xlane.xlu0 %4095
        %4097 = vadd.xlane.f32.xlu0 %v4066
        %v4098 = vpop.xlane.xlu0 %4097
        %4099 = vadd.xlane.f32.xlu0 %v4068
        %v4100 = vpop.xlane.xlu0 %4099
        %4101 = vadd.xlane.f32.xlu0 %v4070
        %v4102 = vpop.xlane.xlu0 %4101
        %4103 = vadd.xlane.f32.xlu0 %v4072
        %v4104 = vpop.xlane.xlu0 %4103
        %4105 = vadd.xlane.f32.xlu0 %v4074
        %v4106 = vpop.xlane.xlu0 %4105
        %4107 = vadd.xlane.f32.xlu0 %v4076
        %v4108 = vpop.xlane.xlu0 %4107
        %4109 = vadd.xlane.f32.xlu0 %v4078
        %v4110 = vpop.xlane.xlu0 %4109
        %4111 = vadd.xlane.f32.xlu0 %v4080
        %v4112 = vpop.xlane.xlu0 %4111
        %v4113 = vrcp.pop %v4082
        %v4114 = vrcp.pop %v4084
        %v4115 = vrcp.pop %v4086
        %v4116 = vrcp.pop %v4088
        %v4117 = vrcp.pop %v4090
        %v4118 = vrcp.pop %v4092
        %v4119 = vrcp.pop %v4094
        %v4120 = vrcp.pop %v4096
        %v4121 = vrcp.pop %v4098
        %v4122 = vrcp.pop %v4100
        %v4123 = vrcp.pop %v4102
        %v4124 = vrcp.pop %v4104
        %v4125 = vrcp.pop %v4106
        %v4126 = vrcp.pop %v4108
        %v4127 = vrcp.pop %v4110
        %v4128 = vrcp.pop %v4112
        %v4129 = vpack.c.bf16 %v4052, %v4050
        %v4130 = vpack.c.bf16 %v4056, %v4054
        %v4131 = vpack.c.bf16 %v4060, %v4058
        %v4132 = vpack.c.bf16 %v4064, %v4062
        %v4133 = vpack.c.bf16 %v4068, %v4066
        %v4134 = vpack.c.bf16 %v4072, %v4070
        %v4135 = vpack.c.bf16 %v4076, %v4074
        %v4136 = vpack.c.bf16 %v4080, %v4078
        %4137 = vmatprep.subr.bf16.mxu0 0
        %4138 = vmatpush1.bf16.msra.mxu0 %v2918
        %4139 = vmatprep.subr.bf16.mxu0 0
        %4140 = vmatpush1.bf16.msra.mxu0 %v2909
        %4141 = vmatprep.subr.bf16.mxu0 0
        %4142 = vmatpush1.bf16.msra.mxu0 %v2900
        %4143 = vmatprep.subr.bf16.mxu0 0
        %4144 = vmatpush1.bf16.msra.mxu0 %v2891
        %4145 = vmatprep.subr.bf16.mxu0 0
        %4146 = vmatpush1.bf16.msra.mxu0 %v2882
        %4147 = vmatprep.subr.bf16.mxu0 0
        %4148 = vmatpush1.bf16.msra.mxu0 %v2873
        %4149 = vmatprep.subr.bf16.mxu0 0
        %4150 = vmatpush1.bf16.msra.mxu0 %v2864
        %4151 = vmatprep.subr.bf16.mxu0 0
        %4152 = vmatpush1.bf16.msra.mxu0 %v2855
        %4153 = vmatprep.subr.bf16.mxu0 0
        %4154 = vmatpush2.bf16.msra.mxu0 0
        %4155 = vmatprep.subr.bf16.mxu0 0
        %4156 = vmatpush2.bf16.msra.mxu0 0
        %4157 = vmatprep.subr.bf16.mxu0 0
        %4158 = vmatpush2.bf16.msra.mxu0 0
        %4159 = vmatprep.subr.bf16.mxu0 0
        %4160 = vmatpush2.bf16.msra.mxu0 0
        %4161 = vmatprep.subr.bf16.mxu0 0
        %4162 = vmatpush2.bf16.msra.mxu0 0
        %4163 = vmatprep.subr.bf16.mxu0 0
        %4164 = vmatpush2.bf16.msra.mxu0 0
        %4165 = vmatprep.subr.bf16.mxu0 0
        %4166 = vmatpush2.bf16.msra.mxu0 0
        %4167 = vmatprep.subr.bf16.mxu0 0
        %4168 = vmatpush2.bf16.msra.mxu0 0
        %4169 = vmatprep.mubr.bf16.mxu0 0
        %4170 = vmatmul.mubr.bf16.gmra.mxu0 %v4129
        %v4171 = vpop.f32.mrf.mxu0
        %v4172 = vadd.f32 0.0, %v4171
        %v4173 = vpop.f32.mrf.mxu0
        %v4174 = vpop.f32.mrf.mxu0
        %v4175 = vadd.f32 0.0, %v4174
        %v4176 = vpop.f32.mrf.mxu0
        %4177 = vmatprep.mubr.bf16.mxu0 0
        %4178 = vmatmul.mubr.bf16.gmra.mxu0 %v4130
        %v4179 = vpop.f32.mrf.mxu0
        %v4180 = vadd.f32 0.0, %v4179
        %v4181 = vpop.f32.mrf.mxu0
        %v4182 = vpop.f32.mrf.mxu0
        %v4183 = vadd.f32 0.0, %v4182
        %v4184 = vpop.f32.mrf.mxu0
        %4185 = vmatprep.mubr.bf16.mxu0 0
        %4186 = vmatmul.mubr.bf16.gmra.mxu0 %v4131
        %v4187 = vpop.f32.mrf.mxu0
        %v4188 = vadd.f32 0.0, %v4187
        %v4189 = vpop.f32.mrf.mxu0
        %v4190 = vpop.f32.mrf.mxu0
        %v4191 = vadd.f32 0.0, %v4190
        %v4192 = vpop.f32.mrf.mxu0
        %4193 = vmatprep.mubr.bf16.mxu0 0
        %4194 = vmatmul.mubr.bf16.gmra.mxu0 %v4132
        %v4195 = vpop.f32.mrf.mxu0
        %v4196 = vadd.f32 0.0, %v4195
        %v4197 = vpop.f32.mrf.mxu0
        %v4198 = vpop.f32.mrf.mxu0
        %v4199 = vadd.f32 0.0, %v4198
        %v4200 = vpop.f32.mrf.mxu0
        %4201 = vmatprep.mubr.bf16.mxu0 0
        %4202 = vmatmul.mubr.bf16.gmra.mxu0 %v4133
        %v4203 = vpop.f32.mrf.mxu0
        %v4204 = vadd.f32 0.0, %v4203
        %v4205 = vpop.f32.mrf.mxu0
        %v4206 = vpop.f32.mrf.mxu0
        %v4207 = vadd.f32 0.0, %v4206
        %v4208 = vpop.f32.mrf.mxu0
        %4209 = vmatprep.mubr.bf16.mxu0 0
        %4210 = vmatmul.mubr.bf16.gmra.mxu0 %v4134
        %v4211 = vpop.f32.mrf.mxu0
        %v4212 = vadd.f32 0.0, %v4211
        %v4213 = vpop.f32.mrf.mxu0
        %v4214 = vpop.f32.mrf.mxu0
        %v4215 = vadd.f32 0.0, %v4214
        %v4216 = vpop.f32.mrf.mxu0
        %4217 = vmatprep.mubr.bf16.mxu0 0
        %4218 = vmatmul.mubr.bf16.gmra.mxu0 %v4135
        %v4219 = vpop.f32.mrf.mxu0
        %v4220 = vadd.f32 0.0, %v4219
        %v4221 = vpop.f32.mrf.mxu0
        %v4222 = vpop.f32.mrf.mxu0
        %v4223 = vadd.f32 0.0, %v4222
        %v4224 = vpop.f32.mrf.mxu0
        %4225 = vmatprep.mubr.bf16.mxu0 0
        %4226 = vmatmul.mubr.bf16.gmra.mxu0 %v4136
        %v4227 = vpop.f32.mrf.mxu0
        %v4228 = vadd.f32 0.0, %v4227
        %v4229 = vpop.f32.mrf.mxu0
        %v4230 = vpop.f32.mrf.mxu0
        %v4231 = vadd.f32 0.0, %v4230
        %v4232 = vpop.f32.mrf.mxu0
        %4233 = vdwg.mxu0
        %v4234 = vmul.f32 %v4172, %v4113
        %v4235 = vmul.f32 %v4175, %v4114
        %v4236 = vmul.f32 %v4180, %v4115
        %v4237 = vmul.f32 %v4183, %v4116
        %v4238 = vmul.f32 %v4188, %v4117
        %v4239 = vmul.f32 %v4191, %v4118
        %v4240 = vmul.f32 %v4196, %v4119
        %v4241 = vmul.f32 %v4199, %v4120
        %v4242 = vmul.f32 %v4204, %v4121
        %v4243 = vmul.f32 %v4207, %v4122
        %v4244 = vmul.f32 %v4212, %v4123
        %v4245 = vmul.f32 %v4215, %v4124
        %v4246 = vmul.f32 %v4220, %v4125
        %v4247 = vmul.f32 %v4223, %v4126
        %v4248 = vmul.f32 %v4228, %v4127
        %v4249 = vmul.f32 %v4231, %v4128
        %v4250 = vpack.c.bf16 %v4235, %v4234
        %v4251 = vpack.c.bf16 %v4237, %v4236
        %v4252 = vpack.c.bf16 %v4239, %v4238
        %v4253 = vpack.c.bf16 %v4241, %v4240
        %v4254 = vpack.c.bf16 %v4243, %v4242
        %v4255 = vpack.c.bf16 %v4245, %v4244
        %v4256 = vpack.c.bf16 %v4247, %v4246
        %v4257 = vpack.c.bf16 %v4249, %v4248
        %4266 = vrot.lane.b32.xlu0 %v2849, 64
        %v4267 = vpop.permute.xlu0 %4266
        %4268 = vrot.lane.b32.xlu0 %v2858, 64
        %v4269 = vpop.permute.xlu0 %4268
        %4270 = vrot.lane.b32.xlu0 %v2867, 64
        %v4271 = vpop.permute.xlu0 %4270
        %4272 = vrot.lane.b32.xlu0 %v2876, 64
        %v4273 = vpop.permute.xlu0 %4272
        %4274 = vrot.lane.b32.xlu0 %v2885, 64
        %v4275 = vpop.permute.xlu0 %4274
        %4276 = vrot.lane.b32.xlu0 %v2894, 64
        %v4277 = vpop.permute.xlu0 %4276
        %4278 = vrot.lane.b32.xlu0 %v2903, 64
        %v4279 = vpop.permute.xlu0 %4278
        %4280 = vrot.lane.b32.xlu0 %v2912, 64
        %v4281 = vpop.permute.xlu0 %4280
        %4290 = vrot.lane.b32.xlu0 %v2852, 64
        %v4291 = vpop.permute.xlu0 %4290
        %4292 = vrot.lane.b32.xlu0 %v2861, 64
        %v4293 = vpop.permute.xlu0 %4292
        %4294 = vrot.lane.b32.xlu0 %v2870, 64
        %v4295 = vpop.permute.xlu0 %4294
        %4296 = vrot.lane.b32.xlu0 %v2879, 64
        %v4297 = vpop.permute.xlu0 %4296
        %4298 = vrot.lane.b32.xlu0 %v2888, 64
        %v4299 = vpop.permute.xlu0 %4298
        %4300 = vrot.lane.b32.xlu0 %v2897, 64
        %v4301 = vpop.permute.xlu0 %4300
        %4302 = vrot.lane.b32.xlu0 %v2906, 64
        %v4303 = vpop.permute.xlu0 %4302
        %4304 = vrot.lane.b32.xlu0 %v2915, 64
        %v4305 = vpop.permute.xlu0 %4304
        %v4307 = vsel %vm2971, %v4267, 0
        %v4310 = vsel %vm2971, %v4269, 0
        %v4313 = vsel %vm2971, %v4271, 0
        %v4316 = vsel %vm2971, %v4273, 0
        %v4319 = vsel %vm2971, %v4275, 0
        %v4322 = vsel %vm2971, %v4277, 0
        %v4325 = vsel %vm2971, %v4279, 0
        %v4328 = vsel %vm2971, %v4281, 0
        %v4331 = vsel %vm2971, %v4291, 0
        %v4334 = vsel %vm2971, %v4293, 0
        %v4337 = vsel %vm2971, %v4295, 0
        %v4340 = vsel %vm2971, %v4297, 0
        %v4343 = vsel %vm2971, %v4299, 0
        %v4346 = vsel %vm2971, %v4301, 0
        %v4349 = vsel %vm2971, %v4303, 0
        %v4352 = vsel %vm2971, %v4305, 0
        %4354 = vmatprep.subr.bf16.mxu0 0
        %4355 = vmatpush1.bf16.xpose.msra.mxu0 %v4352
        %4356 = vmatprep.subr.bf16.mxu0 0
        %4357 = vmatpush1.bf16.xpose.msra.mxu0 %v4349
        %4358 = vmatprep.subr.bf16.mxu0 0
        %4359 = vmatpush1.bf16.xpose.msra.mxu0 %v4346
        %4360 = vmatprep.subr.bf16.mxu0 0
        %4361 = vmatpush1.bf16.xpose.msra.mxu0 %v4343
        %4362 = vmatprep.subr.bf16.mxu0 0
        %4363 = vmatpush1.bf16.xpose.msra.mxu0 %v4340
        %4364 = vmatprep.subr.bf16.mxu0 0
        %4365 = vmatpush1.bf16.xpose.msra.mxu0 %v4337
        %4366 = vmatprep.subr.bf16.mxu0 0
        %4367 = vmatpush1.bf16.xpose.msra.mxu0 %v4334
        %4368 = vmatprep.subr.bf16.mxu0 0
        %4369 = vmatpush1.bf16.xpose.msra.mxu0 %v4331
        %4370 = vmatprep.subr.bf16.mxu0 0
        %4371 = vmatpush2.bf16.xpose.msra.mxu0 0
        %4372 = vmatprep.subr.bf16.mxu0 0
        %4373 = vmatpush2.bf16.xpose.msra.mxu0 0
        %4374 = vmatprep.subr.bf16.mxu0 0
        %4375 = vmatpush2.bf16.xpose.msra.mxu0 0
        %4376 = vmatprep.subr.bf16.mxu0 0
        %4377 = vmatpush2.bf16.xpose.msra.mxu0 0
        %4378 = vmatprep.subr.bf16.mxu0 0
        %4379 = vmatpush2.bf16.xpose.msra.mxu0 0
        %4380 = vmatprep.subr.bf16.mxu0 0
        %4381 = vmatpush2.bf16.xpose.msra.mxu0 0
        %4382 = vmatprep.subr.bf16.mxu0 0
        %4383 = vmatpush2.bf16.xpose.msra.mxu0 0
        %4384 = vmatprep.subr.bf16.mxu0 0
        %4385 = vmatpush2.bf16.xpose.msra.mxu0 0
        %4386 = vmatprep.mubr.bf16.mxu0 0
        %4387 = vmatmul.mubr.bf16.gmra.mxu0 %v4307
        %v4388 = vpop.f32.mrf.mxu0
        %v4389 = vadd.f32 %v2955, %v4388
        %v4390 = vpop.f32.mrf.mxu0
        %v4391 = vpop.f32.mrf.mxu0
        %v4392 = vadd.f32 %v2956, %v4391
        %v4393 = vpop.f32.mrf.mxu0
        %4394 = vmatprep.mubr.bf16.mxu0 0
        %4395 = vmatmul.mubr.bf16.gmra.mxu0 %v4310
        %v4396 = vpop.f32.mrf.mxu0
        %v4397 = vadd.f32 %v2957, %v4396
        %v4398 = vpop.f32.mrf.mxu0
        %v4399 = vpop.f32.mrf.mxu0
        %v4400 = vadd.f32 %v2958, %v4399
        %v4401 = vpop.f32.mrf.mxu0
        %4402 = vmatprep.mubr.bf16.mxu0 0
        %4403 = vmatmul.mubr.bf16.gmra.mxu0 %v4313
        %v4404 = vpop.f32.mrf.mxu0
        %v4405 = vadd.f32 %v2959, %v4404
        %v4406 = vpop.f32.mrf.mxu0
        %v4407 = vpop.f32.mrf.mxu0
        %v4408 = vadd.f32 %v2960, %v4407
        %v4409 = vpop.f32.mrf.mxu0
        %4410 = vmatprep.mubr.bf16.mxu0 0
        %4411 = vmatmul.mubr.bf16.gmra.mxu0 %v4316
        %v4412 = vpop.f32.mrf.mxu0
        %v4413 = vadd.f32 %v2961, %v4412
        %v4414 = vpop.f32.mrf.mxu0
        %v4415 = vpop.f32.mrf.mxu0
        %v4416 = vadd.f32 %v2962, %v4415
        %v4417 = vpop.f32.mrf.mxu0
        %4418 = vmatprep.mubr.bf16.mxu0 0
        %4419 = vmatmul.mubr.bf16.gmra.mxu0 %v4319
        %v4420 = vpop.f32.mrf.mxu0
        %v4421 = vadd.f32 %v2963, %v4420
        %v4422 = vpop.f32.mrf.mxu0
        %v4423 = vpop.f32.mrf.mxu0
        %v4424 = vadd.f32 %v2964, %v4423
        %v4425 = vpop.f32.mrf.mxu0
        %4426 = vmatprep.mubr.bf16.mxu0 0
        %4427 = vmatmul.mubr.bf16.gmra.mxu0 %v4322
        %v4428 = vpop.f32.mrf.mxu0
        %v4429 = vadd.f32 %v2965, %v4428
        %v4430 = vpop.f32.mrf.mxu0
        %v4431 = vpop.f32.mrf.mxu0
        %v4432 = vadd.f32 %v2966, %v4431
        %v4433 = vpop.f32.mrf.mxu0
        %4434 = vmatprep.mubr.bf16.mxu0 0
        %4435 = vmatmul.mubr.bf16.gmra.mxu0 %v4325
        %v4436 = vpop.f32.mrf.mxu0
        %v4437 = vadd.f32 %v2967, %v4436
        %v4438 = vpop.f32.mrf.mxu0
        %v4439 = vpop.f32.mrf.mxu0
        %v4440 = vadd.f32 %v2968, %v4439
        %v4441 = vpop.f32.mrf.mxu0
        %4442 = vmatprep.mubr.bf16.mxu0 0
        %4443 = vmatmul.mubr.bf16.gmra.mxu0 %v4328
        %v4444 = vpop.f32.mrf.mxu0
        %v4445 = vadd.f32 %v2969, %v4444
        %v4446 = vpop.f32.mrf.mxu0
        %v4447 = vpop.f32.mrf.mxu0
        %v4448 = vadd.f32 %v2970, %v4447
        %v4449 = vpop.f32.mrf.mxu0
        %4450 = vdwg.mxu0
        %4451 = vmax.xlane.f32.xlu0 %v4389
        %v4452 = vpop.xlane.xlu0 %4451
        %4453 = vmax.xlane.f32.xlu0 %v4392
        %v4454 = vpop.xlane.xlu0 %4453
        %4455 = vmax.xlane.f32.xlu0 %v4397
        %v4456 = vpop.xlane.xlu0 %4455
        %4457 = vmax.xlane.f32.xlu0 %v4400
        %v4458 = vpop.xlane.xlu0 %4457
        %4459 = vmax.xlane.f32.xlu0 %v4405
        %v4460 = vpop.xlane.xlu0 %4459
        %4461 = vmax.xlane.f32.xlu0 %v4408
        %v4462 = vpop.xlane.xlu0 %4461
        %4463 = vmax.xlane.f32.xlu0 %v4413
        %v4464 = vpop.xlane.xlu0 %4463
        %4465 = vmax.xlane.f32.xlu0 %v4416
        %v4466 = vpop.xlane.xlu0 %4465
        %4467 = vmax.xlane.f32.xlu0 %v4421
        %v4468 = vpop.xlane.xlu0 %4467
        %4469 = vmax.xlane.f32.xlu0 %v4424
        %v4470 = vpop.xlane.xlu0 %4469
        %4471 = vmax.xlane.f32.xlu0 %v4429
        %v4472 = vpop.xlane.xlu0 %4471
        %4473 = vmax.xlane.f32.xlu0 %v4432
        %v4474 = vpop.xlane.xlu0 %4473
        %4475 = vmax.xlane.f32.xlu0 %v4437
        %v4476 = vpop.xlane.xlu0 %4475
        %4477 = vmax.xlane.f32.xlu0 %v4440
        %v4478 = vpop.xlane.xlu0 %4477
        %4479 = vmax.xlane.f32.xlu0 %v4445
        %v4480 = vpop.xlane.xlu0 %4479
        %4481 = vmax.xlane.f32.xlu0 %v4448
        %v4482 = vpop.xlane.xlu0 %4481
        %v4483 = vsub.f32 %v4389, %v4452
        %v4484 = vsub.f32 %v4392, %v4454
        %v4485 = vsub.f32 %v4397, %v4456
        %v4486 = vsub.f32 %v4400, %v4458
        %v4487 = vsub.f32 %v4405, %v4460
        %v4488 = vsub.f32 %v4408, %v4462
        %v4489 = vsub.f32 %v4413, %v4464
        %v4490 = vsub.f32 %v4416, %v4466
        %v4491 = vsub.f32 %v4421, %v4468
        %v4492 = vsub.f32 %v4424, %v4470
        %v4493 = vsub.f32 %v4429, %v4472
        %v4494 = vsub.f32 %v4432, %v4474
        %v4495 = vsub.f32 %v4437, %v4476
        %v4496 = vsub.f32 %v4440, %v4478
        %v4497 = vsub.f32 %v4445, %v4480
        %v4498 = vsub.f32 %v4448, %v4482
        %v4499 = vmul.f32 %v4483, 1.442695
        %v4500 = vpow.pop %v4499
        %v4501 = vmul.f32 %v4484, 1.442695
        %v4502 = vpow.pop %v4501
        %v4503 = vmul.f32 %v4485, 1.442695
        %v4504 = vpow.pop %v4503
        %v4505 = vmul.f32 %v4486, 1.442695
        %v4506 = vpow.pop %v4505
        %v4507 = vmul.f32 %v4487, 1.442695
        %v4508 = vpow.pop %v4507
        %v4509 = vmul.f32 %v4488, 1.442695
        %v4510 = vpow.pop %v4509
        %v4511 = vmul.f32 %v4489, 1.442695
        %v4512 = vpow.pop %v4511
        %v4513 = vmul.f32 %v4490, 1.442695
        %v4514 = vpow.pop %v4513
        %v4515 = vmul.f32 %v4491, 1.442695
        %v4516 = vpow.pop %v4515
        %v4517 = vmul.f32 %v4492, 1.442695
        %v4518 = vpow.pop %v4517
        %v4519 = vmul.f32 %v4493, 1.442695
        %v4520 = vpow.pop %v4519
        %v4521 = vmul.f32 %v4494, 1.442695
        %v4522 = vpow.pop %v4521
        %v4523 = vmul.f32 %v4495, 1.442695
        %v4524 = vpow.pop %v4523
        %v4525 = vmul.f32 %v4496, 1.442695
        %v4526 = vpow.pop %v4525
        %v4527 = vmul.f32 %v4497, 1.442695
        %v4528 = vpow.pop %v4527
        %v4529 = vmul.f32 %v4498, 1.442695
        %v4530 = vpow.pop %v4529
        %4531 = vadd.xlane.f32.xlu0 %v4500
        %v4532 = vpop.xlane.xlu0 %4531
        %4533 = vadd.xlane.f32.xlu0 %v4502
        %v4534 = vpop.xlane.xlu0 %4533
        %4535 = vadd.xlane.f32.xlu0 %v4504
        %v4536 = vpop.xlane.xlu0 %4535
        %4537 = vadd.xlane.f32.xlu0 %v4506
        %v4538 = vpop.xlane.xlu0 %4537
        %4539 = vadd.xlane.f32.xlu0 %v4508
        %v4540 = vpop.xlane.xlu0 %4539
        %4541 = vadd.xlane.f32.xlu0 %v4510
        %v4542 = vpop.xlane.xlu0 %4541
        %4543 = vadd.xlane.f32.xlu0 %v4512
        %v4544 = vpop.xlane.xlu0 %4543
        %4545 = vadd.xlane.f32.xlu0 %v4514
        %v4546 = vpop.xlane.xlu0 %4545
        %4547 = vadd.xlane.f32.xlu0 %v4516
        %v4548 = vpop.xlane.xlu0 %4547
        %4549 = vadd.xlane.f32.xlu0 %v4518
        %v4550 = vpop.xlane.xlu0 %4549
        %4551 = vadd.xlane.f32.xlu0 %v4520
        %v4552 = vpop.xlane.xlu0 %4551
        %4553 = vadd.xlane.f32.xlu0 %v4522
        %v4554 = vpop.xlane.xlu0 %4553
        %4555 = vadd.xlane.f32.xlu0 %v4524
        %v4556 = vpop.xlane.xlu0 %4555
        %4557 = vadd.xlane.f32.xlu0 %v4526
        %v4558 = vpop.xlane.xlu0 %4557
        %4559 = vadd.xlane.f32.xlu0 %v4528
        %v4560 = vpop.xlane.xlu0 %4559
        %4561 = vadd.xlane.f32.xlu0 %v4530
        %v4562 = vpop.xlane.xlu0 %4561
        %v4563 = vrcp.pop %v4532
        %v4564 = vrcp.pop %v4534
        %v4565 = vrcp.pop %v4536
        %v4566 = vrcp.pop %v4538
        %v4567 = vrcp.pop %v4540
        %v4568 = vrcp.pop %v4542
        %v4569 = vrcp.pop %v4544
        %v4570 = vrcp.pop %v4546
        %v4571 = vrcp.pop %v4548
        %v4572 = vrcp.pop %v4550
        %v4573 = vrcp.pop %v4552
        %v4574 = vrcp.pop %v4554
        %v4575 = vrcp.pop %v4556
        %v4576 = vrcp.pop %v4558
        %v4577 = vrcp.pop %v4560
        %v4578 = vrcp.pop %v4562
        %v4579 = vpack.c.bf16 %v4502, %v4500
        %v4580 = vpack.c.bf16 %v4506, %v4504
        %v4581 = vpack.c.bf16 %v4510, %v4508
        %v4582 = vpack.c.bf16 %v4514, %v4512
        %v4583 = vpack.c.bf16 %v4518, %v4516
        %v4584 = vpack.c.bf16 %v4522, %v4520
        %v4585 = vpack.c.bf16 %v4526, %v4524
        %v4586 = vpack.c.bf16 %v4530, %v4528
        %4595 = vrot.lane.b32.xlu0 %v2855, 64
        %v4596 = vpop.permute.xlu0 %4595
        %4597 = vrot.lane.b32.xlu0 %v2864, 64
        %v4598 = vpop.permute.xlu0 %4597
        %4599 = vrot.lane.b32.xlu0 %v2873, 64
        %v4600 = vpop.permute.xlu0 %4599
        %4601 = vrot.lane.b32.xlu0 %v2882, 64
        %v4602 = vpop.permute.xlu0 %4601
        %4603 = vrot.lane.b32.xlu0 %v2891, 64
        %v4604 = vpop.permute.xlu0 %4603
        %4605 = vrot.lane.b32.xlu0 %v2900, 64
        %v4606 = vpop.permute.xlu0 %4605
        %4607 = vrot.lane.b32.xlu0 %v2909, 64
        %v4608 = vpop.permute.xlu0 %4607
        %4609 = vrot.lane.b32.xlu0 %v2918, 64
        %v4610 = vpop.permute.xlu0 %4609
        %4619 = vmatprep.subr.bf16.mxu0 0
        %4620 = vmatpush1.bf16.msra.mxu0 %v4610
        %4621 = vmatprep.subr.bf16.mxu0 0
        %4622 = vmatpush1.bf16.msra.mxu0 %v4608
        %4623 = vmatprep.subr.bf16.mxu0 0
        %4624 = vmatpush1.bf16.msra.mxu0 %v4606
        %4625 = vmatprep.subr.bf16.mxu0 0
        %4626 = vmatpush1.bf16.msra.mxu0 %v4604
        %4627 = vmatprep.subr.bf16.mxu0 0
        %4628 = vmatpush1.bf16.msra.mxu0 %v4602
        %4629 = vmatprep.subr.bf16.mxu0 0
        %4630 = vmatpush1.bf16.msra.mxu0 %v4600
        %4631 = vmatprep.subr.bf16.mxu0 0
        %4632 = vmatpush1.bf16.msra.mxu0 %v4598
        %4633 = vmatprep.subr.bf16.mxu0 0
        %4634 = vmatpush1.bf16.msra.mxu0 %v4596
        %4635 = vmatprep.subr.bf16.mxu0 0
        %4636 = vmatpush2.bf16.msra.mxu0 0
        %4637 = vmatprep.subr.bf16.mxu0 0
        %4638 = vmatpush2.bf16.msra.mxu0 0
        %4639 = vmatprep.subr.bf16.mxu0 0
        %4640 = vmatpush2.bf16.msra.mxu0 0
        %4641 = vmatprep.subr.bf16.mxu0 0
        %4642 = vmatpush2.bf16.msra.mxu0 0
        %4643 = vmatprep.subr.bf16.mxu0 0
        %4644 = vmatpush2.bf16.msra.mxu0 0
        %4645 = vmatprep.subr.bf16.mxu0 0
        %4646 = vmatpush2.bf16.msra.mxu0 0
        %4647 = vmatprep.subr.bf16.mxu0 0
        %4648 = vmatpush2.bf16.msra.mxu0 0
        %4649 = vmatprep.subr.bf16.mxu0 0
        %4650 = vmatpush2.bf16.msra.mxu0 0
        %4651 = vmatprep.mubr.bf16.mxu0 0
        %4652 = vmatmul.mubr.bf16.gmra.mxu0 %v4579
        %v4653 = vpop.f32.mrf.mxu0
        %v4654 = vadd.f32 0.0, %v4653
        %v4655 = vpop.f32.mrf.mxu0
        %v4656 = vpop.f32.mrf.mxu0
        %v4657 = vadd.f32 0.0, %v4656
        %v4658 = vpop.f32.mrf.mxu0
        %4659 = vmatprep.mubr.bf16.mxu0 0
        %4660 = vmatmul.mubr.bf16.gmra.mxu0 %v4580
        %v4661 = vpop.f32.mrf.mxu0
        %v4662 = vadd.f32 0.0, %v4661
        %v4663 = vpop.f32.mrf.mxu0
        %v4664 = vpop.f32.mrf.mxu0
        %v4665 = vadd.f32 0.0, %v4664
        %v4666 = vpop.f32.mrf.mxu0
        %4667 = vmatprep.mubr.bf16.mxu0 0
        %4668 = vmatmul.mubr.bf16.gmra.mxu0 %v4581
        %v4669 = vpop.f32.mrf.mxu0
        %v4670 = vadd.f32 0.0, %v4669
        %v4671 = vpop.f32.mrf.mxu0
        %v4672 = vpop.f32.mrf.mxu0
        %v4673 = vadd.f32 0.0, %v4672
        %v4674 = vpop.f32.mrf.mxu0
        %4675 = vmatprep.mubr.bf16.mxu0 0
        %4676 = vmatmul.mubr.bf16.gmra.mxu0 %v4582
        %v4677 = vpop.f32.mrf.mxu0
        %v4678 = vadd.f32 0.0, %v4677
        %v4679 = vpop.f32.mrf.mxu0
        %v4680 = vpop.f32.mrf.mxu0
        %v4681 = vadd.f32 0.0, %v4680
        %v4682 = vpop.f32.mrf.mxu0
        %4683 = vmatprep.mubr.bf16.mxu0 0
        %4684 = vmatmul.mubr.bf16.gmra.mxu0 %v4583
        %v4685 = vpop.f32.mrf.mxu0
        %v4686 = vadd.f32 0.0, %v4685
        %v4687 = vpop.f32.mrf.mxu0
        %v4688 = vpop.f32.mrf.mxu0
        %v4689 = vadd.f32 0.0, %v4688
        %v4690 = vpop.f32.mrf.mxu0
        %4691 = vmatprep.mubr.bf16.mxu0 0
        %4692 = vmatmul.mubr.bf16.gmra.mxu0 %v4584
        %v4693 = vpop.f32.mrf.mxu0
        %v4694 = vadd.f32 0.0, %v4693
        %v4695 = vpop.f32.mrf.mxu0
        %v4696 = vpop.f32.mrf.mxu0
        %v4697 = vadd.f32 0.0, %v4696
        %v4698 = vpop.f32.mrf.mxu0
        %4699 = vmatprep.mubr.bf16.mxu0 0
        %4700 = vmatmul.mubr.bf16.gmra.mxu0 %v4585
        %v4701 = vpop.f32.mrf.mxu0
        %v4702 = vadd.f32 0.0, %v4701
        %v4703 = vpop.f32.mrf.mxu0
        %v4704 = vpop.f32.mrf.mxu0
        %v4705 = vadd.f32 0.0, %v4704
        %v4706 = vpop.f32.mrf.mxu0
        %4707 = vmatprep.mubr.bf16.mxu0 0
        %4708 = vmatmul.mubr.bf16.gmra.mxu0 %v4586
        %v4709 = vpop.f32.mrf.mxu0
        %v4710 = vadd.f32 0.0, %v4709
        %v4711 = vpop.f32.mrf.mxu0
        %v4712 = vpop.f32.mrf.mxu0
        %v4713 = vadd.f32 0.0, %v4712
        %v4714 = vpop.f32.mrf.mxu0
        %4715 = vdwg.mxu0
        %v4716 = vmul.f32 %v4654, %v4563
        %v4717 = vmul.f32 %v4657, %v4564
        %v4718 = vmul.f32 %v4662, %v4565
        %v4719 = vmul.f32 %v4665, %v4566
        %v4720 = vmul.f32 %v4670, %v4567
        %v4721 = vmul.f32 %v4673, %v4568
        %v4722 = vmul.f32 %v4678, %v4569
        %v4723 = vmul.f32 %v4681, %v4570
        %v4724 = vmul.f32 %v4686, %v4571
        %v4725 = vmul.f32 %v4689, %v4572
        %v4726 = vmul.f32 %v4694, %v4573
        %v4727 = vmul.f32 %v4697, %v4574
        %v4728 = vmul.f32 %v4702, %v4575
        %v4729 = vmul.f32 %v4705, %v4576
        %v4730 = vmul.f32 %v4710, %v4577
        %v4731 = vmul.f32 %v4713, %v4578
        %v4732 = vpack.c.bf16 %v4717, %v4716
        %v4733 = vpack.c.bf16 %v4719, %v4718
        %v4734 = vpack.c.bf16 %v4721, %v4720
        %v4735 = vpack.c.bf16 %v4723, %v4722
        %v4736 = vpack.c.bf16 %v4725, %v4724
        %v4737 = vpack.c.bf16 %v4727, %v4726
        %v4738 = vpack.c.bf16 %v4729, %v4728
        %v4739 = vpack.c.bf16 %v4731, %v4730
        %v4741 = vsel %vm2971, %v2850, 0
        %v4744 = vsel %vm2971, %v2859, 0
        %v4747 = vsel %vm2971, %v2868, 0
        %v4750 = vsel %vm2971, %v2877, 0
        %v4753 = vsel %vm2971, %v2886, 0
        %v4756 = vsel %vm2971, %v2895, 0
        %v4759 = vsel %vm2971, %v2904, 0
        %v4762 = vsel %vm2971, %v2913, 0
        %v4765 = vsel %vm2971, %v2853, 0
        %v4768 = vsel %vm2971, %v2862, 0
        %v4771 = vsel %vm2971, %v2871, 0
        %v4774 = vsel %vm2971, %v2880, 0
        %v4777 = vsel %vm2971, %v2889, 0
        %v4780 = vsel %vm2971, %v2898, 0
        %v4783 = vsel %vm2971, %v2907, 0
        %v4786 = vsel %vm2971, %v2916, 0
        %4788 = vmatprep.subr.bf16.mxu0 0
        %4789 = vmatpush1.bf16.xpose.msra.mxu0 %v4786
        %4790 = vmatprep.subr.bf16.mxu0 0
        %4791 = vmatpush1.bf16.xpose.msra.mxu0 %v4783
        %4792 = vmatprep.subr.bf16.mxu0 0
        %4793 = vmatpush1.bf16.xpose.msra.mxu0 %v4780
        %4794 = vmatprep.subr.bf16.mxu0 0
        %4795 = vmatpush1.bf16.xpose.msra.mxu0 %v4777
        %4796 = vmatprep.subr.bf16.mxu0 0
        %4797 = vmatpush1.bf16.xpose.msra.mxu0 %v4774
        %4798 = vmatprep.subr.bf16.mxu0 0
        %4799 = vmatpush1.bf16.xpose.msra.mxu0 %v4771
        %4800 = vmatprep.subr.bf16.mxu0 0
        %4801 = vmatpush1.bf16.xpose.msra.mxu0 %v4768
        %4802 = vmatprep.subr.bf16.mxu0 0
        %4803 = vmatpush1.bf16.xpose.msra.mxu0 %v4765
        %4804 = vmatprep.subr.bf16.mxu0 0
        %4805 = vmatpush2.bf16.xpose.msra.mxu0 0
        %4806 = vmatprep.subr.bf16.mxu0 0
        %4807 = vmatpush2.bf16.xpose.msra.mxu0 0
        %4808 = vmatprep.subr.bf16.mxu0 0
        %4809 = vmatpush2.bf16.xpose.msra.mxu0 0
        %4810 = vmatprep.subr.bf16.mxu0 0
        %4811 = vmatpush2.bf16.xpose.msra.mxu0 0
        %4812 = vmatprep.subr.bf16.mxu0 0
        %4813 = vmatpush2.bf16.xpose.msra.mxu0 0
        %4814 = vmatprep.subr.bf16.mxu0 0
        %4815 = vmatpush2.bf16.xpose.msra.mxu0 0
        %4816 = vmatprep.subr.bf16.mxu0 0
        %4817 = vmatpush2.bf16.xpose.msra.mxu0 0
        %4818 = vmatprep.subr.bf16.mxu0 0
        %4819 = vmatpush2.bf16.xpose.msra.mxu0 0
        %4820 = vmatprep.mubr.bf16.mxu0 0
        %4821 = vmatmul.mubr.bf16.gmra.mxu0 %v4741
        %v4822 = vpop.f32.mrf.mxu0
        %v4823 = vadd.f32 %v2955, %v4822
        %v4824 = vpop.f32.mrf.mxu0
        %v4825 = vpop.f32.mrf.mxu0
        %v4826 = vadd.f32 %v2956, %v4825
        %v4827 = vpop.f32.mrf.mxu0
        %4828 = vmatprep.mubr.bf16.mxu0 0
        %4829 = vmatmul.mubr.bf16.gmra.mxu0 %v4744
        %v4830 = vpop.f32.mrf.mxu0
        %v4831 = vadd.f32 %v2957, %v4830
        %v4832 = vpop.f32.mrf.mxu0
        %v4833 = vpop.f32.mrf.mxu0
        %v4834 = vadd.f32 %v2958, %v4833
        %v4835 = vpop.f32.mrf.mxu0
        %4836 = vmatprep.mubr.bf16.mxu0 0
        %4837 = vmatmul.mubr.bf16.gmra.mxu0 %v4747
        %v4838 = vpop.f32.mrf.mxu0
        %v4839 = vadd.f32 %v2959, %v4838
        %v4840 = vpop.f32.mrf.mxu0
        %v4841 = vpop.f32.mrf.mxu0
        %v4842 = vadd.f32 %v2960, %v4841
        %v4843 = vpop.f32.mrf.mxu0
        %4844 = vmatprep.mubr.bf16.mxu0 0
        %4845 = vmatmul.mubr.bf16.gmra.mxu0 %v4750
        %v4846 = vpop.f32.mrf.mxu0
        %v4847 = vadd.f32 %v2961, %v4846
        %v4848 = vpop.f32.mrf.mxu0
        %v4849 = vpop.f32.mrf.mxu0
        %v4850 = vadd.f32 %v2962, %v4849
        %v4851 = vpop.f32.mrf.mxu0
        %4852 = vmatprep.mubr.bf16.mxu0 0
        %4853 = vmatmul.mubr.bf16.gmra.mxu0 %v4753
        %v4854 = vpop.f32.mrf.mxu0
        %v4855 = vadd.f32 %v2963, %v4854
        %v4856 = vpop.f32.mrf.mxu0
        %v4857 = vpop.f32.mrf.mxu0
        %v4858 = vadd.f32 %v2964, %v4857
        %v4859 = vpop.f32.mrf.mxu0
        %4860 = vmatprep.mubr.bf16.mxu0 0
        %4861 = vmatmul.mubr.bf16.gmra.mxu0 %v4756
        %v4862 = vpop.f32.mrf.mxu0
        %v4863 = vadd.f32 %v2965, %v4862
        %v4864 = vpop.f32.mrf.mxu0
        %v4865 = vpop.f32.mrf.mxu0
        %v4866 = vadd.f32 %v2966, %v4865
        %v4867 = vpop.f32.mrf.mxu0
        %4868 = vmatprep.mubr.bf16.mxu0 0
        %4869 = vmatmul.mubr.bf16.gmra.mxu0 %v4759
        %v4870 = vpop.f32.mrf.mxu0
        %v4871 = vadd.f32 %v2967, %v4870
        %v4872 = vpop.f32.mrf.mxu0
        %v4873 = vpop.f32.mrf.mxu0
        %v4874 = vadd.f32 %v2968, %v4873
        %v4875 = vpop.f32.mrf.mxu0
        %4876 = vmatprep.mubr.bf16.mxu0 0
        %4877 = vmatmul.mubr.bf16.gmra.mxu0 %v4762
        %v4878 = vpop.f32.mrf.mxu0
        %v4879 = vadd.f32 %v2969, %v4878
        %v4880 = vpop.f32.mrf.mxu0
        %v4881 = vpop.f32.mrf.mxu0
        %v4882 = vadd.f32 %v2970, %v4881
        %v4883 = vpop.f32.mrf.mxu0
        %4884 = vdwg.mxu0
        %4885 = vmax.xlane.f32.xlu0 %v4823
        %v4886 = vpop.xlane.xlu0 %4885
        %4887 = vmax.xlane.f32.xlu0 %v4826
        %v4888 = vpop.xlane.xlu0 %4887
        %4889 = vmax.xlane.f32.xlu0 %v4831
        %v4890 = vpop.xlane.xlu0 %4889
        %4891 = vmax.xlane.f32.xlu0 %v4834
        %v4892 = vpop.xlane.xlu0 %4891
        %4893 = vmax.xlane.f32.xlu0 %v4839
        %v4894 = vpop.xlane.xlu0 %4893
        %4895 = vmax.xlane.f32.xlu0 %v4842
        %v4896 = vpop.xlane.xlu0 %4895
        %4897 = vmax.xlane.f32.xlu0 %v4847
        %v4898 = vpop.xlane.xlu0 %4897
        %4899 = vmax.xlane.f32.xlu0 %v4850
        %v4900 = vpop.xlane.xlu0 %4899
        %4901 = vmax.xlane.f32.xlu0 %v4855
        %v4902 = vpop.xlane.xlu0 %4901
        %4903 = vmax.xlane.f32.xlu0 %v4858
        %v4904 = vpop.xlane.xlu0 %4903
        %4905 = vmax.xlane.f32.xlu0 %v4863
        %v4906 = vpop.xlane.xlu0 %4905
        %4907 = vmax.xlane.f32.xlu0 %v4866
        %v4908 = vpop.xlane.xlu0 %4907
        %4909 = vmax.xlane.f32.xlu0 %v4871
        %v4910 = vpop.xlane.xlu0 %4909
        %4911 = vmax.xlane.f32.xlu0 %v4874
        %v4912 = vpop.xlane.xlu0 %4911
        %4913 = vmax.xlane.f32.xlu0 %v4879
        %v4914 = vpop.xlane.xlu0 %4913
        %4915 = vmax.xlane.f32.xlu0 %v4882
        %v4916 = vpop.xlane.xlu0 %4915
        %v4917 = vsub.f32 %v4823, %v4886
        %v4918 = vsub.f32 %v4826, %v4888
        %v4919 = vsub.f32 %v4831, %v4890
        %v4920 = vsub.f32 %v4834, %v4892
        %v4921 = vsub.f32 %v4839, %v4894
        %v4922 = vsub.f32 %v4842, %v4896
        %v4923 = vsub.f32 %v4847, %v4898
        %v4924 = vsub.f32 %v4850, %v4900
        %v4925 = vsub.f32 %v4855, %v4902
        %v4926 = vsub.f32 %v4858, %v4904
        %v4927 = vsub.f32 %v4863, %v4906
        %v4928 = vsub.f32 %v4866, %v4908
        %v4929 = vsub.f32 %v4871, %v4910
        %v4930 = vsub.f32 %v4874, %v4912
        %v4931 = vsub.f32 %v4879, %v4914
        %v4932 = vsub.f32 %v4882, %v4916
        %v4933 = vmul.f32 %v4917, 1.442695
        %v4934 = vpow.pop %v4933
        %v4935 = vmul.f32 %v4918, 1.442695
        %v4936 = vpow.pop %v4935
        %v4937 = vmul.f32 %v4919, 1.442695
        %v4938 = vpow.pop %v4937
        %v4939 = vmul.f32 %v4920, 1.442695
        %v4940 = vpow.pop %v4939
        %v4941 = vmul.f32 %v4921, 1.442695
        %v4942 = vpow.pop %v4941
        %v4943 = vmul.f32 %v4922, 1.442695
        %v4944 = vpow.pop %v4943
        %v4945 = vmul.f32 %v4923, 1.442695
        %v4946 = vpow.pop %v4945
        %v4947 = vmul.f32 %v4924, 1.442695
        %v4948 = vpow.pop %v4947
        %v4949 = vmul.f32 %v4925, 1.442695
        %v4950 = vpow.pop %v4949
        %v4951 = vmul.f32 %v4926, 1.442695
        %v4952 = vpow.pop %v4951
        %v4953 = vmul.f32 %v4927, 1.442695
        %v4954 = vpow.pop %v4953
        %v4955 = vmul.f32 %v4928, 1.442695
        %v4956 = vpow.pop %v4955
        %v4957 = vmul.f32 %v4929, 1.442695
        %v4958 = vpow.pop %v4957
        %v4959 = vmul.f32 %v4930, 1.442695
        %v4960 = vpow.pop %v4959
        %v4961 = vmul.f32 %v4931, 1.442695
        %v4962 = vpow.pop %v4961
        %v4963 = vmul.f32 %v4932, 1.442695
        %v4964 = vpow.pop %v4963
        %4965 = vadd.xlane.f32.xlu0 %v4934
        %v4966 = vpop.xlane.xlu0 %4965
        %4967 = vadd.xlane.f32.xlu0 %v4936
        %v4968 = vpop.xlane.xlu0 %4967
        %4969 = vadd.xlane.f32.xlu0 %v4938
        %v4970 = vpop.xlane.xlu0 %4969
        %4971 = vadd.xlane.f32.xlu0 %v4940
        %v4972 = vpop.xlane.xlu0 %4971
        %4973 = vadd.xlane.f32.xlu0 %v4942
        %v4974 = vpop.xlane.xlu0 %4973
        %4975 = vadd.xlane.f32.xlu0 %v4944
        %v4976 = vpop.xlane.xlu0 %4975
        %4977 = vadd.xlane.f32.xlu0 %v4946
        %v4978 = vpop.xlane.xlu0 %4977
        %4979 = vadd.xlane.f32.xlu0 %v4948
        %v4980 = vpop.xlane.xlu0 %4979
        %4981 = vadd.xlane.f32.xlu0 %v4950
        %v4982 = vpop.xlane.xlu0 %4981
        %4983 = vadd.xlane.f32.xlu0 %v4952
        %v4984 = vpop.xlane.xlu0 %4983
        %4985 = vadd.xlane.f32.xlu0 %v4954
        %v4986 = vpop.xlane.xlu0 %4985
        %4987 = vadd.xlane.f32.xlu0 %v4956
        %v4988 = vpop.xlane.xlu0 %4987
        %4989 = vadd.xlane.f32.xlu0 %v4958
        %v4990 = vpop.xlane.xlu0 %4989
        %4991 = vadd.xlane.f32.xlu0 %v4960
        %v4992 = vpop.xlane.xlu0 %4991
        %4993 = vadd.xlane.f32.xlu0 %v4962
        %v4994 = vpop.xlane.xlu0 %4993
        %4995 = vadd.xlane.f32.xlu0 %v4964
        %v4996 = vpop.xlane.xlu0 %4995
        %v4997 = vrcp.pop %v4966
        %v4998 = vrcp.pop %v4968
        %v4999 = vrcp.pop %v4970
        %v5000 = vrcp.pop %v4972
        %v5001 = vrcp.pop %v4974
        %v5002 = vrcp.pop %v4976
        %v5003 = vrcp.pop %v4978
        %v5004 = vrcp.pop %v4980
        %v5005 = vrcp.pop %v4982
        %v5006 = vrcp.pop %v4984
        %v5007 = vrcp.pop %v4986
        %v5008 = vrcp.pop %v4988
        %v5009 = vrcp.pop %v4990
        %v5010 = vrcp.pop %v4992
        %v5011 = vrcp.pop %v4994
        %v5012 = vrcp.pop %v4996
        %v5013 = vpack.c.bf16 %v4936, %v4934
        %v5014 = vpack.c.bf16 %v4940, %v4938
        %v5015 = vpack.c.bf16 %v4944, %v4942
        %v5016 = vpack.c.bf16 %v4948, %v4946
        %v5017 = vpack.c.bf16 %v4952, %v4950
        %v5018 = vpack.c.bf16 %v4956, %v4954
        %v5019 = vpack.c.bf16 %v4960, %v4958
        %v5020 = vpack.c.bf16 %v4964, %v4962
        %5021 = vmatprep.subr.bf16.mxu0 0
        %5022 = vmatpush1.bf16.msra.mxu0 %v2919
        %5023 = vmatprep.subr.bf16.mxu0 0
        %5024 = vmatpush1.bf16.msra.mxu0 %v2910
        %5025 = vmatprep.subr.bf16.mxu0 0
        %5026 = vmatpush1.bf16.msra.mxu0 %v2901
        %5027 = vmatprep.subr.bf16.mxu0 0
        %5028 = vmatpush1.bf16.msra.mxu0 %v2892
        %5029 = vmatprep.subr.bf16.mxu0 0
        %5030 = vmatpush1.bf16.msra.mxu0 %v2883
        %5031 = vmatprep.subr.bf16.mxu0 0
        %5032 = vmatpush1.bf16.msra.mxu0 %v2874
        %5033 = vmatprep.subr.bf16.mxu0 0
        %5034 = vmatpush1.bf16.msra.mxu0 %v2865
        %5035 = vmatprep.subr.bf16.mxu0 0
        %5036 = vmatpush1.bf16.msra.mxu0 %v2856
        %5037 = vmatprep.subr.bf16.mxu0 0
        %5038 = vmatpush2.bf16.msra.mxu0 0
        %5039 = vmatprep.subr.bf16.mxu0 0
        %5040 = vmatpush2.bf16.msra.mxu0 0
        %5041 = vmatprep.subr.bf16.mxu0 0
        %5042 = vmatpush2.bf16.msra.mxu0 0
        %5043 = vmatprep.subr.bf16.mxu0 0
        %5044 = vmatpush2.bf16.msra.mxu0 0
        %5045 = vmatprep.subr.bf16.mxu0 0
        %5046 = vmatpush2.bf16.msra.mxu0 0
        %5047 = vmatprep.subr.bf16.mxu0 0
        %5048 = vmatpush2.bf16.msra.mxu0 0
        %5049 = vmatprep.subr.bf16.mxu0 0
        %5050 = vmatpush2.bf16.msra.mxu0 0
        %5051 = vmatprep.subr.bf16.mxu0 0
        %5052 = vmatpush2.bf16.msra.mxu0 0
        %5053 = vmatprep.mubr.bf16.mxu0 0
        %5054 = vmatmul.mubr.bf16.gmra.mxu0 %v5013
        %v5055 = vpop.f32.mrf.mxu0
        %v5056 = vadd.f32 0.0, %v5055
        %v5057 = vpop.f32.mrf.mxu0
        %v5058 = vpop.f32.mrf.mxu0
        %v5059 = vadd.f32 0.0, %v5058
        %v5060 = vpop.f32.mrf.mxu0
        %5061 = vmatprep.mubr.bf16.mxu0 0
        %5062 = vmatmul.mubr.bf16.gmra.mxu0 %v5014
        %v5063 = vpop.f32.mrf.mxu0
        %v5064 = vadd.f32 0.0, %v5063
        %v5065 = vpop.f32.mrf.mxu0
        %v5066 = vpop.f32.mrf.mxu0
        %v5067 = vadd.f32 0.0, %v5066
        %v5068 = vpop.f32.mrf.mxu0
        %5069 = vmatprep.mubr.bf16.mxu0 0
        %5070 = vmatmul.mubr.bf16.gmra.mxu0 %v5015
        %v5071 = vpop.f32.mrf.mxu0
        %v5072 = vadd.f32 0.0, %v5071
        %v5073 = vpop.f32.mrf.mxu0
        %v5074 = vpop.f32.mrf.mxu0
        %v5075 = vadd.f32 0.0, %v5074
        %v5076 = vpop.f32.mrf.mxu0
        %5077 = vmatprep.mubr.bf16.mxu0 0
        %5078 = vmatmul.mubr.bf16.gmra.mxu0 %v5016
        %v5079 = vpop.f32.mrf.mxu0
        %v5080 = vadd.f32 0.0, %v5079
        %v5081 = vpop.f32.mrf.mxu0
        %v5082 = vpop.f32.mrf.mxu0
        %v5083 = vadd.f32 0.0, %v5082
        %v5084 = vpop.f32.mrf.mxu0
        %5085 = vmatprep.mubr.bf16.mxu0 0
        %5086 = vmatmul.mubr.bf16.gmra.mxu0 %v5017
        %v5087 = vpop.f32.mrf.mxu0
        %v5088 = vadd.f32 0.0, %v5087
        %v5089 = vpop.f32.mrf.mxu0
        %v5090 = vpop.f32.mrf.mxu0
        %v5091 = vadd.f32 0.0, %v5090
        %v5092 = vpop.f32.mrf.mxu0
        %5093 = vmatprep.mubr.bf16.mxu0 0
        %5094 = vmatmul.mubr.bf16.gmra.mxu0 %v5018
        %v5095 = vpop.f32.mrf.mxu0
        %v5096 = vadd.f32 0.0, %v5095
        %v5097 = vpop.f32.mrf.mxu0
        %v5098 = vpop.f32.mrf.mxu0
        %v5099 = vadd.f32 0.0, %v5098
        %v5100 = vpop.f32.mrf.mxu0
        %5101 = vmatprep.mubr.bf16.mxu0 0
        %5102 = vmatmul.mubr.bf16.gmra.mxu0 %v5019
        %v5103 = vpop.f32.mrf.mxu0
        %v5104 = vadd.f32 0.0, %v5103
        %v5105 = vpop.f32.mrf.mxu0
        %v5106 = vpop.f32.mrf.mxu0
        %v5107 = vadd.f32 0.0, %v5106
        %v5108 = vpop.f32.mrf.mxu0
        %5109 = vmatprep.mubr.bf16.mxu0 0
        %5110 = vmatmul.mubr.bf16.gmra.mxu0 %v5020
        %v5111 = vpop.f32.mrf.mxu0
        %v5112 = vadd.f32 0.0, %v5111
        %v5113 = vpop.f32.mrf.mxu0
        %v5114 = vpop.f32.mrf.mxu0
        %v5115 = vadd.f32 0.0, %v5114
        %v5116 = vpop.f32.mrf.mxu0
        %5117 = vdwg.mxu0
        %v5118 = vmul.f32 %v5056, %v4997
        %v5119 = vmul.f32 %v5059, %v4998
        %v5120 = vmul.f32 %v5064, %v4999
        %v5121 = vmul.f32 %v5067, %v5000
        %v5122 = vmul.f32 %v5072, %v5001
        %v5123 = vmul.f32 %v5075, %v5002
        %v5124 = vmul.f32 %v5080, %v5003
        %v5125 = vmul.f32 %v5083, %v5004
        %v5126 = vmul.f32 %v5088, %v5005
        %v5127 = vmul.f32 %v5091, %v5006
        %v5128 = vmul.f32 %v5096, %v5007
        %v5129 = vmul.f32 %v5099, %v5008
        %v5130 = vmul.f32 %v5104, %v5009
        %v5131 = vmul.f32 %v5107, %v5010
        %v5132 = vmul.f32 %v5112, %v5011
        %v5133 = vmul.f32 %v5115, %v5012
        %v5134 = vpack.c.bf16 %v5119, %v5118
        %v5135 = vpack.c.bf16 %v5121, %v5120
        %v5136 = vpack.c.bf16 %v5123, %v5122
        %v5137 = vpack.c.bf16 %v5125, %v5124
        %v5138 = vpack.c.bf16 %v5127, %v5126
        %v5139 = vpack.c.bf16 %v5129, %v5128
        %v5140 = vpack.c.bf16 %v5131, %v5130
        %v5141 = vpack.c.bf16 %v5133, %v5132
        %5150 = vrot.lane.b32.xlu0 %v2850, 64
        %v5151 = vpop.permute.xlu0 %5150
        %5152 = vrot.lane.b32.xlu0 %v2859, 64
        %v5153 = vpop.permute.xlu0 %5152
        %5154 = vrot.lane.b32.xlu0 %v2868, 64
        %v5155 = vpop.permute.xlu0 %5154
        %5156 = vrot.lane.b32.xlu0 %v2877, 64
        %v5157 = vpop.permute.xlu0 %5156
        %5158 = vrot.lane.b32.xlu0 %v2886, 64
        %v5159 = vpop.permute.xlu0 %5158
        %5160 = vrot.lane.b32.xlu0 %v2895, 64
        %v5161 = vpop.permute.xlu0 %5160
        %5162 = vrot.lane.b32.xlu0 %v2904, 64
        %v5163 = vpop.permute.xlu0 %5162
        %5164 = vrot.lane.b32.xlu0 %v2913, 64
        %v5165 = vpop.permute.xlu0 %5164
        %5174 = vrot.lane.b32.xlu0 %v2853, 64
        %v5175 = vpop.permute.xlu0 %5174
        %5176 = vrot.lane.b32.xlu0 %v2862, 64
        %v5177 = vpop.permute.xlu0 %5176
        %5178 = vrot.lane.b32.xlu0 %v2871, 64
        %v5179 = vpop.permute.xlu0 %5178
        %5180 = vrot.lane.b32.xlu0 %v2880, 64
        %v5181 = vpop.permute.xlu0 %5180
        %5182 = vrot.lane.b32.xlu0 %v2889, 64
        %v5183 = vpop.permute.xlu0 %5182
        %5184 = vrot.lane.b32.xlu0 %v2898, 64
        %v5185 = vpop.permute.xlu0 %5184
        %5186 = vrot.lane.b32.xlu0 %v2907, 64
        %v5187 = vpop.permute.xlu0 %5186
        %5188 = vrot.lane.b32.xlu0 %v2916, 64
        %v5189 = vpop.permute.xlu0 %5188
        %v5191 = vsel %vm2971, %v5151, 0
        %v5194 = vsel %vm2971, %v5153, 0
        %v5197 = vsel %vm2971, %v5155, 0
        %v5200 = vsel %vm2971, %v5157, 0
        %v5203 = vsel %vm2971, %v5159, 0
        %v5206 = vsel %vm2971, %v5161, 0
        %v5209 = vsel %vm2971, %v5163, 0
        %v5212 = vsel %vm2971, %v5165, 0
        %v5215 = vsel %vm2971, %v5175, 0
        %v5218 = vsel %vm2971, %v5177, 0
        %v5221 = vsel %vm2971, %v5179, 0
        %v5224 = vsel %vm2971, %v5181, 0
        %v5227 = vsel %vm2971, %v5183, 0
        %v5230 = vsel %vm2971, %v5185, 0
        %v5233 = vsel %vm2971, %v5187, 0
        %v5236 = vsel %vm2971, %v5189, 0
        %5238 = vmatprep.subr.bf16.mxu0 0
        %5239 = vmatpush1.bf16.xpose.msra.mxu0 %v5236
        %5240 = vmatprep.subr.bf16.mxu0 0
        %5241 = vmatpush1.bf16.xpose.msra.mxu0 %v5233
        %5242 = vmatprep.subr.bf16.mxu0 0
        %5243 = vmatpush1.bf16.xpose.msra.mxu0 %v5230
        %5244 = vmatprep.subr.bf16.mxu0 0
        %5245 = vmatpush1.bf16.xpose.msra.mxu0 %v5227
        %5246 = vmatprep.subr.bf16.mxu0 0
        %5247 = vmatpush1.bf16.xpose.msra.mxu0 %v5224
        %5248 = vmatprep.subr.bf16.mxu0 0
        %5249 = vmatpush1.bf16.xpose.msra.mxu0 %v5221
        %5250 = vmatprep.subr.bf16.mxu0 0
        %5251 = vmatpush1.bf16.xpose.msra.mxu0 %v5218
        %5252 = vmatprep.subr.bf16.mxu0 0
        %5253 = vmatpush1.bf16.xpose.msra.mxu0 %v5215
        %5254 = vmatprep.subr.bf16.mxu0 0
        %5255 = vmatpush2.bf16.xpose.msra.mxu0 0
        %5256 = vmatprep.subr.bf16.mxu0 0
        %5257 = vmatpush2.bf16.xpose.msra.mxu0 0
        %5258 = vmatprep.subr.bf16.mxu0 0
        %5259 = vmatpush2.bf16.xpose.msra.mxu0 0
        %5260 = vmatprep.subr.bf16.mxu0 0
        %5261 = vmatpush2.bf16.xpose.msra.mxu0 0
        %5262 = vmatprep.subr.bf16.mxu0 0
        %5263 = vmatpush2.bf16.xpose.msra.mxu0 0
        %5264 = vmatprep.subr.bf16.mxu0 0
        %5265 = vmatpush2.bf16.xpose.msra.mxu0 0
        %5266 = vmatprep.subr.bf16.mxu0 0
        %5267 = vmatpush2.bf16.xpose.msra.mxu0 0
        %5268 = vmatprep.subr.bf16.mxu0 0
        %5269 = vmatpush2.bf16.xpose.msra.mxu0 0
        %5270 = vmatprep.mubr.bf16.mxu0 0
        %5271 = vmatmul.mubr.bf16.gmra.mxu0 %v5191
        %v5272 = vpop.f32.mrf.mxu0
        %v5273 = vadd.f32 %v2955, %v5272
        %v5274 = vpop.f32.mrf.mxu0
        %v5275 = vpop.f32.mrf.mxu0
        %v5276 = vadd.f32 %v2956, %v5275
        %v5277 = vpop.f32.mrf.mxu0
        %5278 = vmatprep.mubr.bf16.mxu0 0
        %5279 = vmatmul.mubr.bf16.gmra.mxu0 %v5194
        %v5280 = vpop.f32.mrf.mxu0
        %v5281 = vadd.f32 %v2957, %v5280
        %v5282 = vpop.f32.mrf.mxu0
        %v5283 = vpop.f32.mrf.mxu0
        %v5284 = vadd.f32 %v2958, %v5283
        %v5285 = vpop.f32.mrf.mxu0
        %5286 = vmatprep.mubr.bf16.mxu0 0
        %5287 = vmatmul.mubr.bf16.gmra.mxu0 %v5197
        %v5288 = vpop.f32.mrf.mxu0
        %v5289 = vadd.f32 %v2959, %v5288
        %v5290 = vpop.f32.mrf.mxu0
        %v5291 = vpop.f32.mrf.mxu0
        %v5292 = vadd.f32 %v2960, %v5291
        %v5293 = vpop.f32.mrf.mxu0
        %5294 = vmatprep.mubr.bf16.mxu0 0
        %5295 = vmatmul.mubr.bf16.gmra.mxu0 %v5200
        %v5296 = vpop.f32.mrf.mxu0
        %v5297 = vadd.f32 %v2961, %v5296
        %v5298 = vpop.f32.mrf.mxu0
        %v5299 = vpop.f32.mrf.mxu0
        %v5300 = vadd.f32 %v2962, %v5299
        %v5301 = vpop.f32.mrf.mxu0
        %5302 = vmatprep.mubr.bf16.mxu0 0
        %5303 = vmatmul.mubr.bf16.gmra.mxu0 %v5203
        %v5304 = vpop.f32.mrf.mxu0
        %v5305 = vadd.f32 %v2963, %v5304
        %v5306 = vpop.f32.mrf.mxu0
        %v5307 = vpop.f32.mrf.mxu0
        %v5308 = vadd.f32 %v2964, %v5307
        %v5309 = vpop.f32.mrf.mxu0
        %5310 = vmatprep.mubr.bf16.mxu0 0
        %5311 = vmatmul.mubr.bf16.gmra.mxu0 %v5206
        %v5312 = vpop.f32.mrf.mxu0
        %v5313 = vadd.f32 %v2965, %v5312
        %v5314 = vpop.f32.mrf.mxu0
        %v5315 = vpop.f32.mrf.mxu0
        %v5316 = vadd.f32 %v2966, %v5315
        %v5317 = vpop.f32.mrf.mxu0
        %5318 = vmatprep.mubr.bf16.mxu0 0
        %5319 = vmatmul.mubr.bf16.gmra.mxu0 %v5209
        %v5320 = vpop.f32.mrf.mxu0
        %v5321 = vadd.f32 %v2967, %v5320
        %v5322 = vpop.f32.mrf.mxu0
        %v5323 = vpop.f32.mrf.mxu0
        %v5324 = vadd.f32 %v2968, %v5323
        %v5325 = vpop.f32.mrf.mxu0
        %5326 = vmatprep.mubr.bf16.mxu0 0
        %5327 = vmatmul.mubr.bf16.gmra.mxu0 %v5212
        %v5328 = vpop.f32.mrf.mxu0
        %v5329 = vadd.f32 %v2969, %v5328
        %v5330 = vpop.f32.mrf.mxu0
        %v5331 = vpop.f32.mrf.mxu0
        %v5332 = vadd.f32 %v2970, %v5331
        %v5333 = vpop.f32.mrf.mxu0
        %5334 = vdwg.mxu0
        %5335 = vmax.xlane.f32.xlu0 %v5273
        %v5336 = vpop.xlane.xlu0 %5335
        %5337 = vmax.xlane.f32.xlu0 %v5276
        %v5338 = vpop.xlane.xlu0 %5337
        %5339 = vmax.xlane.f32.xlu0 %v5281
        %v5340 = vpop.xlane.xlu0 %5339
        %5341 = vmax.xlane.f32.xlu0 %v5284
        %v5342 = vpop.xlane.xlu0 %5341
        %5343 = vmax.xlane.f32.xlu0 %v5289
        %v5344 = vpop.xlane.xlu0 %5343
        %5345 = vmax.xlane.f32.xlu0 %v5292
        %v5346 = vpop.xlane.xlu0 %5345
        %5347 = vmax.xlane.f32.xlu0 %v5297
        %v5348 = vpop.xlane.xlu0 %5347
        %5349 = vmax.xlane.f32.xlu0 %v5300
        %v5350 = vpop.xlane.xlu0 %5349
        %5351 = vmax.xlane.f32.xlu0 %v5305
        %v5352 = vpop.xlane.xlu0 %5351
        %5353 = vmax.xlane.f32.xlu0 %v5308
        %v5354 = vpop.xlane.xlu0 %5353
        %5355 = vmax.xlane.f32.xlu0 %v5313
        %v5356 = vpop.xlane.xlu0 %5355
        %5357 = vmax.xlane.f32.xlu0 %v5316
        %v5358 = vpop.xlane.xlu0 %5357
        %5359 = vmax.xlane.f32.xlu0 %v5321
        %v5360 = vpop.xlane.xlu0 %5359
        %5361 = vmax.xlane.f32.xlu0 %v5324
        %v5362 = vpop.xlane.xlu0 %5361
        %5363 = vmax.xlane.f32.xlu0 %v5329
        %v5364 = vpop.xlane.xlu0 %5363
        %5365 = vmax.xlane.f32.xlu0 %v5332
        %v5366 = vpop.xlane.xlu0 %5365
        %v5367 = vsub.f32 %v5273, %v5336
        %v5368 = vsub.f32 %v5276, %v5338
        %v5369 = vsub.f32 %v5281, %v5340
        %v5370 = vsub.f32 %v5284, %v5342
        %v5371 = vsub.f32 %v5289, %v5344
        %v5372 = vsub.f32 %v5292, %v5346
        %v5373 = vsub.f32 %v5297, %v5348
        %v5374 = vsub.f32 %v5300, %v5350
        %v5375 = vsub.f32 %v5305, %v5352
        %v5376 = vsub.f32 %v5308, %v5354
        %v5377 = vsub.f32 %v5313, %v5356
        %v5378 = vsub.f32 %v5316, %v5358
        %v5379 = vsub.f32 %v5321, %v5360
        %v5380 = vsub.f32 %v5324, %v5362
        %v5381 = vsub.f32 %v5329, %v5364
        %v5382 = vsub.f32 %v5332, %v5366
        %v5383 = vmul.f32 %v5367, 1.442695
        %v5384 = vpow.pop %v5383
        %v5385 = vmul.f32 %v5368, 1.442695
        %v5386 = vpow.pop %v5385
        %v5387 = vmul.f32 %v5369, 1.442695
        %v5388 = vpow.pop %v5387
        %v5389 = vmul.f32 %v5370, 1.442695
        %v5390 = vpow.pop %v5389
        %v5391 = vmul.f32 %v5371, 1.442695
        %v5392 = vpow.pop %v5391
        %v5393 = vmul.f32 %v5372, 1.442695
        %v5394 = vpow.pop %v5393
        %v5395 = vmul.f32 %v5373, 1.442695
        %v5396 = vpow.pop %v5395
        %v5397 = vmul.f32 %v5374, 1.442695
        %v5398 = vpow.pop %v5397
        %v5399 = vmul.f32 %v5375, 1.442695
        %v5400 = vpow.pop %v5399
        %v5401 = vmul.f32 %v5376, 1.442695
        %v5402 = vpow.pop %v5401
        %v5403 = vmul.f32 %v5377, 1.442695
        %v5404 = vpow.pop %v5403
        %v5405 = vmul.f32 %v5378, 1.442695
        %v5406 = vpow.pop %v5405
        %v5407 = vmul.f32 %v5379, 1.442695
        %v5408 = vpow.pop %v5407
        %v5409 = vmul.f32 %v5380, 1.442695
        %v5410 = vpow.pop %v5409
        %v5411 = vmul.f32 %v5381, 1.442695
        %v5412 = vpow.pop %v5411
        %v5413 = vmul.f32 %v5382, 1.442695
        %v5414 = vpow.pop %v5413
        %5415 = vadd.xlane.f32.xlu0 %v5384
        %v5416 = vpop.xlane.xlu0 %5415
        %5417 = vadd.xlane.f32.xlu0 %v5386
        %v5418 = vpop.xlane.xlu0 %5417
        %5419 = vadd.xlane.f32.xlu0 %v5388
        %v5420 = vpop.xlane.xlu0 %5419
        %5421 = vadd.xlane.f32.xlu0 %v5390
        %v5422 = vpop.xlane.xlu0 %5421
        %5423 = vadd.xlane.f32.xlu0 %v5392
        %v5424 = vpop.xlane.xlu0 %5423
        %5425 = vadd.xlane.f32.xlu0 %v5394
        %v5426 = vpop.xlane.xlu0 %5425
        %5427 = vadd.xlane.f32.xlu0 %v5396
        %v5428 = vpop.xlane.xlu0 %5427
        %5429 = vadd.xlane.f32.xlu0 %v5398
        %v5430 = vpop.xlane.xlu0 %5429
        %5431 = vadd.xlane.f32.xlu0 %v5400
        %v5432 = vpop.xlane.xlu0 %5431
        %5433 = vadd.xlane.f32.xlu0 %v5402
        %v5434 = vpop.xlane.xlu0 %5433
        %5435 = vadd.xlane.f32.xlu0 %v5404
        %v5436 = vpop.xlane.xlu0 %5435
        %5437 = vadd.xlane.f32.xlu0 %v5406
        %v5438 = vpop.xlane.xlu0 %5437
        %5439 = vadd.xlane.f32.xlu0 %v5408
        %v5440 = vpop.xlane.xlu0 %5439
        %5441 = vadd.xlane.f32.xlu0 %v5410
        %v5442 = vpop.xlane.xlu0 %5441
        %5443 = vadd.xlane.f32.xlu0 %v5412
        %v5444 = vpop.xlane.xlu0 %5443
        %5445 = vadd.xlane.f32.xlu0 %v5414
        %v5446 = vpop.xlane.xlu0 %5445
        %v5447 = vrcp.pop %v5416
        %v5448 = vrcp.pop %v5418
        %v5449 = vrcp.pop %v5420
        %v5450 = vrcp.pop %v5422
        %v5451 = vrcp.pop %v5424
        %v5452 = vrcp.pop %v5426
        %v5453 = vrcp.pop %v5428
        %v5454 = vrcp.pop %v5430
        %v5455 = vrcp.pop %v5432
        %v5456 = vrcp.pop %v5434
        %v5457 = vrcp.pop %v5436
        %v5458 = vrcp.pop %v5438
        %v5459 = vrcp.pop %v5440
        %v5460 = vrcp.pop %v5442
        %v5461 = vrcp.pop %v5444
        %v5462 = vrcp.pop %v5446
        %v5463 = vpack.c.bf16 %v5386, %v5384
        %v5464 = vpack.c.bf16 %v5390, %v5388
        %v5465 = vpack.c.bf16 %v5394, %v5392
        %v5466 = vpack.c.bf16 %v5398, %v5396
        %v5467 = vpack.c.bf16 %v5402, %v5400
        %v5468 = vpack.c.bf16 %v5406, %v5404
        %v5469 = vpack.c.bf16 %v5410, %v5408
        %v5470 = vpack.c.bf16 %v5414, %v5412
        %5479 = vrot.lane.b32.xlu0 %v2856, 64
        %v5480 = vpop.permute.xlu0 %5479
        %5481 = vrot.lane.b32.xlu0 %v2865, 64
        %v5482 = vpop.permute.xlu0 %5481
        %5483 = vrot.lane.b32.xlu0 %v2874, 64
        %v5484 = vpop.permute.xlu0 %5483
        %5485 = vrot.lane.b32.xlu0 %v2883, 64
        %v5486 = vpop.permute.xlu0 %5485
        %5487 = vrot.lane.b32.xlu0 %v2892, 64
        %v5488 = vpop.permute.xlu0 %5487
        %5489 = vrot.lane.b32.xlu0 %v2901, 64
        %v5490 = vpop.permute.xlu0 %5489
        %5491 = vrot.lane.b32.xlu0 %v2910, 64
        %v5492 = vpop.permute.xlu0 %5491
        %5493 = vrot.lane.b32.xlu0 %v2919, 64
        %v5494 = vpop.permute.xlu0 %5493
        %5503 = vmatprep.subr.bf16.mxu0 0
        %5504 = vmatpush1.bf16.msra.mxu0 %v5494
        %5505 = vmatprep.subr.bf16.mxu0 0
        %5506 = vmatpush1.bf16.msra.mxu0 %v5492
        %5507 = vmatprep.subr.bf16.mxu0 0
        %5508 = vmatpush1.bf16.msra.mxu0 %v5490
        %5509 = vmatprep.subr.bf16.mxu0 0
        %5510 = vmatpush1.bf16.msra.mxu0 %v5488
        %5511 = vmatprep.subr.bf16.mxu0 0
        %5512 = vmatpush1.bf16.msra.mxu0 %v5486
        %5513 = vmatprep.subr.bf16.mxu0 0
        %5514 = vmatpush1.bf16.msra.mxu0 %v5484
        %5515 = vmatprep.subr.bf16.mxu0 0
        %5516 = vmatpush1.bf16.msra.mxu0 %v5482
        %5517 = vmatprep.subr.bf16.mxu0 0
        %5518 = vmatpush1.bf16.msra.mxu0 %v5480
        %5519 = vmatprep.subr.bf16.mxu0 0
        %5520 = vmatpush2.bf16.msra.mxu0 0
        %5521 = vmatprep.subr.bf16.mxu0 0
        %5522 = vmatpush2.bf16.msra.mxu0 0
        %5523 = vmatprep.subr.bf16.mxu0 0
        %5524 = vmatpush2.bf16.msra.mxu0 0
        %5525 = vmatprep.subr.bf16.mxu0 0
        %5526 = vmatpush2.bf16.msra.mxu0 0
        %5527 = vmatprep.subr.bf16.mxu0 0
        %5528 = vmatpush2.bf16.msra.mxu0 0
        %5529 = vmatprep.subr.bf16.mxu0 0
        %5530 = vmatpush2.bf16.msra.mxu0 0
        %5531 = vmatprep.subr.bf16.mxu0 0
        %5532 = vmatpush2.bf16.msra.mxu0 0
        %5533 = vmatprep.subr.bf16.mxu0 0
        %5534 = vmatpush2.bf16.msra.mxu0 0
        %5535 = vmatprep.mubr.bf16.mxu0 0
        %5536 = vmatmul.mubr.bf16.gmra.mxu0 %v5463
        %v5537 = vpop.f32.mrf.mxu0
        %v5538 = vadd.f32 0.0, %v5537
        %v5539 = vpop.f32.mrf.mxu0
        %v5540 = vpop.f32.mrf.mxu0
        %v5541 = vadd.f32 0.0, %v5540
        %v5542 = vpop.f32.mrf.mxu0
        %5543 = vmatprep.mubr.bf16.mxu0 0
        %5544 = vmatmul.mubr.bf16.gmra.mxu0 %v5464
        %v5545 = vpop.f32.mrf.mxu0
        %v5546 = vadd.f32 0.0, %v5545
        %v5547 = vpop.f32.mrf.mxu0
        %v5548 = vpop.f32.mrf.mxu0
        %v5549 = vadd.f32 0.0, %v5548
        %v5550 = vpop.f32.mrf.mxu0
        %5551 = vmatprep.mubr.bf16.mxu0 0
        %5552 = vmatmul.mubr.bf16.gmra.mxu0 %v5465
        %v5553 = vpop.f32.mrf.mxu0
        %v5554 = vadd.f32 0.0, %v5553
        %v5555 = vpop.f32.mrf.mxu0
        %v5556 = vpop.f32.mrf.mxu0
        %v5557 = vadd.f32 0.0, %v5556
        %v5558 = vpop.f32.mrf.mxu0
        %5559 = vmatprep.mubr.bf16.mxu0 0
        %5560 = vmatmul.mubr.bf16.gmra.mxu0 %v5466
        %v5561 = vpop.f32.mrf.mxu0
        %v5562 = vadd.f32 0.0, %v5561
        %v5563 = vpop.f32.mrf.mxu0
        %v5564 = vpop.f32.mrf.mxu0
        %v5565 = vadd.f32 0.0, %v5564
        %v5566 = vpop.f32.mrf.mxu0
        %5567 = vmatprep.mubr.bf16.mxu0 0
        %5568 = vmatmul.mubr.bf16.gmra.mxu0 %v5467
        %v5569 = vpop.f32.mrf.mxu0
        %v5570 = vadd.f32 0.0, %v5569
        %v5571 = vpop.f32.mrf.mxu0
        %v5572 = vpop.f32.mrf.mxu0
        %v5573 = vadd.f32 0.0, %v5572
        %v5574 = vpop.f32.mrf.mxu0
        %5575 = vmatprep.mubr.bf16.mxu0 0
        %5576 = vmatmul.mubr.bf16.gmra.mxu0 %v5468
        %v5577 = vpop.f32.mrf.mxu0
        %v5578 = vadd.f32 0.0, %v5577
        %v5579 = vpop.f32.mrf.mxu0
        %v5580 = vpop.f32.mrf.mxu0
        %v5581 = vadd.f32 0.0, %v5580
        %v5582 = vpop.f32.mrf.mxu0
        %5583 = vmatprep.mubr.bf16.mxu0 0
        %5584 = vmatmul.mubr.bf16.gmra.mxu0 %v5469
        %v5585 = vpop.f32.mrf.mxu0
        %v5586 = vadd.f32 0.0, %v5585
        %v5587 = vpop.f32.mrf.mxu0
        %v5588 = vpop.f32.mrf.mxu0
        %v5589 = vadd.f32 0.0, %v5588
        %v5590 = vpop.f32.mrf.mxu0
        %5591 = vmatprep.mubr.bf16.mxu0 0
        %5592 = vmatmul.mubr.bf16.gmra.mxu0 %v5470
        %v5593 = vpop.f32.mrf.mxu0
        %v5594 = vadd.f32 0.0, %v5593
        %v5595 = vpop.f32.mrf.mxu0
        %v5596 = vpop.f32.mrf.mxu0
        %v5597 = vadd.f32 0.0, %v5596
        %v5598 = vpop.f32.mrf.mxu0
        %5599 = vdwg.mxu0
        %v5600 = vmul.f32 %v5538, %v5447
        %v5601 = vmul.f32 %v5541, %v5448
        %v5602 = vmul.f32 %v5546, %v5449
        %v5603 = vmul.f32 %v5549, %v5450
        %v5604 = vmul.f32 %v5554, %v5451
        %v5605 = vmul.f32 %v5557, %v5452
        %v5606 = vmul.f32 %v5562, %v5453
        %v5607 = vmul.f32 %v5565, %v5454
        %v5608 = vmul.f32 %v5570, %v5455
        %v5609 = vmul.f32 %v5573, %v5456
        %v5610 = vmul.f32 %v5578, %v5457
        %v5611 = vmul.f32 %v5581, %v5458
        %v5612 = vmul.f32 %v5586, %v5459
        %v5613 = vmul.f32 %v5589, %v5460
        %v5614 = vmul.f32 %v5594, %v5461
        %v5615 = vmul.f32 %v5597, %v5462
        %v5616 = vpack.c.bf16 %v5601, %v5600
        %v5617 = vpack.c.bf16 %v5603, %v5602
        %v5618 = vpack.c.bf16 %v5605, %v5604
        %v5619 = vpack.c.bf16 %v5607, %v5606
        %v5620 = vpack.c.bf16 %v5609, %v5608
        %v5621 = vpack.c.bf16 %v5611, %v5610
        %v5622 = vpack.c.bf16 %v5613, %v5612
        %v5623 = vpack.c.bf16 %v5615, %v5614
        %5632 = vrot.lane.b32.xlu0 %v3848, 64
        %v5633 = vpop.permute.xlu0 %5632
        %5634 = vrot.lane.b32.xlu0 %v3849, 64
        %v5635 = vpop.permute.xlu0 %5634
        %5636 = vrot.lane.b32.xlu0 %v3850, 64
        %v5637 = vpop.permute.xlu0 %5636
        %5638 = vrot.lane.b32.xlu0 %v3851, 64
        %v5639 = vpop.permute.xlu0 %5638
        %5640 = vrot.lane.b32.xlu0 %v3852, 64
        %v5641 = vpop.permute.xlu0 %5640
        %5642 = vrot.lane.b32.xlu0 %v3853, 64
        %v5643 = vpop.permute.xlu0 %5642
        %5644 = vrot.lane.b32.xlu0 %v3854, 64
        %v5645 = vpop.permute.xlu0 %5644
        %5646 = vrot.lane.b32.xlu0 %v3855, 64
        %v5647 = vpop.permute.xlu0 %5646
        %5656 = vrot.lane.b32.xlu0 %v4732, 64
        %v5657 = vpop.permute.xlu0 %5656
        %5658 = vrot.lane.b32.xlu0 %v4733, 64
        %v5659 = vpop.permute.xlu0 %5658
        %5660 = vrot.lane.b32.xlu0 %v4734, 64
        %v5661 = vpop.permute.xlu0 %5660
        %5662 = vrot.lane.b32.xlu0 %v4735, 64
        %v5663 = vpop.permute.xlu0 %5662
        %5664 = vrot.lane.b32.xlu0 %v4736, 64
        %v5665 = vpop.permute.xlu0 %5664
        %5666 = vrot.lane.b32.xlu0 %v4737, 64
        %v5667 = vpop.permute.xlu0 %5666
        %5668 = vrot.lane.b32.xlu0 %v4738, 64
        %v5669 = vpop.permute.xlu0 %5668
        %5670 = vrot.lane.b32.xlu0 %v4739, 64
        %v5671 = vpop.permute.xlu0 %5670
        %5680 = vrot.lane.b32.xlu0 %v5616, 64
        %v5681 = vpop.permute.xlu0 %5680
        %5682 = vrot.lane.b32.xlu0 %v5617, 64
        %v5683 = vpop.permute.xlu0 %5682
        %5684 = vrot.lane.b32.xlu0 %v5618, 64
        %v5685 = vpop.permute.xlu0 %5684
        %5686 = vrot.lane.b32.xlu0 %v5619, 64
        %v5687 = vpop.permute.xlu0 %5686
        %5688 = vrot.lane.b32.xlu0 %v5620, 64
        %v5689 = vpop.permute.xlu0 %5688
        %5690 = vrot.lane.b32.xlu0 %v5621, 64
        %v5691 = vpop.permute.xlu0 %5690
        %5692 = vrot.lane.b32.xlu0 %v5622, 64
        %v5693 = vpop.permute.xlu0 %5692
        %5694 = vrot.lane.b32.xlu0 %v5623, 64
        %v5695 = vpop.permute.xlu0 %5694
        %v5698 = vsel %vm2971, %v3366, %v5633
        %v5702 = vsel %vm2971, %v3367, %v5635
        %v5706 = vsel %vm2971, %v3368, %v5637
        %v5710 = vsel %vm2971, %v3369, %v5639
        %v5714 = vsel %vm2971, %v3370, %v5641
        %v5718 = vsel %vm2971, %v3371, %v5643
        %v5722 = vsel %vm2971, %v3372, %v5645
        %v5726 = vsel %vm2971, %v3373, %v5647
        %v5730 = vsel %vm2971, %v4250, %v5657
        %v5734 = vsel %vm2971, %v4251, %v5659
        %v5738 = vsel %vm2971, %v4252, %v5661
        %v5742 = vsel %vm2971, %v4253, %v5663
        %v5746 = vsel %vm2971, %v4254, %v5665
        %v5750 = vsel %vm2971, %v4255, %v5667
        %v5754 = vsel %vm2971, %v4256, %v5669
        %v5758 = vsel %vm2971, %v4257, %v5671
        %v5762 = vsel %vm2971, %v5134, %v5681
        %v5766 = vsel %vm2971, %v5135, %v5683
        %v5770 = vsel %vm2971, %v5136, %v5685
        %v5774 = vsel %vm2971, %v5137, %v5687
        %v5778 = vsel %vm2971, %v5138, %v5689
        %v5782 = vsel %vm2971, %v5139, %v5691
        %v5786 = vsel %vm2971, %v5140, %v5693
        %v5790 = vsel %vm2971, %v5141, %v5695
        %v5792 = vld [vmem:[#allocation7] sm:$0xff]
        %v5793 = vld [vmem:[#allocation7 + $0x8] sm:$0xf]
        %v5794 = vld [vmem:[#allocation7 + $0xc] sm:$0xff]
        %v5795 = vld [vmem:[#allocation7 + $0x14] sm:$0xf]
        %v5796 = vld [vmem:[#allocation7 + $0x18] sm:$0xff]
        %v5797 = vld [vmem:[#allocation7 + $0x20] sm:$0xf]
        %v5798 = vld [vmem:[#allocation7 + $0x24] sm:$0xff]
        %v5799 = vld [vmem:[#allocation7 + $0x2c] sm:$0xf]
        %v5800 = vld [vmem:[#allocation7 + $0x30] sm:$0xff]
        %v5801 = vld [vmem:[#allocation7 + $0x38] sm:$0xf]
        %v5802 = vld [vmem:[#allocation7 + $0x3c] sm:$0xff]
        %v5803 = vld [vmem:[#allocation7 + $0x44] sm:$0xf]
        %v5804 = vld [vmem:[#allocation7 + $0x48] sm:$0xff]
        %v5805 = vld [vmem:[#allocation7 + $0x50] sm:$0xf]
        %v5806 = vld [vmem:[#allocation7 + $0x54] sm:$0xff]
        %v5807 = vld [vmem:[#allocation7 + $0x5c] sm:$0xf]
        %v5808 = vld [vmem:[#allocation7 + $0x60] sm:$0xff]
        %v5809 = vld [vmem:[#allocation7 + $0x68] sm:$0xf]
        %v5810 = vld [vmem:[#allocation7 + $0x6c] sm:$0xff]
        %v5811 = vld [vmem:[#allocation7 + $0x74] sm:$0xf]
        %v5812 = vld [vmem:[#allocation7 + $0x78] sm:$0xff]
        %v5813 = vld [vmem:[#allocation7 + $0x80] sm:$0xf]
        %v5814 = vld [vmem:[#allocation7 + $0x84] sm:$0xff]
        %v5815 = vld [vmem:[#allocation7 + $0x8c] sm:$0xf]
        %v5816 = vld [vmem:[#allocation7 + $0x90] sm:$0xff]
        %v5817 = vld [vmem:[#allocation7 + $0x98] sm:$0xf]
        %v5818 = vld [vmem:[#allocation7 + $0x9c] sm:$0xff]
        %v5819 = vld [vmem:[#allocation7 + $0xa4] sm:$0xf]
        %v5820 = vld [vmem:[#allocation7 + $0xa8] sm:$0xff]
        %v5821 = vld [vmem:[#allocation7 + $0xb0] sm:$0xf]
        %v5822 = vld [vmem:[#allocation7 + $0xb4] sm:$0xff]
        %v5823 = vld [vmem:[#allocation7 + $0xbc] sm:$0xf]
        %v5824 = vld [vmem:[#allocation7 + $0xc0] sm:$0xff]
        %v5825 = vld [vmem:[#allocation7 + $0xc8] sm:$0xf]
        %v5826 = vld [vmem:[#allocation7 + $0xcc] sm:$0xff]
        %v5827 = vld [vmem:[#allocation7 + $0xd4] sm:$0xf]
        %v5828 = vld [vmem:[#allocation7 + $0xd8] sm:$0xff]
        %v5829 = vld [vmem:[#allocation7 + $0xe0] sm:$0xf]
        %v5830 = vld [vmem:[#allocation7 + $0xe4] sm:$0xff]
        %v5831 = vld [vmem:[#allocation7 + $0xec] sm:$0xf]
        %v5832 = vld [vmem:[#allocation7 + $0xf0] sm:$0xff]
        %v5833 = vld [vmem:[#allocation7 + $0xf8] sm:$0xf]
        %v5834 = vld [vmem:[#allocation7 + $0xfc] sm:$0xff]
        %v5835 = vld [vmem:[#allocation7 + $0x104] sm:$0xf]
        %v5836 = vld [vmem:[#allocation7 + $0x108] sm:$0xff]
        %v5837 = vld [vmem:[#allocation7 + $0x110] sm:$0xf]
        %v5838 = vld [vmem:[#allocation7 + $0x114] sm:$0xff]
        %v5839 = vld [vmem:[#allocation7 + $0x11c] sm:$0xf]
        %v5840 = vld [vmem:[#allocation7 + $0x120] sm:$0xff]
        %v5841 = vld [vmem:[#allocation7 + $0x128] sm:$0xf]
        %v5842 = vld [vmem:[#allocation7 + $0x12c] sm:$0xff]
        %v5843 = vld [vmem:[#allocation7 + $0x134] sm:$0xf]
        %v5844 = vld [vmem:[#allocation7 + $0x138] sm:$0xff]
        %v5845 = vld [vmem:[#allocation7 + $0x140] sm:$0xf]
        %v5846 = vld [vmem:[#allocation7 + $0x144] sm:$0xff]
        %v5847 = vld [vmem:[#allocation7 + $0x14c] sm:$0xf]
        %v5848 = vld [vmem:[#allocation7 + $0x150] sm:$0xff]
        %v5849 = vld [vmem:[#allocation7 + $0x158] sm:$0xf]
        %v5850 = vld [vmem:[#allocation7 + $0x15c] sm:$0xff]
        %v5851 = vld [vmem:[#allocation7 + $0x164] sm:$0xf]
        %v5852 = vld [vmem:[#allocation7 + $0x168] sm:$0xff]
        %v5853 = vld [vmem:[#allocation7 + $0x170] sm:$0xf]
        %v5854 = vld [vmem:[#allocation7 + $0x174] sm:$0xff]
        %v5855 = vld [vmem:[#allocation7 + $0x17c] sm:$0xf]
        %v5856 = vld [vmem:[#allocation7 + $0x180] sm:$0xff]
        %v5857 = vld [vmem:[#allocation7 + $0x188] sm:$0xf]
        %v5858 = vld [vmem:[#allocation7 + $0x18c] sm:$0xff]
        %v5859 = vld [vmem:[#allocation7 + $0x194] sm:$0xf]
        %v5860 = vld [vmem:[#allocation7 + $0x198] sm:$0xff]
        %v5861 = vld [vmem:[#allocation7 + $0x1a0] sm:$0xf]
        %v5862 = vld [vmem:[#allocation7 + $0x1a4] sm:$0xff]
        %v5863 = vld [vmem:[#allocation7 + $0x1ac] sm:$0xf]
        %v5864 = vld [vmem:[#allocation7 + $0x1b0] sm:$0xff]
        %v5865 = vld [vmem:[#allocation7 + $0x1b8] sm:$0xf]
        %v5866 = vld [vmem:[#allocation7 + $0x1bc] sm:$0xff]
        %v5867 = vld [vmem:[#allocation7 + $0x1c4] sm:$0xf]
        %v5868 = vld [vmem:[#allocation7 + $0x1c8] sm:$0xff]
        %v5869 = vld [vmem:[#allocation7 + $0x1d0] sm:$0xf]
        %v5870 = vld [vmem:[#allocation7 + $0x1d4] sm:$0xff]
        %v5871 = vld [vmem:[#allocation7 + $0x1dc] sm:$0xf]
        %v5872 = vld [vmem:[#allocation7 + $0x1e0] sm:$0xff]
        %v5873 = vld [vmem:[#allocation7 + $0x1e8] sm:$0xf]
        %v5874 = vld [vmem:[#allocation7 + $0x1ec] sm:$0xff]
        %v5875 = vld [vmem:[#allocation7 + $0x1f4] sm:$0xf]
        %v5876 = vld [vmem:[#allocation7 + $0x1f8] sm:$0xff]
        %v5877 = vld [vmem:[#allocation7 + $0x200] sm:$0xf]
        %v5878 = vld [vmem:[#allocation7 + $0x204] sm:$0xff]
        %v5879 = vld [vmem:[#allocation7 + $0x20c] sm:$0xf]
        %v5880 = vld [vmem:[#allocation7 + $0x210] sm:$0xff]
        %v5881 = vld [vmem:[#allocation7 + $0x218] sm:$0xf]
        %v5882 = vld [vmem:[#allocation7 + $0x21c] sm:$0xff]
        %v5883 = vld [vmem:[#allocation7 + $0x224] sm:$0xf]
        %v5884 = vld [vmem:[#allocation7 + $0x228] sm:$0xff]
        %v5885 = vld [vmem:[#allocation7 + $0x230] sm:$0xf]
        %v5886 = vld [vmem:[#allocation7 + $0x234] sm:$0xff]
        %v5887 = vld [vmem:[#allocation7 + $0x23c] sm:$0xf]
        %v5888 = vld [vmem:[%s3] sm:$0x7]
        %v5890 = vlaneseq
        %v5891 = vshrl.u32 %v5890, 7
        %v5892 = vsub.s32 0, %v5891
        %v5893 = vrot.slane %v5888, %v5892
        %v5894 = vlaneseq
        %v5895 = vshrl.u32 %v5894, 7
        %v5896 = vsub.s32 1, %v5895
        %v5897 = vrot.slane %v5888, %v5896
        %v5898 = vlaneseq
        %v5899 = vshrl.u32 %v5898, 7
        %v5900 = vsub.s32 2, %v5899
        %v5901 = vrot.slane %v5888, %v5900
        %v6001 = vunpack.c.l.b16 %v5792
        %v6002 = vunpack.c.h.b16 %v5792
        %v6003 = vunpack.c.l.b16 %v5793
        %v6004 = vunpack.c.l.b16 %v5794
        %v6005 = vunpack.c.h.b16 %v5794
        %v6006 = vunpack.c.l.b16 %v5795
        %v6007 = vunpack.c.l.b16 %v5796
        %v6008 = vunpack.c.h.b16 %v5796
        %v6009 = vunpack.c.l.b16 %v5797
        %v6010 = vunpack.c.l.b16 %v5798
        %v6011 = vunpack.c.h.b16 %v5798
        %v6012 = vunpack.c.l.b16 %v5799
        %v6013 = vunpack.c.l.b16 %v5800
        %v6014 = vunpack.c.h.b16 %v5800
        %v6015 = vunpack.c.l.b16 %v5801
        %v6016 = vunpack.c.l.b16 %v5802
        %v6017 = vunpack.c.h.b16 %v5802
        %v6018 = vunpack.c.l.b16 %v5803
        %v6019 = vunpack.c.l.b16 %v5804
        %v6020 = vunpack.c.h.b16 %v5804
        %v6021 = vunpack.c.l.b16 %v5805
        %v6022 = vunpack.c.l.b16 %v5806
        %v6023 = vunpack.c.h.b16 %v5806
        %v6024 = vunpack.c.l.b16 %v5807
        %v6025 = vunpack.c.l.b16 %v5808
        %v6026 = vunpack.c.h.b16 %v5808
        %v6027 = vunpack.c.l.b16 %v5809
        %v6028 = vunpack.c.l.b16 %v5810
        %v6029 = vunpack.c.h.b16 %v5810
        %v6030 = vunpack.c.l.b16 %v5811
        %v6031 = vunpack.c.l.b16 %v5812
        %v6032 = vunpack.c.h.b16 %v5812
        %v6033 = vunpack.c.l.b16 %v5813
        %v6034 = vunpack.c.l.b16 %v5814
        %v6035 = vunpack.c.h.b16 %v5814
        %v6036 = vunpack.c.l.b16 %v5815
        %v6037 = vunpack.c.l.b16 %v5816
        %v6038 = vunpack.c.h.b16 %v5816
        %v6039 = vunpack.c.l.b16 %v5817
        %v6040 = vunpack.c.l.b16 %v5818
        %v6041 = vunpack.c.h.b16 %v5818
        %v6042 = vunpack.c.l.b16 %v5819
        %v6043 = vunpack.c.l.b16 %v5820
        %v6044 = vunpack.c.h.b16 %v5820
        %v6045 = vunpack.c.l.b16 %v5821
        %v6046 = vunpack.c.l.b16 %v5822
        %v6047 = vunpack.c.h.b16 %v5822
        %v6048 = vunpack.c.l.b16 %v5823
        %v6049 = vunpack.c.l.b16 %v5824
        %v6050 = vunpack.c.h.b16 %v5824
        %v6051 = vunpack.c.l.b16 %v5825
        %v6052 = vunpack.c.l.b16 %v5826
        %v6053 = vunpack.c.h.b16 %v5826
        %v6054 = vunpack.c.l.b16 %v5827
        %v6055 = vunpack.c.l.b16 %v5828
        %v6056 = vunpack.c.h.b16 %v5828
        %v6057 = vunpack.c.l.b16 %v5829
        %v6058 = vunpack.c.l.b16 %v5830
        %v6059 = vunpack.c.h.b16 %v5830
        %v6060 = vunpack.c.l.b16 %v5831
        %v6061 = vunpack.c.l.b16 %v5832
        %v6062 = vunpack.c.h.b16 %v5832
        %v6063 = vunpack.c.l.b16 %v5833
        %v6064 = vunpack.c.l.b16 %v5834
        %v6065 = vunpack.c.h.b16 %v5834
        %v6066 = vunpack.c.l.b16 %v5835
        %v6067 = vunpack.c.l.b16 %v5836
        %v6068 = vunpack.c.h.b16 %v5836
        %v6069 = vunpack.c.l.b16 %v5837
        %v6070 = vunpack.c.l.b16 %v5838
        %v6071 = vunpack.c.h.b16 %v5838
        %v6072 = vunpack.c.l.b16 %v5839
        %v6073 = vunpack.c.l.b16 %v5840
        %v6074 = vunpack.c.h.b16 %v5840
        %v6075 = vunpack.c.l.b16 %v5841
        %v6076 = vunpack.c.l.b16 %v5842
        %v6077 = vunpack.c.h.b16 %v5842
        %v6078 = vunpack.c.l.b16 %v5843
        %v6079 = vunpack.c.l.b16 %v5844
        %v6080 = vunpack.c.h.b16 %v5844
        %v6081 = vunpack.c.l.b16 %v5845
        %v6082 = vunpack.c.l.b16 %v5846
        %v6083 = vunpack.c.h.b16 %v5846
        %v6084 = vunpack.c.l.b16 %v5847
        %v6085 = vunpack.c.l.b16 %v5848
        %v6086 = vunpack.c.h.b16 %v5848
        %v6087 = vunpack.c.l.b16 %v5849
        %v6088 = vunpack.c.l.b16 %v5850
        %v6089 = vunpack.c.h.b16 %v5850
        %v6090 = vunpack.c.l.b16 %v5851
        %v6091 = vunpack.c.l.b16 %v5852
        %v6092 = vunpack.c.h.b16 %v5852
        %v6093 = vunpack.c.l.b16 %v5853
        %v6094 = vunpack.c.l.b16 %v5854
        %v6095 = vunpack.c.h.b16 %v5854
        %v6096 = vunpack.c.l.b16 %v5855
        %v6097 = vunpack.c.l.b16 %v5856
        %v6098 = vunpack.c.h.b16 %v5856
        %v6099 = vunpack.c.l.b16 %v5857
        %v6100 = vunpack.c.l.b16 %v5858
        %v6101 = vunpack.c.h.b16 %v5858
        %v6102 = vunpack.c.l.b16 %v5859
        %v6103 = vunpack.c.l.b16 %v5860
        %v6104 = vunpack.c.h.b16 %v5860
        %v6105 = vunpack.c.l.b16 %v5861
        %v6106 = vunpack.c.l.b16 %v5862
        %v6107 = vunpack.c.h.b16 %v5862
        %v6108 = vunpack.c.l.b16 %v5863
        %v6109 = vunpack.c.l.b16 %v5864
        %v6110 = vunpack.c.h.b16 %v5864
        %v6111 = vunpack.c.l.b16 %v5865
        %v6112 = vunpack.c.l.b16 %v5866
        %v6113 = vunpack.c.h.b16 %v5866
        %v6114 = vunpack.c.l.b16 %v5867
        %v6115 = vunpack.c.l.b16 %v5868
        %v6116 = vunpack.c.h.b16 %v5868
        %v6117 = vunpack.c.l.b16 %v5869
        %v6118 = vunpack.c.l.b16 %v5870
        %v6119 = vunpack.c.h.b16 %v5870
        %v6120 = vunpack.c.l.b16 %v5871
        %v6121 = vunpack.c.l.b16 %v5872
        %v6122 = vunpack.c.h.b16 %v5872
        %v6123 = vunpack.c.l.b16 %v5873
        %v6124 = vunpack.c.l.b16 %v5874
        %v6125 = vunpack.c.h.b16 %v5874
        %v6126 = vunpack.c.l.b16 %v5875
        %v6127 = vunpack.c.l.b16 %v5876
        %v6128 = vunpack.c.h.b16 %v5876
        %v6129 = vunpack.c.l.b16 %v5877
        %v6130 = vunpack.c.l.b16 %v5878
        %v6131 = vunpack.c.h.b16 %v5878
        %v6132 = vunpack.c.l.b16 %v5879
        %v6133 = vunpack.c.l.b16 %v5880
        %v6134 = vunpack.c.h.b16 %v5880
        %v6135 = vunpack.c.l.b16 %v5881
        %v6136 = vunpack.c.l.b16 %v5882
        %v6137 = vunpack.c.h.b16 %v5882
        %v6138 = vunpack.c.l.b16 %v5883
        %v6139 = vunpack.c.l.b16 %v5884
        %v6140 = vunpack.c.h.b16 %v5884
        %v6141 = vunpack.c.l.b16 %v5885
        %v6142 = vunpack.c.l.b16 %v5886
        %v6143 = vunpack.c.h.b16 %v5886
        %v6144 = vunpack.c.l.b16 %v5887
        %v6145 = vpack.c.b16 %v6004, %v6001
        %v6146 = vpack.c.b16 %v6005, %v6002
        %v6147 = vpack.c.b16 %v6006, %v6003
        %v6148 = vpack.c.b16 %v6010, %v6007
        %v6149 = vpack.c.b16 %v6011, %v6008
        %v6150 = vpack.c.b16 %v6012, %v6009
        %v6151 = vpack.c.b16 %v6016, %v6013
        %v6152 = vpack.c.b16 %v6017, %v6014
        %v6153 = vpack.c.b16 %v6018, %v6015
        %v6154 = vpack.c.b16 %v6022, %v6019
        %v6155 = vpack.c.b16 %v6023, %v6020
        %v6156 = vpack.c.b16 %v6024, %v6021
        %v6157 = vpack.c.b16 %v6028, %v6025
        %v6158 = vpack.c.b16 %v6029, %v6026
        %v6159 = vpack.c.b16 %v6030, %v6027
        %v6160 = vpack.c.b16 %v6034, %v6031
        %v6161 = vpack.c.b16 %v6035, %v6032
        %v6162 = vpack.c.b16 %v6036, %v6033
        %v6163 = vpack.c.b16 %v6040, %v6037
        %v6164 = vpack.c.b16 %v6041, %v6038
        %v6165 = vpack.c.b16 %v6042, %v6039
        %v6166 = vpack.c.b16 %v6046, %v6043
        %v6167 = vpack.c.b16 %v6047, %v6044
        %v6168 = vpack.c.b16 %v6048, %v6045
        %v6169 = vpack.c.b16 %v6052, %v6049
        %v6170 = vpack.c.b16 %v6053, %v6050
        %v6171 = vpack.c.b16 %v6054, %v6051
        %v6172 = vpack.c.b16 %v6058, %v6055
        %v6173 = vpack.c.b16 %v6059, %v6056
        %v6174 = vpack.c.b16 %v6060, %v6057
        %v6175 = vpack.c.b16 %v6064, %v6061
        %v6176 = vpack.c.b16 %v6065, %v6062
        %v6177 = vpack.c.b16 %v6066, %v6063
        %v6178 = vpack.c.b16 %v6070, %v6067
        %v6179 = vpack.c.b16 %v6071, %v6068
        %v6180 = vpack.c.b16 %v6072, %v6069
        %v6181 = vpack.c.b16 %v6076, %v6073
        %v6182 = vpack.c.b16 %v6077, %v6074
        %v6183 = vpack.c.b16 %v6078, %v6075
        %v6184 = vpack.c.b16 %v6082, %v6079
        %v6185 = vpack.c.b16 %v6083, %v6080
        %v6186 = vpack.c.b16 %v6084, %v6081
        %v6187 = vpack.c.b16 %v6088, %v6085
        %v6188 = vpack.c.b16 %v6089, %v6086
        %v6189 = vpack.c.b16 %v6090, %v6087
        %v6190 = vpack.c.b16 %v6094, %v6091
        %v6191 = vpack.c.b16 %v6095, %v6092
        %v6192 = vpack.c.b16 %v6096, %v6093
        %v6193 = vpack.c.b16 %v6100, %v6097
        %v6194 = vpack.c.b16 %v6101, %v6098
        %v6195 = vpack.c.b16 %v6102, %v6099
        %v6196 = vpack.c.b16 %v6106, %v6103
        %v6197 = vpack.c.b16 %v6107, %v6104
        %v6198 = vpack.c.b16 %v6108, %v6105
        %v6199 = vpack.c.b16 %v6112, %v6109
        %v6200 = vpack.c.b16 %v6113, %v6110
        %v6201 = vpack.c.b16 %v6114, %v6111
        %v6202 = vpack.c.b16 %v6118, %v6115
        %v6203 = vpack.c.b16 %v6119, %v6116
        %v6204 = vpack.c.b16 %v6120, %v6117
        %v6205 = vpack.c.b16 %v6124, %v6121
        %v6206 = vpack.c.b16 %v6125, %v6122
        %v6207 = vpack.c.b16 %v6126, %v6123
        %v6208 = vpack.c.b16 %v6130, %v6127
        %v6209 = vpack.c.b16 %v6131, %v6128
        %v6210 = vpack.c.b16 %v6132, %v6129
        %v6211 = vpack.c.b16 %v6136, %v6133
        %v6212 = vpack.c.b16 %v6137, %v6134
        %v6213 = vpack.c.b16 %v6138, %v6135
        %v6214 = vpack.c.b16 %v6142, %v6139
        %v6215 = vpack.c.b16 %v6143, %v6140
        %v6216 = vpack.c.b16 %v6144, %v6141
        %6289 = vmatprep.subr.bf16.mxu0 %v6167
        %6290 = vmatpush1.bf16.msra.mxu0 %v6166
        %6291 = vmatprep.subr.bf16.mxu0 %v6164
        %6292 = vmatpush1.bf16.msra.mxu0 %v6163
        %6293 = vmatprep.subr.bf16.mxu0 %v6161
        %6294 = vmatpush1.bf16.msra.mxu0 %v6160
        %6295 = vmatprep.subr.bf16.mxu0 %v6158
        %6296 = vmatpush1.bf16.msra.mxu0 %v6157
        %6297 = vmatprep.subr.bf16.mxu0 %v6155
        %6298 = vmatpush1.bf16.msra.mxu0 %v6154
        %6299 = vmatprep.subr.bf16.mxu0 %v6152
        %6300 = vmatpush1.bf16.msra.mxu0 %v6151
        %6301 = vmatprep.subr.bf16.mxu0 %v6149
        %6302 = vmatpush1.bf16.msra.mxu0 %v6148
        %6303 = vmatprep.subr.bf16.mxu0 %v6146
        %6304 = vmatpush1.bf16.msra.mxu0 %v6145
        %6305 = vmatprep.subr.bf16.mxu0 %v6191
        %6306 = vmatpush2.bf16.msra.mxu0 %v6190
        %6307 = vmatprep.subr.bf16.mxu0 %v6188
        %6308 = vmatpush2.bf16.msra.mxu0 %v6187
        %6309 = vmatprep.subr.bf16.mxu0 %v6185
        %6310 = vmatpush2.bf16.msra.mxu0 %v6184
        %6311 = vmatprep.subr.bf16.mxu0 %v6182
        %6312 = vmatpush2.bf16.msra.mxu0 %v6181
        %6313 = vmatprep.subr.bf16.mxu0 %v6179
        %6314 = vmatpush2.bf16.msra.mxu0 %v6178
        %6315 = vmatprep.subr.bf16.mxu0 %v6176
        %6316 = vmatpush2.bf16.msra.mxu0 %v6175
        %6317 = vmatprep.subr.bf16.mxu0 %v6173
        %6318 = vmatpush2.bf16.msra.mxu0 %v6172
        %6319 = vmatprep.subr.bf16.mxu0 %v6170
        %6320 = vmatpush2.bf16.msra.mxu0 %v6169
        %6321 = vmatprep.mubr.bf16.mxu0 %v5730
        %6322 = vmatmul.mubr.bf16.gmra.mxu0 %v5698
        %v6323 = vpop.f32.mrf.mxu0
        %v6324 = vadd.f32 %v5893, %v6323
        %v6325 = vpop.f32.mrf.mxu0
        %v6326 = vadd.f32 %v5897, %v6325
        %v6327 = vpop.f32.mrf.mxu0
        %v6328 = vadd.f32 %v5893, %v6327
        %v6329 = vpop.f32.mrf.mxu0
        %v6330 = vadd.f32 %v5897, %v6329
        %6331 = vmatprep.mubr.bf16.mxu0 %v5734
        %6332 = vmatmul.mubr.bf16.gmra.mxu0 %v5702
        %v6333 = vpop.f32.mrf.mxu0
        %v6334 = vadd.f32 %v5893, %v6333
        %v6335 = vpop.f32.mrf.mxu0
        %v6336 = vadd.f32 %v5897, %v6335
        %v6337 = vpop.f32.mrf.mxu0
        %v6338 = vadd.f32 %v5893, %v6337
        %v6339 = vpop.f32.mrf.mxu0
        %v6340 = vadd.f32 %v5897, %v6339
        %6341 = vmatprep.mubr.bf16.mxu0 %v5738
        %6342 = vmatmul.mubr.bf16.gmra.mxu0 %v5706
        %v6343 = vpop.f32.mrf.mxu0
        %v6344 = vadd.f32 %v5893, %v6343
        %v6345 = vpop.f32.mrf.mxu0
        %v6346 = vadd.f32 %v5897, %v6345
        %v6347 = vpop.f32.mrf.mxu0
        %v6348 = vadd.f32 %v5893, %v6347
        %v6349 = vpop.f32.mrf.mxu0
        %v6350 = vadd.f32 %v5897, %v6349
        %6351 = vmatprep.mubr.bf16.mxu0 %v5742
        %6352 = vmatmul.mubr.bf16.gmra.mxu0 %v5710
        %v6353 = vpop.f32.mrf.mxu0
        %v6354 = vadd.f32 %v5893, %v6353
        %v6355 = vpop.f32.mrf.mxu0
        %v6356 = vadd.f32 %v5897, %v6355
        %v6357 = vpop.f32.mrf.mxu0
        %v6358 = vadd.f32 %v5893, %v6357
        %v6359 = vpop.f32.mrf.mxu0
        %v6360 = vadd.f32 %v5897, %v6359
        %6361 = vmatprep.mubr.bf16.mxu0 %v5746
        %6362 = vmatmul.mubr.bf16.gmra.mxu0 %v5714
        %v6363 = vpop.f32.mrf.mxu0
        %v6364 = vadd.f32 %v5893, %v6363
        %v6365 = vpop.f32.mrf.mxu0
        %v6366 = vadd.f32 %v5897, %v6365
        %v6367 = vpop.f32.mrf.mxu0
        %v6368 = vadd.f32 %v5893, %v6367
        %v6369 = vpop.f32.mrf.mxu0
        %v6370 = vadd.f32 %v5897, %v6369
        %6371 = vmatprep.mubr.bf16.mxu0 %v5750
        %6372 = vmatmul.mubr.bf16.gmra.mxu0 %v5718
        %v6373 = vpop.f32.mrf.mxu0
        %v6374 = vadd.f32 %v5893, %v6373
        %v6375 = vpop.f32.mrf.mxu0
        %v6376 = vadd.f32 %v5897, %v6375
        %v6377 = vpop.f32.mrf.mxu0
        %v6378 = vadd.f32 %v5893, %v6377
        %v6379 = vpop.f32.mrf.mxu0
        %v6380 = vadd.f32 %v5897, %v6379
        %6381 = vmatprep.mubr.bf16.mxu0 %v5754
        %6382 = vmatmul.mubr.bf16.gmra.mxu0 %v5722
        %v6383 = vpop.f32.mrf.mxu0
        %v6384 = vadd.f32 %v5893, %v6383
        %v6385 = vpop.f32.mrf.mxu0
        %v6386 = vadd.f32 %v5897, %v6385
        %v6387 = vpop.f32.mrf.mxu0
        %v6388 = vadd.f32 %v5893, %v6387
        %v6389 = vpop.f32.mrf.mxu0
        %v6390 = vadd.f32 %v5897, %v6389
        %6391 = vmatprep.mubr.bf16.mxu0 %v5758
        %6392 = vmatmul.mubr.bf16.gmra.mxu0 %v5726
        %v6393 = vpop.f32.mrf.mxu0
        %v6394 = vadd.f32 %v5893, %v6393
        %v6395 = vpop.f32.mrf.mxu0
        %v6396 = vadd.f32 %v5897, %v6395
        %v6397 = vpop.f32.mrf.mxu0
        %v6398 = vadd.f32 %v5893, %v6397
        %v6399 = vpop.f32.mrf.mxu0
        %v6400 = vadd.f32 %v5897, %v6399
        %6401 = vdwg.mxu0
        %6402 = vmatprep.subr.bf16.mxu0 %v6215
        %6403 = vmatpush1.bf16.msra.mxu0 %v6214
        %6404 = vmatprep.subr.bf16.mxu0 %v6212
        %6405 = vmatpush1.bf16.msra.mxu0 %v6211
        %6406 = vmatprep.subr.bf16.mxu0 %v6209
        %6407 = vmatpush1.bf16.msra.mxu0 %v6208
        %6408 = vmatprep.subr.bf16.mxu0 %v6206
        %6409 = vmatpush1.bf16.msra.mxu0 %v6205
        %6410 = vmatprep.subr.bf16.mxu0 %v6203
        %6411 = vmatpush1.bf16.msra.mxu0 %v6202
        %6412 = vmatprep.subr.bf16.mxu0 %v6200
        %6413 = vmatpush1.bf16.msra.mxu0 %v6199
        %6414 = vmatprep.subr.bf16.mxu0 %v6197
        %6415 = vmatpush1.bf16.msra.mxu0 %v6196
        %6416 = vmatprep.subr.bf16.mxu0 %v6194
        %6417 = vmatpush1.bf16.msra.mxu0 %v6193
        %6418 = vmatprep.subr.bf16.mxu0 0
        %6419 = vmatpush2.bf16.msra.mxu0 0
        %6420 = vmatprep.subr.bf16.mxu0 0
        %6421 = vmatpush2.bf16.msra.mxu0 0
        %6422 = vmatprep.subr.bf16.mxu0 0
        %6423 = vmatpush2.bf16.msra.mxu0 0
        %6424 = vmatprep.subr.bf16.mxu0 0
        %6425 = vmatpush2.bf16.msra.mxu0 0
        %6426 = vmatprep.subr.bf16.mxu0 0
        %6427 = vmatpush2.bf16.msra.mxu0 0
        %6428 = vmatprep.subr.bf16.mxu0 0
        %6429 = vmatpush2.bf16.msra.mxu0 0
        %6430 = vmatprep.subr.bf16.mxu0 0
        %6431 = vmatpush2.bf16.msra.mxu0 0
        %6432 = vmatprep.subr.bf16.mxu0 0
        %6433 = vmatpush2.bf16.msra.mxu0 0
        %6434 = vmatprep.mubr.bf16.mxu0 0
        %6435 = vmatmul.mubr.bf16.gmra.mxu0 %v5762
        %v6436 = vpop.f32.mrf.mxu0
        %v6437 = vadd.f32 %v6324, %v6436
        %v6438 = vpop.f32.mrf.mxu0
        %v6439 = vadd.f32 %v6326, %v6438
        %v6440 = vpop.f32.mrf.mxu0
        %v6441 = vadd.f32 %v6328, %v6440
        %v6442 = vpop.f32.mrf.mxu0
        %v6443 = vadd.f32 %v6330, %v6442
        %6444 = vmatprep.mubr.bf16.mxu0 0
        %6445 = vmatmul.mubr.bf16.gmra.mxu0 %v5766
        %v6446 = vpop.f32.mrf.mxu0
        %v6447 = vadd.f32 %v6334, %v6446
        %v6448 = vpop.f32.mrf.mxu0
        %v6449 = vadd.f32 %v6336, %v6448
        %v6450 = vpop.f32.mrf.mxu0
        %v6451 = vadd.f32 %v6338, %v6450
        %v6452 = vpop.f32.mrf.mxu0
        %v6453 = vadd.f32 %v6340, %v6452
        %6454 = vmatprep.mubr.bf16.mxu0 0
        %6455 = vmatmul.mubr.bf16.gmra.mxu0 %v5770
        %v6456 = vpop.f32.mrf.mxu0
        %v6457 = vadd.f32 %v6344, %v6456
        %v6458 = vpop.f32.mrf.mxu0
        %v6459 = vadd.f32 %v6346, %v6458
        %v6460 = vpop.f32.mrf.mxu0
        %v6461 = vadd.f32 %v6348, %v6460
        %v6462 = vpop.f32.mrf.mxu0
        %v6463 = vadd.f32 %v6350, %v6462
        %6464 = vmatprep.mubr.bf16.mxu0 0
        %6465 = vmatmul.mubr.bf16.gmra.mxu0 %v5774
        %v6466 = vpop.f32.mrf.mxu0
        %v6467 = vadd.f32 %v6354, %v6466
        %v6468 = vpop.f32.mrf.mxu0
        %v6469 = vadd.f32 %v6356, %v6468
        %v6470 = vpop.f32.mrf.mxu0
        %v6471 = vadd.f32 %v6358, %v6470
        %v6472 = vpop.f32.mrf.mxu0
        %v6473 = vadd.f32 %v6360, %v6472
        %6474 = vmatprep.mubr.bf16.mxu0 0
        %6475 = vmatmul.mubr.bf16.gmra.mxu0 %v5778
        %v6476 = vpop.f32.mrf.mxu0
        %v6477 = vadd.f32 %v6364, %v6476
        %v6478 = vpop.f32.mrf.mxu0
        %v6479 = vadd.f32 %v6366, %v6478
        %v6480 = vpop.f32.mrf.mxu0
        %v6481 = vadd.f32 %v6368, %v6480
        %v6482 = vpop.f32.mrf.mxu0
        %v6483 = vadd.f32 %v6370, %v6482
        %6484 = vmatprep.mubr.bf16.mxu0 0
        %6485 = vmatmul.mubr.bf16.gmra.mxu0 %v5782
        %v6486 = vpop.f32.mrf.mxu0
        %v6487 = vadd.f32 %v6374, %v6486
        %v6488 = vpop.f32.mrf.mxu0
        %v6489 = vadd.f32 %v6376, %v6488
        %v6490 = vpop.f32.mrf.mxu0
        %v6491 = vadd.f32 %v6378, %v6490
        %v6492 = vpop.f32.mrf.mxu0
        %v6493 = vadd.f32 %v6380, %v6492
        %6494 = vmatprep.mubr.bf16.mxu0 0
        %6495 = vmatmul.mubr.bf16.gmra.mxu0 %v5786
        %v6496 = vpop.f32.mrf.mxu0
        %v6497 = vadd.f32 %v6384, %v6496
        %v6498 = vpop.f32.mrf.mxu0
        %v6499 = vadd.f32 %v6386, %v6498
        %v6500 = vpop.f32.mrf.mxu0
        %v6501 = vadd.f32 %v6388, %v6500
        %v6502 = vpop.f32.mrf.mxu0
        %v6503 = vadd.f32 %v6390, %v6502
        %6504 = vmatprep.mubr.bf16.mxu0 0
        %6505 = vmatmul.mubr.bf16.gmra.mxu0 %v5790
        %v6506 = vpop.f32.mrf.mxu0
        %v6507 = vadd.f32 %v6394, %v6506
        %v6508 = vpop.f32.mrf.mxu0
        %v6509 = vadd.f32 %v6396, %v6508
        %v6510 = vpop.f32.mrf.mxu0
        %v6511 = vadd.f32 %v6398, %v6510
        %v6512 = vpop.f32.mrf.mxu0
        %v6513 = vadd.f32 %v6400, %v6512
        %6514 = vdwg.mxu0
        %6515 = vmatprep.subr.bf16.mxu0 0
        %6516 = vmatpush1.bf16.msra.mxu0 %v6168
        %6517 = vmatprep.subr.bf16.mxu0 0
        %6518 = vmatpush1.bf16.msra.mxu0 %v6165
        %6519 = vmatprep.subr.bf16.mxu0 0
        %6520 = vmatpush1.bf16.msra.mxu0 %v6162
        %6521 = vmatprep.subr.bf16.mxu0 0
        %6522 = vmatpush1.bf16.msra.mxu0 %v6159
        %6523 = vmatprep.subr.bf16.mxu0 0
        %6524 = vmatpush1.bf16.msra.mxu0 %v6156
        %6525 = vmatprep.subr.bf16.mxu0 0
        %6526 = vmatpush1.bf16.msra.mxu0 %v6153
        %6527 = vmatprep.subr.bf16.mxu0 0
        %6528 = vmatpush1.bf16.msra.mxu0 %v6150
        %6529 = vmatprep.subr.bf16.mxu0 0
        %6530 = vmatpush1.bf16.msra.mxu0 %v6147
        %6531 = vmatprep.subr.bf16.mxu0 0
        %6532 = vmatpush2.bf16.msra.mxu0 %v6192
        %6533 = vmatprep.subr.bf16.mxu0 0
        %6534 = vmatpush2.bf16.msra.mxu0 %v6189
        %6535 = vmatprep.subr.bf16.mxu0 0
        %6536 = vmatpush2.bf16.msra.mxu0 %v6186
        %6537 = vmatprep.subr.bf16.mxu0 0
        %6538 = vmatpush2.bf16.msra.mxu0 %v6183
        %6539 = vmatprep.subr.bf16.mxu0 0
        %6540 = vmatpush2.bf16.msra.mxu0 %v6180
        %6541 = vmatprep.subr.bf16.mxu0 0
        %6542 = vmatpush2.bf16.msra.mxu0 %v6177
        %6543 = vmatprep.subr.bf16.mxu0 0
        %6544 = vmatpush2.bf16.msra.mxu0 %v6174
        %6545 = vmatprep.subr.bf16.mxu0 0
        %6546 = vmatpush2.bf16.msra.mxu0 %v6171
        %6547 = vmatprep.mubr.bf16.mxu0 %v5730
        %6548 = vmatmul.mubr.bf16.gmra.mxu0 %v5698
        %v6549 = vpop.f32.mrf.mxu0
        %v6550 = vadd.f32 %v5901, %v6549
        %v6551 = vpop.f32.mrf.mxu0
        %v6552 = vpop.f32.mrf.mxu0
        %v6553 = vadd.f32 %v5901, %v6552
        %v6554 = vpop.f32.mrf.mxu0
        %6555 = vmatprep.mubr.bf16.mxu0 %v5734
        %6556 = vmatmul.mubr.bf16.gmra.mxu0 %v5702
        %v6557 = vpop.f32.mrf.mxu0
        %v6558 = vadd.f32 %v5901, %v6557
        %v6559 = vpop.f32.mrf.mxu0
        %v6560 = vpop.f32.mrf.mxu0
        %v6561 = vadd.f32 %v5901, %v6560
        %v6562 = vpop.f32.mrf.mxu0
        %6563 = vmatprep.mubr.bf16.mxu0 %v5738
        %6564 = vmatmul.mubr.bf16.gmra.mxu0 %v5706
        %v6565 = vpop.f32.mrf.mxu0
        %v6566 = vadd.f32 %v5901, %v6565
        %v6567 = vpop.f32.mrf.mxu0
        %v6568 = vpop.f32.mrf.mxu0
        %v6569 = vadd.f32 %v5901, %v6568
        %v6570 = vpop.f32.mrf.mxu0
        %6571 = vmatprep.mubr.bf16.mxu0 %v5742
        %6572 = vmatmul.mubr.bf16.gmra.mxu0 %v5710
        %v6573 = vpop.f32.mrf.mxu0
        %v6574 = vadd.f32 %v5901, %v6573
        %v6575 = vpop.f32.mrf.mxu0
        %v6576 = vpop.f32.mrf.mxu0
        %v6577 = vadd.f32 %v5901, %v6576
        %v6578 = vpop.f32.mrf.mxu0
        %6579 = vmatprep.mubr.bf16.mxu0 %v5746
        %6580 = vmatmul.mubr.bf16.gmra.mxu0 %v5714
        %v6581 = vpop.f32.mrf.mxu0
        %v6582 = vadd.f32 %v5901, %v6581
        %v6583 = vpop.f32.mrf.mxu0
        %v6584 = vpop.f32.mrf.mxu0
        %v6585 = vadd.f32 %v5901, %v6584
        %v6586 = vpop.f32.mrf.mxu0
        %6587 = vmatprep.mubr.bf16.mxu0 %v5750
        %6588 = vmatmul.mubr.bf16.gmra.mxu0 %v5718
        %v6589 = vpop.f32.mrf.mxu0
        %v6590 = vadd.f32 %v5901, %v6589
        %v6591 = vpop.f32.mrf.mxu0
        %v6592 = vpop.f32.mrf.mxu0
        %v6593 = vadd.f32 %v5901, %v6592
        %v6594 = vpop.f32.mrf.mxu0
        %6595 = vmatprep.mubr.bf16.mxu0 %v5754
        %6596 = vmatmul.mubr.bf16.gmra.mxu0 %v5722
        %v6597 = vpop.f32.mrf.mxu0
        %v6598 = vadd.f32 %v5901, %v6597
        %v6599 = vpop.f32.mrf.mxu0
        %v6600 = vpop.f32.mrf.mxu0
        %v6601 = vadd.f32 %v5901, %v6600
        %v6602 = vpop.f32.mrf.mxu0
        %6603 = vmatprep.mubr.bf16.mxu0 %v5758
        %6604 = vmatmul.mubr.bf16.gmra.mxu0 %v5726
        %v6605 = vpop.f32.mrf.mxu0
        %v6606 = vadd.f32 %v5901, %v6605
        %v6607 = vpop.f32.mrf.mxu0
        %v6608 = vpop.f32.mrf.mxu0
        %v6609 = vadd.f32 %v5901, %v6608
        %v6610 = vpop.f32.mrf.mxu0
        %6611 = vdwg.mxu0
        %6612 = vmatprep.subr.bf16.mxu0 0
        %6613 = vmatpush1.bf16.msra.mxu0 %v6216
        %6614 = vmatprep.subr.bf16.mxu0 0
        %6615 = vmatpush1.bf16.msra.mxu0 %v6213
        %6616 = vmatprep.subr.bf16.mxu0 0
        %6617 = vmatpush1.bf16.msra.mxu0 %v6210
        %6618 = vmatprep.subr.bf16.mxu0 0
        %6619 = vmatpush1.bf16.msra.mxu0 %v6207
        %6620 = vmatprep.subr.bf16.mxu0 0
        %6621 = vmatpush1.bf16.msra.mxu0 %v6204
        %6622 = vmatprep.subr.bf16.mxu0 0
        %6623 = vmatpush1.bf16.msra.mxu0 %v6201
        %6624 = vmatprep.subr.bf16.mxu0 0
        %6625 = vmatpush1.bf16.msra.mxu0 %v6198
        %6626 = vmatprep.subr.bf16.mxu0 0
        %6627 = vmatpush1.bf16.msra.mxu0 %v6195
        %6628 = vmatprep.subr.bf16.mxu0 0
        %6629 = vmatpush2.bf16.msra.mxu0 0
        %6630 = vmatprep.subr.bf16.mxu0 0
        %6631 = vmatpush2.bf16.msra.mxu0 0
        %6632 = vmatprep.subr.bf16.mxu0 0
        %6633 = vmatpush2.bf16.msra.mxu0 0
        %6634 = vmatprep.subr.bf16.mxu0 0
        %6635 = vmatpush2.bf16.msra.mxu0 0
        %6636 = vmatprep.subr.bf16.mxu0 0
        %6637 = vmatpush2.bf16.msra.mxu0 0
        %6638 = vmatprep.subr.bf16.mxu0 0
        %6639 = vmatpush2.bf16.msra.mxu0 0
        %6640 = vmatprep.subr.bf16.mxu0 0
        %6641 = vmatpush2.bf16.msra.mxu0 0
        %6642 = vmatprep.subr.bf16.mxu0 0
        %6643 = vmatpush2.bf16.msra.mxu0 0
        %6644 = vmatprep.mubr.bf16.mxu0 0
        %6645 = vmatmul.mubr.bf16.gmra.mxu0 %v5762
        %v6646 = vpop.f32.mrf.mxu0
        %v6647 = vadd.f32 %v6550, %v6646
        %v6648 = vpop.f32.mrf.mxu0
        %v6649 = vpop.f32.mrf.mxu0
        %v6650 = vadd.f32 %v6553, %v6649
        %v6651 = vpop.f32.mrf.mxu0
        %6652 = vmatprep.mubr.bf16.mxu0 0
        %6653 = vmatmul.mubr.bf16.gmra.mxu0 %v5766
        %v6654 = vpop.f32.mrf.mxu0
        %v6655 = vadd.f32 %v6558, %v6654
        %v6656 = vpop.f32.mrf.mxu0
        %v6657 = vpop.f32.mrf.mxu0
        %v6658 = vadd.f32 %v6561, %v6657
        %v6659 = vpop.f32.mrf.mxu0
        %6660 = vmatprep.mubr.bf16.mxu0 0
        %6661 = vmatmul.mubr.bf16.gmra.mxu0 %v5770
        %v6662 = vpop.f32.mrf.mxu0
        %v6663 = vadd.f32 %v6566, %v6662
        %v6664 = vpop.f32.mrf.mxu0
        %v6665 = vpop.f32.mrf.mxu0
        %v6666 = vadd.f32 %v6569, %v6665
        %v6667 = vpop.f32.mrf.mxu0
        %6668 = vmatprep.mubr.bf16.mxu0 0
        %6669 = vmatmul.mubr.bf16.gmra.mxu0 %v5774
        %v6670 = vpop.f32.mrf.mxu0
        %v6671 = vadd.f32 %v6574, %v6670
        %v6672 = vpop.f32.mrf.mxu0
        %v6673 = vpop.f32.mrf.mxu0
        %v6674 = vadd.f32 %v6577, %v6673
        %v6675 = vpop.f32.mrf.mxu0
        %6676 = vmatprep.mubr.bf16.mxu0 0
        %6677 = vmatmul.mubr.bf16.gmra.mxu0 %v5778
        %v6678 = vpop.f32.mrf.mxu0
        %v6679 = vadd.f32 %v6582, %v6678
        %v6680 = vpop.f32.mrf.mxu0
        %v6681 = vpop.f32.mrf.mxu0
        %v6682 = vadd.f32 %v6585, %v6681
        %v6683 = vpop.f32.mrf.mxu0
        %6684 = vmatprep.mubr.bf16.mxu0 0
        %6685 = vmatmul.mubr.bf16.gmra.mxu0 %v5782
        %v6686 = vpop.f32.mrf.mxu0
        %v6687 = vadd.f32 %v6590, %v6686
        %v6688 = vpop.f32.mrf.mxu0
        %v6689 = vpop.f32.mrf.mxu0
        %v6690 = vadd.f32 %v6593, %v6689
        %v6691 = vpop.f32.mrf.mxu0
        %6692 = vmatprep.mubr.bf16.mxu0 0
        %6693 = vmatmul.mubr.bf16.gmra.mxu0 %v5786
        %v6694 = vpop.f32.mrf.mxu0
        %v6695 = vadd.f32 %v6598, %v6694
        %v6696 = vpop.f32.mrf.mxu0
        %v6697 = vpop.f32.mrf.mxu0
        %v6698 = vadd.f32 %v6601, %v6697
        %v6699 = vpop.f32.mrf.mxu0
        %6700 = vmatprep.mubr.bf16.mxu0 0
        %6701 = vmatmul.mubr.bf16.gmra.mxu0 %v5790
        %v6702 = vpop.f32.mrf.mxu0
        %v6703 = vadd.f32 %v6606, %v6702
        %v6704 = vpop.f32.mrf.mxu0
        %v6705 = vpop.f32.mrf.mxu0
        %v6706 = vadd.f32 %v6609, %v6705
        %v6707 = vpop.f32.mrf.mxu0
        %6708 = vdwg.mxu0
        %v6709 = vpack.c.bf16 %v6441, %v6437
        %v6710 = vpack.c.bf16 %v6443, %v6439
        %v6711 = vpack.c.bf16 %v6650, %v6647
        %v6712 = vpack.c.bf16 %v6451, %v6447
        %v6713 = vpack.c.bf16 %v6453, %v6449
        %v6714 = vpack.c.bf16 %v6658, %v6655
        %v6715 = vpack.c.bf16 %v6461, %v6457
        %v6716 = vpack.c.bf16 %v6463, %v6459
        %v6717 = vpack.c.bf16 %v6666, %v6663
        %v6718 = vpack.c.bf16 %v6471, %v6467
        %v6719 = vpack.c.bf16 %v6473, %v6469
        %v6720 = vpack.c.bf16 %v6674, %v6671
        %v6721 = vpack.c.bf16 %v6481, %v6477
        %v6722 = vpack.c.bf16 %v6483, %v6479
        %v6723 = vpack.c.bf16 %v6682, %v6679
        %v6724 = vpack.c.bf16 %v6491, %v6487
        %v6725 = vpack.c.bf16 %v6493, %v6489
        %v6726 = vpack.c.bf16 %v6690, %v6687
        %v6727 = vpack.c.bf16 %v6501, %v6497
        %v6728 = vpack.c.bf16 %v6503, %v6499
        %v6729 = vpack.c.bf16 %v6698, %v6695
        %v6730 = vpack.c.bf16 %v6511, %v6507
        %v6731 = vpack.c.bf16 %v6513, %v6509
        %v6732 = vpack.c.bf16 %v6706, %v6703
        %v6757 = vunpack.c.l.b16 %v6709
        %v6758 = vunpack.c.l.b16 %v6710
        %v6759 = vunpack.c.l.b16 %v6711
        %v6760 = vunpack.c.h.b16 %v6709
        %v6761 = vunpack.c.h.b16 %v6710
        %v6762 = vunpack.c.h.b16 %v6711
        %v6763 = vunpack.c.l.b16 %v6712
        %v6764 = vunpack.c.l.b16 %v6713
        %v6765 = vunpack.c.l.b16 %v6714
        %v6766 = vunpack.c.h.b16 %v6712
        %v6767 = vunpack.c.h.b16 %v6713
        %v6768 = vunpack.c.h.b16 %v6714
        %v6769 = vunpack.c.l.b16 %v6715
        %v6770 = vunpack.c.l.b16 %v6716
        %v6771 = vunpack.c.l.b16 %v6717
        %v6772 = vunpack.c.h.b16 %v6715
        %v6773 = vunpack.c.h.b16 %v6716
        %v6774 = vunpack.c.h.b16 %v6717
        %v6775 = vunpack.c.l.b16 %v6718
        %v6776 = vunpack.c.l.b16 %v6719
        %v6777 = vunpack.c.l.b16 %v6720
        %v6778 = vunpack.c.h.b16 %v6718
        %v6779 = vunpack.c.h.b16 %v6719
        %v6780 = vunpack.c.h.b16 %v6720
        %v6781 = vunpack.c.l.b16 %v6721
        %v6782 = vunpack.c.l.b16 %v6722
        %v6783 = vunpack.c.l.b16 %v6723
        %v6784 = vunpack.c.h.b16 %v6721
        %v6785 = vunpack.c.h.b16 %v6722
        %v6786 = vunpack.c.h.b16 %v6723
        %v6787 = vunpack.c.l.b16 %v6724
        %v6788 = vunpack.c.l.b16 %v6725
        %v6789 = vunpack.c.l.b16 %v6726
        %v6790 = vunpack.c.h.b16 %v6724
        %v6791 = vunpack.c.h.b16 %v6725
        %v6792 = vunpack.c.h.b16 %v6726
        %v6793 = vunpack.c.l.b16 %v6727
        %v6794 = vunpack.c.l.b16 %v6728
        %v6795 = vunpack.c.l.b16 %v6729
        %v6796 = vunpack.c.h.b16 %v6727
        %v6797 = vunpack.c.h.b16 %v6728
        %v6798 = vunpack.c.h.b16 %v6729
        %v6799 = vunpack.c.l.b16 %v6730
        %v6800 = vunpack.c.l.b16 %v6731
        %v6801 = vunpack.c.l.b16 %v6732
        %v6802 = vunpack.c.h.b16 %v6730
        %v6803 = vunpack.c.h.b16 %v6731
        %v6804 = vunpack.c.h.b16 %v6732
        %v6805 = vpack.c.b16 %v6758, %v6757
        %v6806 = vpack.c.b16 %v6759, %v6759
        %v6807 = vpack.c.b16 %v6761, %v6760
        %v6808 = vpack.c.b16 %v6762, %v6762
        %v6809 = vpack.c.b16 %v6764, %v6763
        %v6810 = vpack.c.b16 %v6765, %v6765
        %v6811 = vpack.c.b16 %v6767, %v6766
        %v6812 = vpack.c.b16 %v6768, %v6768
        %v6813 = vpack.c.b16 %v6770, %v6769
        %v6814 = vpack.c.b16 %v6771, %v6771
        %v6815 = vpack.c.b16 %v6773, %v6772
        %v6816 = vpack.c.b16 %v6774, %v6774
        %v6817 = vpack.c.b16 %v6776, %v6775
        %v6818 = vpack.c.b16 %v6777, %v6777
        %v6819 = vpack.c.b16 %v6779, %v6778
        %v6820 = vpack.c.b16 %v6780, %v6780
        %v6821 = vpack.c.b16 %v6782, %v6781
        %v6822 = vpack.c.b16 %v6783, %v6783
        %v6823 = vpack.c.b16 %v6785, %v6784
        %v6824 = vpack.c.b16 %v6786, %v6786
        %v6825 = vpack.c.b16 %v6788, %v6787
        %v6826 = vpack.c.b16 %v6789, %v6789
        %v6827 = vpack.c.b16 %v6791, %v6790
        %v6828 = vpack.c.b16 %v6792, %v6792
        %v6829 = vpack.c.b16 %v6794, %v6793
        %v6830 = vpack.c.b16 %v6795, %v6795
        %v6831 = vpack.c.b16 %v6797, %v6796
        %v6832 = vpack.c.b16 %v6798, %v6798
        %v6833 = vpack.c.b16 %v6800, %v6799
        %v6834 = vpack.c.b16 %v6801, %v6801
        %v6835 = vpack.c.b16 %v6803, %v6802
        %v6836 = vpack.c.b16 %v6804, %v6804
        %6869 = vst [vmem:[%s244] sm:$0xff] %v6805
        %6870 = vst [vmem:[%s244 + $0x8] sm:$0xf] %v6806
        %6871 = vst [vmem:[%s244 + $0xc] sm:$0xff] %v6807
        %6872 = vst [vmem:[%s244 + $0x14] sm:$0xf] %v6808
        %6873 = vst [vmem:[%s244 + $0x18] sm:$0xff] %v6809
        %6874 = vst [vmem:[%s244 + $0x20] sm:$0xf] %v6810
        %6875 = vst [vmem:[%s244 + $0x24] sm:$0xff] %v6811
        %6876 = vst [vmem:[%s244 + $0x2c] sm:$0xf] %v6812
        %6877 = vst [vmem:[%s244 + $0x30] sm:$0xff] %v6813
        %6878 = vst [vmem:[%s244 + $0x38] sm:$0xf] %v6814
        %6879 = vst [vmem:[%s244 + $0x3c] sm:$0xff] %v6815
        %6880 = vst [vmem:[%s244 + $0x44] sm:$0xf] %v6816
        %6881 = vst [vmem:[%s244 + $0x48] sm:$0xff] %v6817
        %6882 = vst [vmem:[%s244 + $0x50] sm:$0xf] %v6818
        %6883 = vst [vmem:[%s244 + $0x54] sm:$0xff] %v6819
        %6884 = vst [vmem:[%s244 + $0x5c] sm:$0xf] %v6820
        %6885 = vst [vmem:[%s244 + $0x60] sm:$0xff] %v6821
        %6886 = vst [vmem:[%s244 + $0x68] sm:$0xf] %v6822
        %6887 = vst [vmem:[%s244 + $0x6c] sm:$0xff] %v6823
        %6888 = vst [vmem:[%s244 + $0x74] sm:$0xf] %v6824
        %6889 = vst [vmem:[%s244 + $0x78] sm:$0xff] %v6825
        %6890 = vst [vmem:[%s244 + $0x80] sm:$0xf] %v6826
        %6891 = vst [vmem:[%s244 + $0x84] sm:$0xff] %v6827
        %6892 = vst [vmem:[%s244 + $0x8c] sm:$0xf] %v6828
        %6893 = vst [vmem:[%s244 + $0x90] sm:$0xff] %v6829
        %6894 = vst [vmem:[%s244 + $0x98] sm:$0xf] %v6830
        %6895 = vst [vmem:[%s244 + $0x9c] sm:$0xff] %v6831
        %6896 = vst [vmem:[%s244 + $0xa4] sm:$0xf] %v6832
        %6897 = vst [vmem:[%s244 + $0xa8] sm:$0xff] %v6833
        %6898 = vst [vmem:[%s244 + $0xb0] sm:$0xf] %v6834
        %6899 = vst [vmem:[%s244 + $0xb4] sm:$0xff] %v6835
        %6900 = vst [vmem:[%s244 + $0xbc] sm:$0xf] %v6836
        %s6901 = sand.u32 %s119, 1
        %s6902 = scalar_lea.sflag [#allocation4], %s6901
        %s6903 = sand.u32 %s119, 1
        %s6904 = smul.addr %s6903, 192
        %s6905 = scalar_lea.vmem [#allocation8], %s6904
        // Predicated region
        $region49: #{tpu_custom_call.1} parent=35 // pred_check
          %p6906 = pneg %p129
        $region50: #{tpu_custom_call.1} parent=35 // pred_check_branch
          %6908 = sbr.rel (%p6906) target = $region52
        $region51: #{tpu_custom_call.1} parent=35 // pred_region
          %s6910 = ssub.s32 3072, 3072
          %6911 = vsyncadd %s6902, %s6910
          %s6912 = smul.addr %s22, 48
          %s6913 = smul.addr %s6912, 64
          %s6914 = scalar_lea.hbm %s4, %s6913
          %s6915 = sshll.u32 %s6905, 4
          %s6916 = int_to_ptr.vmem [resolvable:$true] %s6915
          %6921 = dma.vmem_to_hbm [thread:$0]  %s6916, 3072, %s6914, %s6902, 192, 192, 12
        $region52: #{tpu_custom_call.1} parent=35 // pred_fallthru
          _
      $region36: #{tpu_custom_call.1} parent=5 // pred_fallthru
        _
      %p6922 = scmp.le.s32.totalorder 2, %s17
      // Predicated region
      $region53: #{tpu_custom_call.1} parent=5 // pred_check
        %p6923 = pneg %p6922
      $region54: #{tpu_custom_call.1} parent=5 // pred_check_branch
        %6925 = sbr.rel (%p6923) target = $region56
      $region55: #{tpu_custom_call.1} parent=5 // pred_region
        %s6926 = ssub.s32 %s17, 2
        // Predicated region
        $region57: #{tpu_custom_call.1} parent=55 // pred_check
          %p6927 = pneg %p135
        $region58: #{tpu_custom_call.1} parent=55 // pred_check_branch
          %6929 = sbr.rel (%p6927) target = $region60
        $region59: #{tpu_custom_call.1} parent=55 // pred_region
          %s6930 = sand.u32 %s120, 1
          %s6931 = scalar_lea.sflag [#allocation4], %s6930
          %s6932 = sand.u32 %s120, 1
          %s6933 = smul.addr %s6932, 192
          %s6934 = scalar_lea.vmem [#allocation8], %s6933
          %6935 = dma.done %s6931, 3072
        $region60: #{tpu_custom_call.1} parent=55 // pred_fallthru
          _
      $region56: #{tpu_custom_call.1} parent=5 // pred_fallthru
        _
    $region6: #{tpu_custom_call.1} parent=1 // loop_footer
      %s21 = sadd.s32 1, %s17
    $region7: #{tpu_custom_call.1} parent=1 // loop_footer_branch
      %16 = sbr.rel target = $region3
    $region8: #{tpu_custom_call.1} parent=1 // loop_exit
      _
    %6936 = vsyncpa [#allocation3], 1
    %s6937 = scalar_lea.sflag [#allocation3], 1
    %6938 = vsyncpa %s6937, 1
    %6939 = vsyncpa [#allocation6], 1
    %6940 = vsyncpa [#allocation4], 1
    %s6941 = scalar_lea.sflag [#allocation4], 1
    %6942 = vsyncpa %s6941, 1

</llo_original>
